<compile_context>
chip_gen: v6e
topology: v6e:2x2x1
jax: 0.10.0
libtpu: 0.0.40
codegen_flags: <defaults>
</compile_context>

<pallas_src>
import functools

import jax
import jax.numpy as jnp
from jax import lax
from jax.experimental import pallas as pl
from jax.experimental.pallas import tpu as pltpu


# -----------------------------------------------------------------------------
# Kernel 1: geometry (projection + back-projection + validity), lane-dense
# -----------------------------------------------------------------------------
def _geom_kernel(scal_ref, pts_ref, cell_ref, pix_ref, *, n_pts, img_h, img_w,
                 feat_h, feat_w, bev_x, bev_y, tile_rows):
    i = pl.program_id(0)                      # point-row tile index
    c = pl.program_id(1)                      # camera index

    px = pts_ref[0]                           # (tile_rows, 128) f32
    py = pts_ref[1]
    pz = pts_ref[2]

    def s(k):                                 # scalar read from SMEM
        return scal_ref[c, k]

    # lidar aug: p -= t_aug ; p = inv(R_aug) @ p
    qx = px - s(9)
    qy = py - s(10)
    qz = pz - s(11)
    lx = s(0) * qx + s(1) * qy + s(2) * qz
    ly = s(3) * qx + s(4) * qy + s(5) * qz
    lz = s(6) * qx + s(7) * qy + s(8) * qz

    # lidar2image (rotation + translation)
    cx = s(12) * lx + s(13) * ly + s(14) * lz + s(21)
    cy = s(15) * lx + s(16) * ly + s(17) * lz + s(22)
    cz = s(18) * lx + s(19) * ly + s(20) * lz + s(23)
    czc = jnp.clip(cz, 1e-5, 1e5)
    # keep true divisions (a reciprocal-multiply can flip trunc/on_img exactly
    # at boundaries vs. the PyTorch reference)
    nx = cx / czc
    ny = cy / czc

    # image aug matrix
    ax = s(24) * nx + s(25) * ny + s(26) * czc + s(33)
    ay = s(27) * nx + s(28) * ny + s(29) * czc + s(34)

    # coords swap [1, 0]: coord0 = ay (row), coord1 = ax (col)
    on_img = (ay < float(img_h)) & (ay >= 0.0) & \
             (ax < float(img_w)) & (ax >= 0.0)
    u = ay * 0.125                            # == /8.0 exactly (power of two)
    v = ax * 0.125
    d = czc                                   # `dist` is a view of the clamped z

    # back-projection through the (bug-faithfully) rescaled lidar2image
    xx = u * d
    yy = v * d
    sx = xx - s(45)
    sy = yy - s(46)
    sz = d - s(47)
    bx = s(36) * sx + s(37) * sy + s(38) * sz
    by = s(39) * sx + s(40) * sy + s(41) * sz
    bz = s(42) * sx + s(43) * sy + s(44) * sz

    xi = bx.astype(jnp.int32)                 # trunc toward zero == torch .long()
    yi = by.astype(jnp.int32)
    valid_xyz = (bz >= 0.0) & (xi >= -54) & (yi >= -54) & (xi < 54) & (yi < 54)
    valid_uv = (u >= 0.0) & (u < float(feat_h)) & (v >= 0.0) & (v < float(feat_w))

    # mask out padding points (global index >= n_pts)
    rr = lax.broadcasted_iota(jnp.int32, px.shape, 0)
    ll = lax.broadcasted_iota(jnp.int32, px.shape, 1)
    in_range = (i * tile_rows + rr) * 128 + ll < n_pts

    valid = on_img & valid_uv & valid_xyz & in_range

    ui = u.astype(jnp.int32)
    vi = v.astype(jnp.int32)
    # keep the true /0.3 division (reciprocal-multiply could flip truncation
    # exactly at cell boundaries)
    x_int = (xi.astype(jnp.float32) / 0.3).astype(jnp.int32)
    y_int = (yi.astype(jnp.float32) / 0.3).astype(jnp.int32)

    # torch negative indexing wraps; for valid points x_int,y_int in (-180,180)
    xm = x_int + jnp.where(x_int < 0, bev_x, 0)
    ym = y_int + jnp.where(y_int < 0, bev_y, 0)

    cells = jnp.where(valid, xm * bev_y + ym, -1)      # -1 == "no write"
    pixs = jnp.where(valid, ui * feat_w + vi, 0)

    cell_ref[...] = cells[None]
    pix_ref[...] = pixs[None]


def _geom_call(scal, pts_packed, n_pts, img_h, img_w, feat_h, feat_w,
               bev_x, bev_y, tile_rows):
    num_cams = scal.shape[0]
    _, rp, _ = pts_packed.shape
    assert rp % tile_rows == 0
    kern = functools.partial(
        _geom_kernel, n_pts=n_pts, img_h=img_h, img_w=img_w, feat_h=feat_h,
        feat_w=feat_w, bev_x=bev_x, bev_y=bev_y, tile_rows=tile_rows)
    out_shape = (jax.ShapeDtypeStruct((num_cams, rp, 128), jnp.int32),) * 2
    return pl.pallas_call(
        kern,
        grid=(rp // tile_rows, num_cams),
        in_specs=[pl.BlockSpec(memory_space=pltpu.MemorySpace.SMEM),   # matrices
                  pl.BlockSpec((3, tile_rows, 128), lambda i, c: (0, i, 0))],
        out_specs=[pl.BlockSpec((1, tile_rows, 128), lambda i, c: (c, i, 0)),
                   pl.BlockSpec((1, tile_rows, 128), lambda i, c: (c, i, 0))],
        out_shape=out_shape,
        compiler_params=pltpu.CompilerParams(
            dimension_semantics=("parallel", "arbitrary")),
    )(scal, pts_packed)


# -----------------------------------------------------------------------------
# Kernel 2: grouped one-hot MXU scatter-accumulate into BEV tiles
#   Flat work-tile grid (MoE pattern); per BEV tile only its own (sorted,
#   contiguous) point blocks are visited, selected by scalar-prefetch tables.
# -----------------------------------------------------------------------------
def _scatter_kernel(gid_ref, pblk_ref, first_ref, act_ref,
                    cells_ref, feats_ref, out_ref, *, tile_cells):
    w = pl.program_id(0)
    g = gid_ref[w]                                     # BEV tile of this step

    @pl.when(first_ref[w] != 0)                        # first step of the group
    def _():
        out_ref[...] = jnp.zeros_like(out_ref)

    @pl.when(act_ref[w] != 0)                          # step has real points
    def _():
        # subtract tile base from the (1, NPT) cells row (cheap) instead of
        # adding it to the big iota (review item 4)
        rel = cells_ref[...] - g * tile_cells                      # (1, NPT)
        npt = rel.shape[1]
        row_ids = lax.broadcasted_iota(jnp.int32, (tile_cells, npt), 0)
        onehot = (row_ids == rel).astype(feats_ref.dtype)          # (T, NPT) bf16
        out_ref[...] += jnp.dot(onehot, feats_ref[...],
                                preferred_element_type=jnp.float32)


def _scatter_call(scells_row, feats_sorted, gid, pblk, first, act,
                  n_cells_pad, tile_cells, npt):
    chans = feats_sorted.shape[-1]
    w_max = gid.shape[0]
    kern = functools.partial(_scatter_kernel, tile_cells=tile_cells)
    return pl.pallas_call(
        kern,
        grid_spec=pltpu.PrefetchScalarGridSpec(
            num_scalar_prefetch=4,
            grid=(w_max,),
            in_specs=[
                pl.BlockSpec((1, npt),
                             lambda w, g_, p_, f_, a_: (0, p_[w])),
                pl.BlockSpec((npt, chans),
                             lambda w, g_, p_, f_, a_: (p_[w], 0)),
            ],
            out_specs=pl.BlockSpec(
                (tile_cells, chans), lambda w, g_, p_, f_, a_: (g_[w], 0)),
        ),
        out_shape=jax.ShapeDtypeStruct((n_cells_pad, chans), jnp.float32),
        compiler_params=pltpu.CompilerParams(
            dimension_semantics=("arbitrary",)),
    )(gid, pblk, first, act, scells_row, feats_sorted)


# -----------------------------------------------------------------------------
# Forward wrapper (mirrors WayPointMapping.forward semantics)
# -----------------------------------------------------------------------------
def waypoint_mapping_forward(img_feat, points, lidar2image, img_aug_matrix,
                             lidar_aug_matrix, image_size,
                             bev_feature_size=(180, 180)):
    img_feat = jnp.asarray(img_feat)
    B, NC, C, Hf, Wf = img_feat.shape
    assert NC >= 2, "reference scale_intrinsics touches cameras 0 and 1"
    img_h, img_w = image_size
    assert Hf == img_h // 8 and Wf == img_w // 8
    bev_x, bev_y = bev_feature_size
    hw_bev = bev_x * bev_y

    TILE_ROWS = 256                # 256 x 128 = 32768 points / geometry step
    NPT = 512                      # points per scatter matmul step
    TILE_CELLS = 2048              # BEV cells per scatter output tile
    n_cells_pad = -(-hw_bev // TILE_CELLS) * TILE_CELLS     # 32768 for 180x180
    n_tiles = n_cells_pad // TILE_CELLS
    SENT = jnp.int32(2 ** 30)

    outs = []
    for b in range(B):
        pts = jnp.asarray(points[b])[:, :3].astype(jnp.float32)      # (N, 3)
        n_pts = pts.shape[0]
        A = jnp.asarray(lidar_aug_matrix[b], jnp.float32)
        L = jnp.asarray(lidar2image[b], jnp.float32)                  # (NC,4,4)
        Ia = jnp.asarray(img_aug_matrix[b], jnp.float32)              # (NC,4,4)
        Ainv = jnp.linalg.inv(A[:3, :3])

        # Per-camera scalar table (faithful replication of the repeated,
        # cumulative scale_intrinsics(.., 8.0) calls which only touch rows of
        # camera 0 and camera 1 of the stacked matrix).
        rows = []
        cur = L
        for c in range(NC):
            cur = cur.at[0, 0, :].divide(8.0)
            cur = cur.at[1, 1, :].divide(8.0)
            cur = cur.at[0, 2, :].divide(8.0)
            cur = cur.at[1, 2, :].divide(8.0)
            M = cur[c]
            Minv = jnp.linalg.inv(M[:3, :3])
            rows.append(jnp.concatenate([
                Ainv.reshape(-1), A[:3, 3],
                L[c, :3, :3].reshape(-1), L[c, :3, 3],
                Ia[c, :3, :3].reshape(-1), Ia[c, :3, 3],
                Minv.reshape(-1), M[:3, 3]]))
        scal = jnp.stack(rows).astype(jnp.float32)                    # (NC, 48)

        # lane-dense packing of the point cloud: (3, Rp, 128); padding is
        # masked inside the kernel by index (so it can never become "valid").
        n_rows = -(-n_pts // 128)
        rp = -(-n_rows // TILE_ROWS) * TILE_ROWS
        np_pad = rp * 128
        pts_pad = jnp.pad(pts, ((0, np_pad - n_pts), (0, 0)))
        pts_packed = jnp.transpose(pts_pad, (1, 0)).reshape(3, rp, 128)

        cells, pixs = _geom_call(scal, pts_packed, n_pts, img_h, img_w,
                                 Hf, Wf, bev_x, bev_y, TILE_ROWS)
        cells = cells.reshape(NC, np_pad)
        pixs = pixs.reshape(NC, np_pad)

        # ---- single stable sort: folds cameras, dedups (last write wins per
        #      camera), and yields the sorted layout used for per-tile ranges.
        cam_col = jnp.arange(NC, dtype=jnp.int32)[:, None]
        key = jnp.where(cells >= 0, cells * NC + cam_col, SENT).reshape(-1)
        order = jnp.argsort(key, stable=True)
        skey = jnp.take(key, order)
        last_of_run = jnp.concatenate(
            [skey[:-1] != skey[1:], jnp.ones((1,), jnp.bool_)])
        keep = last_of_run & (skey != SENT)           # per-(cell,camera) winner
        cell_sorted = skey // NC                      # monotone; SENT//NC huge
        scells = jnp.where(keep, cell_sorted, -1).astype(jnp.int32)

        # gather image features once, in sorted order, kept narrow (bf16)
        gather_idx = (cam_col * (Hf * Wf) + pixs).reshape(-1)
        sgidx = jnp.take(gather_idx, order)
        img_flat = jnp.transpose(img_feat[b].astype(jnp.bfloat16),
                                 (0, 2, 3, 1)).reshape(NC * Hf * Wf, C)
        feats_sorted = jnp.take(img_flat, sgidx, axis=0)      # (NP_total, C)

        np_total = NC * np_pad
        assert np_total % NPT == 0
        npb = np_total // NPT

        # ---- per-BEV-tile sorted point ranges -> flat work-tile table (P2)
        bounds = jnp.arange(n_tiles + 1, dtype=jnp.int32) * TILE_CELLS
        idx = jnp.searchsorted(cell_sorted, bounds, side='left').astype(jnp.int32)
        start, end = idx[:-1], idx[1:]
        kstart = start // NPT
        kend = (end + NPT - 1) // NPT
        nraw = kend - kstart                           # point blocks with data
        nblk = jnp.maximum(nraw, 1)                    # >=1 so every tile inits
        cum = jnp.cumsum(nblk)
        gstart = cum - nblk

        w_max = npb + 2 * n_tiles                      # static upper bound
        w_ids = jnp.arange(w_max, dtype=jnp.int32)
        gid = jnp.minimum(jnp.searchsorted(cum, w_ids, side='right'),
                          n_tiles - 1).astype(jnp.int32)
        kig = w_ids - gstart[gid]
        act = kig < nraw[gid]
        first = kig == 0
        pblk = jnp.where(act, jnp.clip(kstart[gid] + kig, 0, npb - 1),
                         0).astype(jnp.int32)

        bev = _scatter_call(scells.reshape(1, np_total), feats_sorted,
                            gid, pblk, first.astype(jnp.int32),
                            act.astype(jnp.int32),
                            n_cells_pad, TILE_CELLS, NPT)

        # cells >= hw_bev are never produced, so the padding rows stay zero
        outs.append(bev[:hw_bev].T.reshape(C, bev_x, bev_y))

    return jnp.stack(outs).astype(jnp.float16)            # [B, C, 180, 180]


# -----------------------------------------------------------------------------
# Demo
# -----------------------------------------------------------------------------
if __name__ == "__main__":
    key = jax.random.PRNGKey(0)
    B, NC, C = 2, 2, 8
    image_size = (128, 128)
    Hf, Wf = image_size[0] // 8, image_size[1] // 8
    N = 256

    k1, k2 = jax.random.split(key)
    img_feat = jax.random.normal(k1, (B, NC, C, Hf, Wf), jnp.float32).astype(jnp.float16)
    points = jax.random.uniform(
        k2, (B, N, 5), jnp.float32,
        minval=jnp.array([2.0, -20.0, -2.0, 0.0, 0.0], jnp.float32),
        maxval=jnp.array([45.0, 20.0, 2.0, 1.0, 1.0], jnp.float32))

    # deterministic plausible calibration matrices (pinhole camera looking +x)
    f, cx0, cy0 = 60.0, 64.0, 64.0
    K = jnp.array([[f, 0, cx0, 0], [0, f, cy0, 0],
                   [0, 0, 1, 0], [0, 0, 0, 1]], jnp.float32)
    Rcam = jnp.array([[0, -1, 0], [0, 0, -1], [1, 0, 0]], jnp.float32)

    def lidar2cam(yaw):
        cyw, syw = jnp.cos(yaw), jnp.sin(yaw)
        Rz = jnp.array([[cyw, -syw, 0], [syw, cyw, 0], [0, 0, 1]], jnp.float32)
        M = jnp.eye(4, dtype=jnp.float32)
        M = M.at[:3, :3].set(Rcam @ Rz)
        M = M.at[:3, 3].set(jnp.array([0.1, -0.2, 0.3], jnp.float32))
        return M

    per_batch_l2i = jnp.stack([K @ lidar2cam(0.0), K @ lidar2cam(0.3)])   # (NC,4,4)
    lidar2image = jnp.tile(per_batch_l2i[None], (B, 1, 1, 1))
    img_aug_matrix = jnp.tile(jnp.eye(4, dtype=jnp.float32), (B, NC, 1, 1))
    lidar_aug_matrix = jnp.tile(jnp.eye(4, dtype=jnp.float32), (B, 1, 1))

    out = waypoint_mapping_forward(img_feat, points, lidar2image,
                                   img_aug_matrix, lidar_aug_matrix, image_size)
    out = jax.block_until_ready(out)
    assert out.shape == (B, C, 180, 180), out.shape
    assert out.dtype == jnp.float16, out.dtype
    print("KERNEL_OK")
</pallas_src>

<mosaic_0001>
module attributes {stable_mosaic.version = 11 : i64} {
  func.func @_geom_kernel(%arg0: i32, %arg1: i32, %arg2: memref<2x48xf32, #tpu.memory_space<smem>>, %arg3: memref<3x256x128xf32, #tpu.memory_space<vmem>>, %arg4: memref<1x256x128xi32, #tpu.memory_space<vmem>>, %arg5: memref<1x256x128xi32, #tpu.memory_space<vmem>>) attributes {dimension_semantics = [#tpu.dimension_semantics<parallel>, #tpu.dimension_semantics<arbitrary>], iteration_bounds = array<i64: 1, 2>, scalar_prefetch = 0 : i64, scratch_operands = 0 : i64, tpu.core_type = #tpu.core_type<tc>, window_params = [{transform_indices = @transform_0, window_bounds = array<i64: 2, 48>}, {transform_indices = @transform_1, window_bounds = array<i64: 3, 256, 128>}, {transform_indices = @transform_2, window_bounds = array<i64: 1, 256, 128>}, {transform_indices = @transform_3, window_bounds = array<i64: 1, 256, 128>}]} {
    %c0 = arith.constant 0 : index
    %c0_0 = arith.constant 0 : index
    %c0_1 = arith.constant 0 : index
    %0 = vector.load %arg3[%c0, %c0_0, %c0_1] : memref<3x256x128xf32, #tpu.memory_space<vmem>>, vector<1x256x128xf32>
    %1 = vector.shape_cast %0 : vector<1x256x128xf32> to vector<256x128xf32>
    %c1 = arith.constant 1 : index
    %c0_2 = arith.constant 0 : index
    %c0_3 = arith.constant 0 : index
    %2 = vector.load %arg3[%c1, %c0_2, %c0_3] : memref<3x256x128xf32, #tpu.memory_space<vmem>>, vector<1x256x128xf32>
    %3 = vector.shape_cast %2 : vector<1x256x128xf32> to vector<256x128xf32>
    %c2 = arith.constant 2 : index
    %c0_4 = arith.constant 0 : index
    %c0_5 = arith.constant 0 : index
    %4 = vector.load %arg3[%c2, %c0_4, %c0_5] : memref<3x256x128xf32, #tpu.memory_space<vmem>>, vector<1x256x128xf32>
    %5 = vector.shape_cast %4 : vector<1x256x128xf32> to vector<256x128xf32>
    %6 = arith.index_cast %arg1 : i32 to index
    %c9 = arith.constant 9 : index
    %7 = memref.load %arg2[%6, %c9] : memref<2x48xf32, #tpu.memory_space<smem>>
    %8 = vector.broadcast %7 : f32 to vector<256x128xf32>
    %9 = arith.subf %1, %8 : vector<256x128xf32>
    %10 = arith.index_cast %arg1 : i32 to index
    %c10 = arith.constant 10 : index
    %11 = memref.load %arg2[%10, %c10] : memref<2x48xf32, #tpu.memory_space<smem>>
    %12 = vector.broadcast %11 : f32 to vector<256x128xf32>
    %13 = arith.subf %3, %12 : vector<256x128xf32>
    %14 = arith.index_cast %arg1 : i32 to index
    %c11 = arith.constant 11 : index
    %15 = memref.load %arg2[%14, %c11] : memref<2x48xf32, #tpu.memory_space<smem>>
    %16 = vector.broadcast %15 : f32 to vector<256x128xf32>
    %17 = arith.subf %5, %16 : vector<256x128xf32>
    %18 = arith.index_cast %arg1 : i32 to index
    %c0_6 = arith.constant 0 : index
    %19 = memref.load %arg2[%18, %c0_6] : memref<2x48xf32, #tpu.memory_space<smem>>
    %20 = vector.broadcast %19 : f32 to vector<256x128xf32>
    %21 = arith.mulf %20, %9 : vector<256x128xf32>
    %22 = arith.index_cast %arg1 : i32 to index
    %c1_7 = arith.constant 1 : index
    %23 = memref.load %arg2[%22, %c1_7] : memref<2x48xf32, #tpu.memory_space<smem>>
    %24 = vector.broadcast %23 : f32 to vector<256x128xf32>
    %25 = arith.mulf %24, %13 : vector<256x128xf32>
    %26 = arith.addf %21, %25 : vector<256x128xf32>
    %27 = arith.index_cast %arg1 : i32 to index
    %c2_8 = arith.constant 2 : index
    %28 = memref.load %arg2[%27, %c2_8] : memref<2x48xf32, #tpu.memory_space<smem>>
    %29 = vector.broadcast %28 : f32 to vector<256x128xf32>
    %30 = arith.mulf %29, %17 : vector<256x128xf32>
    %31 = arith.addf %26, %30 : vector<256x128xf32>
    %32 = arith.index_cast %arg1 : i32 to index
    %c3 = arith.constant 3 : index
    %33 = memref.load %arg2[%32, %c3] : memref<2x48xf32, #tpu.memory_space<smem>>
    %34 = vector.broadcast %33 : f32 to vector<256x128xf32>
    %35 = arith.mulf %34, %9 : vector<256x128xf32>
    %36 = arith.index_cast %arg1 : i32 to index
    %c4 = arith.constant 4 : index
    %37 = memref.load %arg2[%36, %c4] : memref<2x48xf32, #tpu.memory_space<smem>>
    %38 = vector.broadcast %37 : f32 to vector<256x128xf32>
    %39 = arith.mulf %38, %13 : vector<256x128xf32>
    %40 = arith.addf %35, %39 : vector<256x128xf32>
    %41 = arith.index_cast %arg1 : i32 to index
    %c5 = arith.constant 5 : index
    %42 = memref.load %arg2[%41, %c5] : memref<2x48xf32, #tpu.memory_space<smem>>
    %43 = vector.broadcast %42 : f32 to vector<256x128xf32>
    %44 = arith.mulf %43, %17 : vector<256x128xf32>
    %45 = arith.addf %40, %44 : vector<256x128xf32>
    %46 = arith.index_cast %arg1 : i32 to index
    %c6 = arith.constant 6 : index
    %47 = memref.load %arg2[%46, %c6] : memref<2x48xf32, #tpu.memory_space<smem>>
    %48 = vector.broadcast %47 : f32 to vector<256x128xf32>
    %49 = arith.mulf %48, %9 : vector<256x128xf32>
    %50 = arith.index_cast %arg1 : i32 to index
    %c7 = arith.constant 7 : index
    %51 = memref.load %arg2[%50, %c7] : memref<2x48xf32, #tpu.memory_space<smem>>
    %52 = vector.broadcast %51 : f32 to vector<256x128xf32>
    %53 = arith.mulf %52, %13 : vector<256x128xf32>
    %54 = arith.addf %49, %53 : vector<256x128xf32>
    %55 = arith.index_cast %arg1 : i32 to index
    %c8 = arith.constant 8 : index
    %56 = memref.load %arg2[%55, %c8] : memref<2x48xf32, #tpu.memory_space<smem>>
    %57 = vector.broadcast %56 : f32 to vector<256x128xf32>
    %58 = arith.mulf %57, %17 : vector<256x128xf32>
    %59 = arith.addf %54, %58 : vector<256x128xf32>
    %60 = arith.index_cast %arg1 : i32 to index
    %c12 = arith.constant 12 : index
    %61 = memref.load %arg2[%60, %c12] : memref<2x48xf32, #tpu.memory_space<smem>>
    %62 = vector.broadcast %61 : f32 to vector<256x128xf32>
    %63 = arith.mulf %62, %31 : vector<256x128xf32>
    %64 = arith.index_cast %arg1 : i32 to index
    %c13 = arith.constant 13 : index
    %65 = memref.load %arg2[%64, %c13] : memref<2x48xf32, #tpu.memory_space<smem>>
    %66 = vector.broadcast %65 : f32 to vector<256x128xf32>
    %67 = arith.mulf %66, %45 : vector<256x128xf32>
    %68 = arith.addf %63, %67 : vector<256x128xf32>
    %69 = arith.index_cast %arg1 : i32 to index
    %c14 = arith.constant 14 : index
    %70 = memref.load %arg2[%69, %c14] : memref<2x48xf32, #tpu.memory_space<smem>>
    %71 = vector.broadcast %70 : f32 to vector<256x128xf32>
    %72 = arith.mulf %71, %59 : vector<256x128xf32>
    %73 = arith.addf %68, %72 : vector<256x128xf32>
    %74 = arith.index_cast %arg1 : i32 to index
    %c21 = arith.constant 21 : index
    %75 = memref.load %arg2[%74, %c21] : memref<2x48xf32, #tpu.memory_space<smem>>
    %76 = vector.broadcast %75 : f32 to vector<256x128xf32>
    %77 = arith.addf %73, %76 : vector<256x128xf32>
    %78 = arith.index_cast %arg1 : i32 to index
    %c15 = arith.constant 15 : index
    %79 = memref.load %arg2[%78, %c15] : memref<2x48xf32, #tpu.memory_space<smem>>
    %80 = vector.broadcast %79 : f32 to vector<256x128xf32>
    %81 = arith.mulf %80, %31 : vector<256x128xf32>
    %82 = arith.index_cast %arg1 : i32 to index
    %c16 = arith.constant 16 : index
    %83 = memref.load %arg2[%82, %c16] : memref<2x48xf32, #tpu.memory_space<smem>>
    %84 = vector.broadcast %83 : f32 to vector<256x128xf32>
    %85 = arith.mulf %84, %45 : vector<256x128xf32>
    %86 = arith.addf %81, %85 : vector<256x128xf32>
    %87 = arith.index_cast %arg1 : i32 to index
    %c17 = arith.constant 17 : index
    %88 = memref.load %arg2[%87, %c17] : memref<2x48xf32, #tpu.memory_space<smem>>
    %89 = vector.broadcast %88 : f32 to vector<256x128xf32>
    %90 = arith.mulf %89, %59 : vector<256x128xf32>
    %91 = arith.addf %86, %90 : vector<256x128xf32>
    %92 = arith.index_cast %arg1 : i32 to index
    %c22 = arith.constant 22 : index
    %93 = memref.load %arg2[%92, %c22] : memref<2x48xf32, #tpu.memory_space<smem>>
    %94 = vector.broadcast %93 : f32 to vector<256x128xf32>
    %95 = arith.addf %91, %94 : vector<256x128xf32>
    %96 = arith.index_cast %arg1 : i32 to index
    %c18 = arith.constant 18 : index
    %97 = memref.load %arg2[%96, %c18] : memref<2x48xf32, #tpu.memory_space<smem>>
    %98 = vector.broadcast %97 : f32 to vector<256x128xf32>
    %99 = arith.mulf %98, %31 : vector<256x128xf32>
    %100 = arith.index_cast %arg1 : i32 to index
    %c19 = arith.constant 19 : index
    %101 = memref.load %arg2[%100, %c19] : memref<2x48xf32, #tpu.memory_space<smem>>
    %102 = vector.broadcast %101 : f32 to vector<256x128xf32>
    %103 = arith.mulf %102, %45 : vector<256x128xf32>
    %104 = arith.addf %99, %103 : vector<256x128xf32>
    %105 = arith.index_cast %arg1 : i32 to index
    %c20 = arith.constant 20 : index
    %106 = memref.load %arg2[%105, %c20] : memref<2x48xf32, #tpu.memory_space<smem>>
    %107 = vector.broadcast %106 : f32 to vector<256x128xf32>
    %108 = arith.mulf %107, %59 : vector<256x128xf32>
    %109 = arith.addf %104, %108 : vector<256x128xf32>
    %110 = arith.index_cast %arg1 : i32 to index
    %c23 = arith.constant 23 : index
    %111 = memref.load %arg2[%110, %c23] : memref<2x48xf32, #tpu.memory_space<smem>>
    %112 = vector.broadcast %111 : f32 to vector<256x128xf32>
    %113 = arith.addf %109, %112 : vector<256x128xf32>
    %cst = arith.constant 9.99999974E-6 : f32
    %cst_9 = arith.constant 1.000000e+05 : f32
    %114 = vector.broadcast %cst : f32 to vector<256x128xf32>
    %115 = arith.maximumf %114, %113 : vector<256x128xf32>
    %116 = vector.broadcast %cst_9 : f32 to vector<256x128xf32>
    %117 = arith.minimumf %116, %115 : vector<256x128xf32>
    %118 = arith.divf %77, %117 : vector<256x128xf32>
    %119 = arith.divf %95, %117 : vector<256x128xf32>
    %120 = arith.index_cast %arg1 : i32 to index
    %c24 = arith.constant 24 : index
    %121 = memref.load %arg2[%120, %c24] : memref<2x48xf32, #tpu.memory_space<smem>>
    %122 = vector.broadcast %121 : f32 to vector<256x128xf32>
    %123 = arith.mulf %122, %118 : vector<256x128xf32>
    %124 = arith.index_cast %arg1 : i32 to index
    %c25 = arith.constant 25 : index
    %125 = memref.load %arg2[%124, %c25] : memref<2x48xf32, #tpu.memory_space<smem>>
    %126 = vector.broadcast %125 : f32 to vector<256x128xf32>
    %127 = arith.mulf %126, %119 : vector<256x128xf32>
    %128 = arith.addf %123, %127 : vector<256x128xf32>
    %129 = arith.index_cast %arg1 : i32 to index
    %c26 = arith.constant 26 : index
    %130 = memref.load %arg2[%129, %c26] : memref<2x48xf32, #tpu.memory_space<smem>>
    %131 = vector.broadcast %130 : f32 to vector<256x128xf32>
    %132 = arith.mulf %131, %117 : vector<256x128xf32>
    %133 = arith.addf %128, %132 : vector<256x128xf32>
    %134 = arith.index_cast %arg1 : i32 to index
    %c33 = arith.constant 33 : index
    %135 = memref.load %arg2[%134, %c33] : memref<2x48xf32, #tpu.memory_space<smem>>
    %136 = vector.broadcast %135 : f32 to vector<256x128xf32>
    %137 = arith.addf %133, %136 : vector<256x128xf32>
    %138 = arith.index_cast %arg1 : i32 to index
    %c27 = arith.constant 27 : index
    %139 = memref.load %arg2[%138, %c27] : memref<2x48xf32, #tpu.memory_space<smem>>
    %140 = vector.broadcast %139 : f32 to vector<256x128xf32>
    %141 = arith.mulf %140, %118 : vector<256x128xf32>
    %142 = arith.index_cast %arg1 : i32 to index
    %c28 = arith.constant 28 : index
    %143 = memref.load %arg2[%142, %c28] : memref<2x48xf32, #tpu.memory_space<smem>>
    %144 = vector.broadcast %143 : f32 to vector<256x128xf32>
    %145 = arith.mulf %144, %119 : vector<256x128xf32>
    %146 = arith.addf %141, %145 : vector<256x128xf32>
    %147 = arith.index_cast %arg1 : i32 to index
    %c29 = arith.constant 29 : index
    %148 = memref.load %arg2[%147, %c29] : memref<2x48xf32, #tpu.memory_space<smem>>
    %149 = vector.broadcast %148 : f32 to vector<256x128xf32>
    %150 = arith.mulf %149, %117 : vector<256x128xf32>
    %151 = arith.addf %146, %150 : vector<256x128xf32>
    %152 = arith.index_cast %arg1 : i32 to index
    %c34 = arith.constant 34 : index
    %153 = memref.load %arg2[%152, %c34] : memref<2x48xf32, #tpu.memory_space<smem>>
    %154 = vector.broadcast %153 : f32 to vector<256x128xf32>
    %155 = arith.addf %151, %154 : vector<256x128xf32>
    %cst_10 = arith.constant 1.280000e+02 : f32
    %156 = vector.broadcast %cst_10 : f32 to vector<256x128xf32>
    %157 = arith.cmpf olt, %155, %156 : vector<256x128xf32>
    %cst_11 = arith.constant 0.000000e+00 : f32
    %158 = vector.broadcast %cst_11 : f32 to vector<256x128xf32>
    %159 = arith.cmpf oge, %155, %158 : vector<256x128xf32>
    %160 = arith.andi %157, %159 : vector<256x128xi1>
    %cst_12 = arith.constant 1.280000e+02 : f32
    %161 = vector.broadcast %cst_12 : f32 to vector<256x128xf32>
    %162 = arith.cmpf olt, %137, %161 : vector<256x128xf32>
    %163 = arith.andi %160, %162 : vector<256x128xi1>
    %cst_13 = arith.constant 0.000000e+00 : f32
    %164 = vector.broadcast %cst_13 : f32 to vector<256x128xf32>
    %165 = arith.cmpf oge, %137, %164 : vector<256x128xf32>
    %166 = arith.andi %163, %165 : vector<256x128xi1>
    %cst_14 = arith.constant 1.250000e-01 : f32
    %167 = vector.broadcast %cst_14 : f32 to vector<256x128xf32>
    %168 = arith.mulf %155, %167 : vector<256x128xf32>
    %cst_15 = arith.constant 1.250000e-01 : f32
    %169 = vector.broadcast %cst_15 : f32 to vector<256x128xf32>
    %170 = arith.mulf %137, %169 : vector<256x128xf32>
    %171 = arith.mulf %168, %117 : vector<256x128xf32>
    %172 = arith.mulf %170, %117 : vector<256x128xf32>
    %173 = arith.index_cast %arg1 : i32 to index
    %c45 = arith.constant 45 : index
    %174 = memref.load %arg2[%173, %c45] : memref<2x48xf32, #tpu.memory_space<smem>>
    %175 = vector.broadcast %174 : f32 to vector<256x128xf32>
    %176 = arith.subf %171, %175 : vector<256x128xf32>
    %177 = arith.index_cast %arg1 : i32 to index
    %c46 = arith.constant 46 : index
    %178 = memref.load %arg2[%177, %c46] : memref<2x48xf32, #tpu.memory_space<smem>>
    %179 = vector.broadcast %178 : f32 to vector<256x128xf32>
    %180 = arith.subf %172, %179 : vector<256x128xf32>
    %181 = arith.index_cast %arg1 : i32 to index
    %c47 = arith.constant 47 : index
    %182 = memref.load %arg2[%181, %c47] : memref<2x48xf32, #tpu.memory_space<smem>>
    %183 = vector.broadcast %182 : f32 to vector<256x128xf32>
    %184 = arith.subf %117, %183 : vector<256x128xf32>
    %185 = arith.index_cast %arg1 : i32 to index
    %c36 = arith.constant 36 : index
    %186 = memref.load %arg2[%185, %c36] : memref<2x48xf32, #tpu.memory_space<smem>>
    %187 = vector.broadcast %186 : f32 to vector<256x128xf32>
    %188 = arith.mulf %187, %176 : vector<256x128xf32>
    %189 = arith.index_cast %arg1 : i32 to index
    %c37 = arith.constant 37 : index
    %190 = memref.load %arg2[%189, %c37] : memref<2x48xf32, #tpu.memory_space<smem>>
    %191 = vector.broadcast %190 : f32 to vector<256x128xf32>
    %192 = arith.mulf %191, %180 : vector<256x128xf32>
    %193 = arith.addf %188, %192 : vector<256x128xf32>
    %194 = arith.index_cast %arg1 : i32 to index
    %c38 = arith.constant 38 : index
    %195 = memref.load %arg2[%194, %c38] : memref<2x48xf32, #tpu.memory_space<smem>>
    %196 = vector.broadcast %195 : f32 to vector<256x128xf32>
    %197 = arith.mulf %196, %184 : vector<256x128xf32>
    %198 = arith.addf %193, %197 : vector<256x128xf32>
    %199 = arith.index_cast %arg1 : i32 to index
    %c39 = arith.constant 39 : index
    %200 = memref.load %arg2[%199, %c39] : memref<2x48xf32, #tpu.memory_space<smem>>
    %201 = vector.broadcast %200 : f32 to vector<256x128xf32>
    %202 = arith.mulf %201, %176 : vector<256x128xf32>
    %203 = arith.index_cast %arg1 : i32 to index
    %c40 = arith.constant 40 : index
    %204 = memref.load %arg2[%203, %c40] : memref<2x48xf32, #tpu.memory_space<smem>>
    %205 = vector.broadcast %204 : f32 to vector<256x128xf32>
    %206 = arith.mulf %205, %180 : vector<256x128xf32>
    %207 = arith.addf %202, %206 : vector<256x128xf32>
    %208 = arith.index_cast %arg1 : i32 to index
    %c41 = arith.constant 41 : index
    %209 = memref.load %arg2[%208, %c41] : memref<2x48xf32, #tpu.memory_space<smem>>
    %210 = vector.broadcast %209 : f32 to vector<256x128xf32>
    %211 = arith.mulf %210, %184 : vector<256x128xf32>
    %212 = arith.addf %207, %211 : vector<256x128xf32>
    %213 = arith.index_cast %arg1 : i32 to index
    %c42 = arith.constant 42 : index
    %214 = memref.load %arg2[%213, %c42] : memref<2x48xf32, #tpu.memory_space<smem>>
    %215 = vector.broadcast %214 : f32 to vector<256x128xf32>
    %216 = arith.mulf %215, %176 : vector<256x128xf32>
    %217 = arith.index_cast %arg1 : i32 to index
    %c43 = arith.constant 43 : index
    %218 = memref.load %arg2[%217, %c43] : memref<2x48xf32, #tpu.memory_space<smem>>
    %219 = vector.broadcast %218 : f32 to vector<256x128xf32>
    %220 = arith.mulf %219, %180 : vector<256x128xf32>
    %221 = arith.addf %216, %220 : vector<256x128xf32>
    %222 = arith.index_cast %arg1 : i32 to index
    %c44 = arith.constant 44 : index
    %223 = memref.load %arg2[%222, %c44] : memref<2x48xf32, #tpu.memory_space<smem>>
    %224 = vector.broadcast %223 : f32 to vector<256x128xf32>
    %225 = arith.mulf %224, %184 : vector<256x128xf32>
    %226 = arith.addf %221, %225 : vector<256x128xf32>
    %227 = arith.fptosi %198 : vector<256x128xf32> to vector<256x128xi32>
    %228 = arith.fptosi %212 : vector<256x128xf32> to vector<256x128xi32>
    %cst_16 = arith.constant 0.000000e+00 : f32
    %229 = vector.broadcast %cst_16 : f32 to vector<256x128xf32>
    %230 = arith.cmpf oge, %226, %229 : vector<256x128xf32>
    %c-54_i32 = arith.constant -54 : i32
    %231 = vector.broadcast %c-54_i32 : i32 to vector<256x128xi32>
    %232 = arith.cmpi sge, %227, %231 : vector<256x128xi32>
    %233 = arith.andi %230, %232 : vector<256x128xi1>
    %c-54_i32_17 = arith.constant -54 : i32
    %234 = vector.broadcast %c-54_i32_17 : i32 to vector<256x128xi32>
    %235 = arith.cmpi sge, %228, %234 : vector<256x128xi32>
    %236 = arith.andi %233, %235 : vector<256x128xi1>
    %c54_i32 = arith.constant 54 : i32
    %237 = vector.broadcast %c54_i32 : i32 to vector<256x128xi32>
    %238 = arith.cmpi slt, %227, %237 : vector<256x128xi32>
    %239 = arith.andi %236, %238 : vector<256x128xi1>
    %c54_i32_18 = arith.constant 54 : i32
    %240 = vector.broadcast %c54_i32_18 : i32 to vector<256x128xi32>
    %241 = arith.cmpi slt, %228, %240 : vector<256x128xi32>
    %242 = arith.andi %239, %241 : vector<256x128xi1>
    %cst_19 = arith.constant 0.000000e+00 : f32
    %243 = vector.broadcast %cst_19 : f32 to vector<256x128xf32>
    %244 = arith.cmpf oge, %168, %243 : vector<256x128xf32>
    %cst_20 = arith.constant 1.600000e+01 : f32
    %245 = vector.broadcast %cst_20 : f32 to vector<256x128xf32>
    %246 = arith.cmpf olt, %168, %245 : vector<256x128xf32>
    %247 = arith.andi %244, %246 : vector<256x128xi1>
    %cst_21 = arith.constant 0.000000e+00 : f32
    %248 = vector.broadcast %cst_21 : f32 to vector<256x128xf32>
    %249 = arith.cmpf oge, %170, %248 : vector<256x128xf32>
    %250 = arith.andi %247, %249 : vector<256x128xi1>
    %cst_22 = arith.constant 1.600000e+01 : f32
    %251 = vector.broadcast %cst_22 : f32 to vector<256x128xf32>
    %252 = arith.cmpf olt, %170, %251 : vector<256x128xf32>
    %253 = arith.andi %250, %252 : vector<256x128xi1>
    %254 = tpu.iota {dimensions = array<i32: 0>} : vector<256x128xi32>
    %255 = tpu.iota {dimensions = array<i32: 1>} : vector<256x128xi32>
    %c256_i32 = arith.constant 256 : i32
    %256 = arith.muli %arg0, %c256_i32 : i32
    %257 = vector.broadcast %256 : i32 to vector<256x128xi32>
    %258 = arith.addi %257, %254 : vector<256x128xi32>
    %c128_i32 = arith.constant 128 : i32
    %259 = vector.broadcast %c128_i32 : i32 to vector<256x128xi32>
    %260 = arith.muli %258, %259 : vector<256x128xi32>
    %261 = arith.addi %260, %255 : vector<256x128xi32>
    %c256_i32_23 = arith.constant 256 : i32
    %262 = vector.broadcast %c256_i32_23 : i32 to vector<256x128xi32>
    %263 = arith.cmpi slt, %261, %262 : vector<256x128xi32>
    %264 = arith.andi %166, %253 : vector<256x128xi1>
    %265 = arith.andi %264, %242 : vector<256x128xi1>
    %266 = arith.andi %265, %263 : vector<256x128xi1>
    %267 = arith.fptosi %168 : vector<256x128xf32> to vector<256x128xi32>
    %268 = arith.fptosi %170 : vector<256x128xf32> to vector<256x128xi32>
    %269 = arith.sitofp %227 : vector<256x128xi32> to vector<256x128xf32>
    %cst_24 = arith.constant 3.000000e-01 : f32
    %270 = vector.broadcast %cst_24 : f32 to vector<256x128xf32>
    %271 = arith.divf %269, %270 : vector<256x128xf32>
    %272 = arith.fptosi %271 : vector<256x128xf32> to vector<256x128xi32>
    %273 = arith.sitofp %228 : vector<256x128xi32> to vector<256x128xf32>
    %cst_25 = arith.constant 3.000000e-01 : f32
    %274 = vector.broadcast %cst_25 : f32 to vector<256x128xf32>
    %275 = arith.divf %273, %274 : vector<256x128xf32>
    %276 = arith.fptosi %275 : vector<256x128xf32> to vector<256x128xi32>
    %c0_i32 = arith.constant 0 : i32
    %277 = vector.broadcast %c0_i32 : i32 to vector<256x128xi32>
    %278 = arith.cmpi slt, %272, %277 : vector<256x128xi32>
    %c180_i32 = arith.constant 180 : i32
    %c0_i32_26 = arith.constant 0 : i32
    %279 = vector.broadcast %c180_i32 : i32 to vector<256x128xi32>
    %280 = vector.broadcast %c0_i32_26 : i32 to vector<256x128xi32>
    %281 = arith.select %278, %279, %280 : vector<256x128xi1>, vector<256x128xi32>
    %282 = arith.addi %272, %281 : vector<256x128xi32>
    %c0_i32_27 = arith.constant 0 : i32
    %283 = vector.broadcast %c0_i32_27 : i32 to vector<256x128xi32>
    %284 = arith.cmpi slt, %276, %283 : vector<256x128xi32>
    %c180_i32_28 = arith.constant 180 : i32
    %c0_i32_29 = arith.constant 0 : i32
    %285 = vector.broadcast %c180_i32_28 : i32 to vector<256x128xi32>
    %286 = vector.broadcast %c0_i32_29 : i32 to vector<256x128xi32>
    %287 = arith.select %284, %285, %286 : vector<256x128xi1>, vector<256x128xi32>
    %288 = arith.addi %276, %287 : vector<256x128xi32>
    %c180_i32_30 = arith.constant 180 : i32
    %289 = vector.broadcast %c180_i32_30 : i32 to vector<256x128xi32>
    %290 = arith.muli %282, %289 : vector<256x128xi32>
    %291 = arith.addi %290, %288 : vector<256x128xi32>
    %c-1_i32 = arith.constant -1 : i32
    %292 = vector.broadcast %c-1_i32 : i32 to vector<256x128xi32>
    %293 = arith.select %266, %291, %292 : vector<256x128xi1>, vector<256x128xi32>
    %c16_i32 = arith.constant 16 : i32
    %294 = vector.broadcast %c16_i32 : i32 to vector<256x128xi32>
    %295 = arith.muli %267, %294 : vector<256x128xi32>
    %296 = arith.addi %295, %268 : vector<256x128xi32>
    %c0_i32_31 = arith.constant 0 : i32
    %297 = vector.broadcast %c0_i32_31 : i32 to vector<256x128xi32>
    %298 = arith.select %266, %296, %297 : vector<256x128xi1>, vector<256x128xi32>
    %299 = vector.shape_cast %293 : vector<256x128xi32> to vector<1x256x128xi32>
    %c0_32 = arith.constant 0 : index
    %c0_33 = arith.constant 0 : index
    %c0_34 = arith.constant 0 : index
    %300 = vector.load %arg4[%c0_32, %c0_33, %c0_34] : memref<1x256x128xi32, #tpu.memory_space<vmem>>, vector<1x256x128xi32>
    tpu.vector_store %arg4[%c0_32, %c0_33, %c0_34], %299 {strides = array<i32>} : memref<1x256x128xi32, #tpu.memory_space<vmem>>, vector<1x256x128xi32>,
    %301 = vector.shape_cast %298 : vector<256x128xi32> to vector<1x256x128xi32>
    %c0_35 = arith.constant 0 : index
    %c0_36 = arith.constant 0 : index
    %c0_37 = arith.constant 0 : index
    %302 = vector.load %arg5[%c0_35, %c0_36, %c0_37] : memref<1x256x128xi32, #tpu.memory_space<vmem>>, vector<1x256x128xi32>
    tpu.vector_store %arg5[%c0_35, %c0_36, %c0_37], %301 {strides = array<i32>} : memref<1x256x128xi32, #tpu.memory_space<vmem>>, vector<1x256x128xi32>,
    return
  }
  func.func @transform_0(%arg0: i32, %arg1: i32) -> (i32, i32) {
    %c0_i32 = arith.constant 0 : i32
    %c0_i32_0 = arith.constant 0 : i32
    %c0_i32_1 = arith.constant 0 : i32
    return %c0_i32, %c0_i32_0 : i32, i32
  }
  func.func @transform_1(%arg0: i32, %arg1: i32) -> (i32, i32, i32) {
    %c0_i32 = arith.constant 0 : i32
    %c0_i32_0 = arith.constant 0 : i32
    %c0_i32_1 = arith.constant 0 : i32
    return %c0_i32, %arg0, %c0_i32_0 : i32, i32, i32
  }
  func.func @transform_2(%arg0: i32, %arg1: i32) -> (i32, i32, i32) {
    %c0_i32 = arith.constant 0 : i32
    %c0_i32_0 = arith.constant 0 : i32
    return %arg1, %arg0, %c0_i32 : i32, i32, i32
  }
  func.func @transform_3(%arg0: i32, %arg1: i32) -> (i32, i32, i32) {
    %c0_i32 = arith.constant 0 : i32
    %c0_i32_0 = arith.constant 0 : i32
    return %arg1, %arg0, %c0_i32 : i32, i32, i32
  }
}

</mosaic_0001>

<llo_original>
// kernel: tpu_custom_call.1
$region0: #{tpu_custom_call.1}
  #allocation0 [shape = 'u32[]', space=smem, size = 0x4, offset = 0x4, fixed_abs, tag = 'smem constant byte address 0x4 - core index']
  #allocation1 [shape = 'u32[144,128]{1,0:T(1,128)}', space=vmem, size = 0x12000, scoped, tag = 'internal scratch']
  %s0 = inlined_call_operand.hbm [shape: f32[2,48], index: 0, kind: input, shape index: {}]
  %s1 = inlined_call_operand.hbm [shape: f32[3,256,128], index: 1, kind: input, shape index: {}]
  %s2 = inlined_call_operand.hbm [shape: s32[2,256,128], index: 2, kind: output, shape index: {0}]
  %s3 = inlined_call_operand.hbm [shape: s32[2,256,128], index: 3, kind: output, shape index: {1}]
  %4 = xla_tuple %s2, %s3
  %s5 = sld [smem:[#allocation0]]
  $region57: #{tpu_custom_call.1} parent=0
    _
  %s7 = ssub.s32 1, %s5
  %s8 = scalar_select 0, %s7, %s5
  $region1: #{tpu_custom_call.1} parent=0
    #allocation2 [shape = 'u8[1024]{0}', space=smem, size = 0x400, scoped, tag = 'input window, operand 0, single buffered']
    #allocation3 [shape = 's32[2]{0}', space=sflag, size = 0x8, scoped, tag = 'scoped memory for tpu_custom_call.1']
    #allocation4 [shape = 's32[2]{0}', space=sflag, size = 0x8, scoped, tag = 'scoped memory for tpu_custom_call.1']
    #allocation5 [shape = 's32[2]{0}', space=sflag, size = 0x8, scoped, tag = 'scoped memory for tpu_custom_call.1']
    #allocation6 [shape = 'u8[393216]{0}', space=vmem, size = 0x60000, scoped, tag = 'input window, operand 1, single buffered']
    #allocation7 [shape = 'u8[262144]{0}', space=vmem, size = 0x40000, scoped, tag = 'output window, operand 0']
    #allocation8 [shape = 'u8[262144]{0}', space=vmem, size = 0x40000, scoped, tag = 'output window, operand 1']
    #allocation9 [shape = 's32[2]{0}', space=sflag, size = 0x8, scoped, tag = 'scoped memory for tpu_custom_call.1']
    %9 = vsyncpa [#allocation5], 0
    %10 = vsyncpa [#allocation3], 0
    %11 = vsyncpa [#allocation4], 0
    %s12 = scalar_lea.sflag [#allocation4], 1
    %13 = vsyncpa %s12, 0
    %14 = vsyncpa [#allocation9], 0
    %s15 = scalar_lea.sflag [#allocation9], 1
    %16 = vsyncpa %s15, 0
    loop: start=0, step=1, limit=4
    $region2: #{tpu_custom_call.1} parent=1 // loop_pre_header
      _
    $region3: #{tpu_custom_call.1} parent=1 // loop_header
      %s18 = sphi 0, %s22
      %p19 = scmp.ge.s32.totalorder %s18, 4
      %s25 = sphi 0, %s37
      %s26 = sphi 0, %s33
      %s27 = sphi 0, %s25
      %s28 = sphi 0, %s26
      %s29 = sphi 0, %s27
      %s30 = sphi 0, %s28
      %s38 = sphi 0, %s38
      %s40 = sphi 0, %s38
      %s41 = sphi 0, %s40
      %s55 = sphi 0, %s41
      %s61 = sphi 0, %s63
      %s64 = sphi 0, %s61
      %s65 = sphi 0, %s64
      %s81 = sphi 0, %s65
      %s89 = sphi 0, %s91
      %s92 = sphi 0, %s89
      %s93 = sphi 0, %s92
      %s109 = sphi 0, %s93
      %s117 = sphi 0, %s119
      %s120 = sphi 0, %s117
      %s121 = sphi 0, %s120
      %s137 = sphi 0, %s121
    $region4: #{tpu_custom_call.1} parent=1 // loop_header_branch
      %21 = sbr.rel (%p19) target = $region8
    $region5: #{tpu_custom_call.1} parent=1 // loop_body
      %s23 = ssub.s32 %s18, 1
      %s24 = ssub.s32 %s18, 2
      %s31 = sadd.s32 1, %s26
      %p32 = scmp.ge.s32.totalorder %s31, 2
      %s33 = scalar_select %p32, 0, %s31
      %s34 = sadd.s32 1, %s25
      %s35 = scalar_select %p32, %s34, %s25
      %p36 = scmp.ge.s32.totalorder %s35, 1
      %s37 = scalar_select %p36, 0, %s35
      %s39 = sadd.s32 %s38, 1
      %p42 = scmp.eq.s32.totalorder %s18, 1
      %p43 = scmp.ne.s32.totalorder %s38, %s40
      %p44 = scmp.eq.s32.totalorder %s18, 0
      %p45 = por %p43, %p44
      %p46 = scmp.ne.s32.totalorder %s38, %s40
      %p47 = scmp.eq.s32.totalorder %s23, 1
      %p48 = por %p46, %p47
      %p49 = scmp.ne.s32.totalorder %s40, %s41
      %p50 = scmp.eq.s32.totalorder %s23, 0
      %p51 = por %p49, %p50
      %p52 = scmp.ne.s32.totalorder %s40, %s41
      %p53 = scmp.eq.s32.totalorder %s24, 1
      %p54 = por %p52, %p53
      %p56 = scmp.ne.s32.totalorder %s41, %s55
      %p57 = scmp.eq.s32.totalorder %s24, 0
      %p58 = por %p56, %p57
      %s59 = ssub.s32 %s25, %s37
      %p60 = scmp.eq.s32.totalorder %s59, 0
      %s62 = sadd.s32 %s61, 1
      %s63 = scalar_select %p60, %s61, %s62
      %p66 = pneg %p60
      %p67 = scmp.eq.s32.totalorder %s18, 1
      %p68 = por %p66, %p67
      %p69 = scmp.ne.s32.totalorder %s61, %s64
      %p70 = scmp.eq.s32.totalorder %s18, 0
      %p71 = por %p69, %p70
      %p72 = scmp.ne.s32.totalorder %s61, %s64
      %p73 = scmp.eq.s32.totalorder %s23, 1
      %p74 = por %p72, %p73
      %p75 = scmp.ne.s32.totalorder %s64, %s65
      %p76 = scmp.eq.s32.totalorder %s23, 0
      %p77 = por %p75, %p76
      %p78 = scmp.ne.s32.totalorder %s64, %s65
      %p79 = scmp.eq.s32.totalorder %s24, 1
      %p80 = por %p78, %p79
      %p82 = scmp.ne.s32.totalorder %s65, %s81
      %p83 = scmp.eq.s32.totalorder %s24, 0
      %p84 = por %p82, %p83
      %s85 = ssub.s32 %s26, %s33
      %s86 = ssub.s32 %s25, %s37
      %s87 = sor.u32 %s85, %s86
      %p88 = scmp.eq.s32.totalorder %s87, 0
      %s90 = sadd.s32 %s89, 1
      %s91 = scalar_select %p88, %s89, %s90
      %p94 = pneg %p88
      %p95 = scmp.eq.s32.totalorder %s18, 1
      %p96 = por %p94, %p95
      %p97 = scmp.ne.s32.totalorder %s89, %s92
      %p98 = scmp.eq.s32.totalorder %s18, 0
      %p99 = por %p97, %p98
      %p100 = scmp.ne.s32.totalorder %s89, %s92
      %p101 = scmp.eq.s32.totalorder %s23, 1
      %p102 = por %p100, %p101
      %p103 = scmp.ne.s32.totalorder %s92, %s93
      %p104 = scmp.eq.s32.totalorder %s23, 0
      %p105 = por %p103, %p104
      %p106 = scmp.ne.s32.totalorder %s92, %s93
      %p107 = scmp.eq.s32.totalorder %s24, 1
      %p108 = por %p106, %p107
      %p110 = scmp.ne.s32.totalorder %s93, %s109
      %p111 = scmp.eq.s32.totalorder %s24, 0
      %p112 = por %p110, %p111
      %s113 = ssub.s32 %s26, %s33
      %s114 = ssub.s32 %s25, %s37
      %s115 = sor.u32 %s113, %s114
      %p116 = scmp.eq.s32.totalorder %s115, 0
      %s118 = sadd.s32 %s117, 1
      %s119 = scalar_select %p116, %s117, %s118
      %p122 = pneg %p116
      %p123 = scmp.eq.s32.totalorder %s18, 1
      %p124 = por %p122, %p123
      %p125 = scmp.ne.s32.totalorder %s117, %s120
      %p126 = scmp.eq.s32.totalorder %s18, 0
      %p127 = por %p125, %p126
      %p128 = scmp.ne.s32.totalorder %s117, %s120
      %p129 = scmp.eq.s32.totalorder %s23, 1
      %p130 = por %p128, %p129
      %p131 = scmp.ne.s32.totalorder %s120, %s121
      %p132 = scmp.eq.s32.totalorder %s23, 0
      %p133 = por %p131, %p132
      %p134 = scmp.ne.s32.totalorder %s120, %s121
      %p135 = scmp.eq.s32.totalorder %s24, 1
      %p136 = por %p134, %p135
      %p138 = scmp.ne.s32.totalorder %s121, %s137
      %p139 = scmp.eq.s32.totalorder %s24, 0
      %p140 = por %p138, %p139
      %p141 = scmp.le.s32.totalorder 1, %s18
      %p142 = scmp.lt.s32.totalorder %s18, 3
      %p143 = pnand %p141, %p142
      %p144 = pneg %p143
      // Predicated region
      $region9: #{tpu_custom_call.1} parent=5 // pred_check
        _
      $region10: #{tpu_custom_call.1} parent=5 // pred_check_branch
        %146 = sbr.rel (%p143) target = $region12
      $region11: #{tpu_custom_call.1} parent=5 // pred_region
        %s147 = ssub.s32 %s18, 1
        // Predicated region
        $region13: #{tpu_custom_call.1} parent=11 // pred_check
          %p148 = pneg %p51
        $region14: #{tpu_custom_call.1} parent=11 // pred_check_branch
          %150 = sbr.rel (%p148) target = $region16
        $region15: #{tpu_custom_call.1} parent=11 // pred_region
          %s152 = ssub.s32 32, 32
          %153 = vsyncadd [#allocation5], %s152
          %156 = dma.hbm_to_smem %s0, 32, [#allocation2], [#allocation5]
        $region16: #{tpu_custom_call.1} parent=11 // pred_fallthru
          _
        // Predicated region
        $region17: #{tpu_custom_call.1} parent=11 // pred_check
          %p157 = pneg %p77
        $region18: #{tpu_custom_call.1} parent=11 // pred_check_branch
          %159 = sbr.rel (%p157) target = $region20
        $region19: #{tpu_custom_call.1} parent=11 // pred_region
          %s160 = smul.u32 32, %s27
          %s162 = ssub.s32 12288, 12288
          %163 = vsyncadd [#allocation3], %s162
          %s164 = smul.addr %s160, 128
          %s165 = scalar_lea.hbm %s1, %s164
          %s166 = sshll.u32 [#allocation6], 4
          %s167 = int_to_ptr.vmem [resolvable:$true] %s166
          %172 = dma.hbm_to_vmem [thread:$0]  %s165, 12288, %s167, [#allocation3], 128, 128, 8
        $region20: #{tpu_custom_call.1} parent=11 // pred_fallthru
          _
      $region12: #{tpu_custom_call.1} parent=5 // pred_fallthru
        _
      %p173 = scmp.lt.s32.totalorder %s18, 2
      // Predicated region
      $region21: #{tpu_custom_call.1} parent=5 // pred_check
        %p174 = pneg %p173
      $region22: #{tpu_custom_call.1} parent=5 // pred_check_branch
        %176 = sbr.rel (%p174) target = $region24
      $region23: #{tpu_custom_call.1} parent=5 // pred_region
        _
      $region24: #{tpu_custom_call.1} parent=5 // pred_fallthru
        _
      %p177 = scmp.le.s32.totalorder 1, %s18
      %p178 = scmp.lt.s32.totalorder %s18, 3
      %p179 = pnand %p177, %p178
      %p180 = pneg %p179
      // Predicated region
      $region25: #{tpu_custom_call.1} parent=5 // pred_check
        _
      $region26: #{tpu_custom_call.1} parent=5 // pred_check_branch
        %182 = sbr.rel (%p179) target = $region28
      $region27: #{tpu_custom_call.1} parent=5 // pred_region
        %s183 = ssub.s32 %s18, 1
        // Predicated region
        $region29: #{tpu_custom_call.1} parent=27 // pred_check
          %p184 = pneg %p51
        $region30: #{tpu_custom_call.1} parent=27 // pred_check_branch
          %186 = sbr.rel (%p184) target = $region32
        $region31: #{tpu_custom_call.1} parent=27 // pred_region
          %187 = dma.done [#allocation5], 32
        $region32: #{tpu_custom_call.1} parent=27 // pred_fallthru
          _
        // Predicated region
        $region33: #{tpu_custom_call.1} parent=27 // pred_check
          %p188 = pneg %p77
        $region34: #{tpu_custom_call.1} parent=27 // pred_check_branch
          %190 = sbr.rel (%p188) target = $region36
        $region35: #{tpu_custom_call.1} parent=27 // pred_region
          %191 = dma.done [#allocation3], 12288
        $region36: #{tpu_custom_call.1} parent=27 // pred_fallthru
          _
        %192 = sfence
        %p193 = pneg %p51
        %p194 = pneg %p48
        %p195 = pneg %p77
        %p196 = pneg %p74
        %p197 = pneg %p105
        %p198 = pneg %p102
        %s199 = sand.u32 %s92, 1
        %s200 = scalar_lea.sflag [#allocation4], %s199
        %s201 = sand.u32 %s92, 1
        %s202 = smul.addr %s201, 256
        %s203 = scalar_lea.vmem [#allocation7], %s202
        %p204 = pneg %p133
        %p205 = pneg %p130
        %s206 = sand.u32 %s120, 1
        %s207 = scalar_lea.sflag [#allocation9], %s206
        %s208 = sand.u32 %s120, 1
        %s209 = smul.addr %s208, 256
        %s210 = scalar_lea.vmem [#allocation8], %s209
        %s211 = smul.u32 32, %s27
        %s212 = smul.u32 32, %s27
        %s213 = smul.u32 32, %s27
        %v214 = vld [vmem:[#allocation6] sm:$0xff]
        %v215 = vld [vmem:[#allocation6 + $0x8] sm:$0xff]
        %v216 = vld [vmem:[#allocation6 + $0x10] sm:$0xff]
        %v217 = vld [vmem:[#allocation6 + $0x18] sm:$0xff]
        %v218 = vld [vmem:[#allocation6 + $0x20] sm:$0xff]
        %v219 = vld [vmem:[#allocation6 + $0x28] sm:$0xff]
        %v220 = vld [vmem:[#allocation6 + $0x30] sm:$0xff]
        %v221 = vld [vmem:[#allocation6 + $0x38] sm:$0xff]
        %v222 = vld [vmem:[#allocation6 + $0x40] sm:$0xff]
        %v223 = vld [vmem:[#allocation6 + $0x48] sm:$0xff]
        %v224 = vld [vmem:[#allocation6 + $0x50] sm:$0xff]
        %v225 = vld [vmem:[#allocation6 + $0x58] sm:$0xff]
        %v226 = vld [vmem:[#allocation6 + $0x60] sm:$0xff]
        %v227 = vld [vmem:[#allocation6 + $0x68] sm:$0xff]
        %v228 = vld [vmem:[#allocation6 + $0x70] sm:$0xff]
        %v229 = vld [vmem:[#allocation6 + $0x78] sm:$0xff]
        %v230 = vld [vmem:[#allocation6 + $0x80] sm:$0xff]
        %v231 = vld [vmem:[#allocation6 + $0x88] sm:$0xff]
        %v232 = vld [vmem:[#allocation6 + $0x90] sm:$0xff]
        %v233 = vld [vmem:[#allocation6 + $0x98] sm:$0xff]
        %v234 = vld [vmem:[#allocation6 + $0xa0] sm:$0xff]
        %v235 = vld [vmem:[#allocation6 + $0xa8] sm:$0xff]
        %v236 = vld [vmem:[#allocation6 + $0xb0] sm:$0xff]
        %v237 = vld [vmem:[#allocation6 + $0xb8] sm:$0xff]
        %v238 = vld [vmem:[#allocation6 + $0xc0] sm:$0xff]
        %v239 = vld [vmem:[#allocation6 + $0xc8] sm:$0xff]
        %v240 = vld [vmem:[#allocation6 + $0xd0] sm:$0xff]
        %v241 = vld [vmem:[#allocation6 + $0xd8] sm:$0xff]
        %v242 = vld [vmem:[#allocation6 + $0xe0] sm:$0xff]
        %v243 = vld [vmem:[#allocation6 + $0xe8] sm:$0xff]
        %v244 = vld [vmem:[#allocation6 + $0xf0] sm:$0xff]
        %v245 = vld [vmem:[#allocation6 + $0xf8] sm:$0xff]
        %s246 = scalar_lea.vmem [#allocation6], 256
        %v247 = vld [vmem:[%s246] sm:$0xff]
        %v248 = vld [vmem:[%s246 + $0x8] sm:$0xff]
        %v249 = vld [vmem:[%s246 + $0x10] sm:$0xff]
        %v250 = vld [vmem:[%s246 + $0x18] sm:$0xff]
        %v251 = vld [vmem:[%s246 + $0x20] sm:$0xff]
        %v252 = vld [vmem:[%s246 + $0x28] sm:$0xff]
        %v253 = vld [vmem:[%s246 + $0x30] sm:$0xff]
        %v254 = vld [vmem:[%s246 + $0x38] sm:$0xff]
        %v255 = vld [vmem:[%s246 + $0x40] sm:$0xff]
        %v256 = vld [vmem:[%s246 + $0x48] sm:$0xff]
        %v257 = vld [vmem:[%s246 + $0x50] sm:$0xff]
        %v258 = vld [vmem:[%s246 + $0x58] sm:$0xff]
        %v259 = vld [vmem:[%s246 + $0x60] sm:$0xff]
        %v260 = vld [vmem:[%s246 + $0x68] sm:$0xff]
        %v261 = vld [vmem:[%s246 + $0x70] sm:$0xff]
        %v262 = vld [vmem:[%s246 + $0x78] sm:$0xff]
        %v263 = vld [vmem:[%s246 + $0x80] sm:$0xff]
        %v264 = vld [vmem:[%s246 + $0x88] sm:$0xff]
        %v265 = vld [vmem:[%s246 + $0x90] sm:$0xff]
        %v266 = vld [vmem:[%s246 + $0x98] sm:$0xff]
        %v267 = vld [vmem:[%s246 + $0xa0] sm:$0xff]
        %v268 = vld [vmem:[%s246 + $0xa8] sm:$0xff]
        %v269 = vld [vmem:[%s246 + $0xb0] sm:$0xff]
        %v270 = vld [vmem:[%s246 + $0xb8] sm:$0xff]
        %v271 = vld [vmem:[%s246 + $0xc0] sm:$0xff]
        %v272 = vld [vmem:[%s246 + $0xc8] sm:$0xff]
        %v273 = vld [vmem:[%s246 + $0xd0] sm:$0xff]
        %v274 = vld [vmem:[%s246 + $0xd8] sm:$0xff]
        %v275 = vld [vmem:[%s246 + $0xe0] sm:$0xff]
        %v276 = vld [vmem:[%s246 + $0xe8] sm:$0xff]
        %v277 = vld [vmem:[%s246 + $0xf0] sm:$0xff]
        %v278 = vld [vmem:[%s246 + $0xf8] sm:$0xff]
        %s279 = scalar_lea.vmem [#allocation6], 512
        %v280 = vld [vmem:[%s279] sm:$0xff]
        %v281 = vld [vmem:[%s279 + $0x8] sm:$0xff]
        %v282 = vld [vmem:[%s279 + $0x10] sm:$0xff]
        %v283 = vld [vmem:[%s279 + $0x18] sm:$0xff]
        %v284 = vld [vmem:[%s279 + $0x20] sm:$0xff]
        %v285 = vld [vmem:[%s279 + $0x28] sm:$0xff]
        %v286 = vld [vmem:[%s279 + $0x30] sm:$0xff]
        %v287 = vld [vmem:[%s279 + $0x38] sm:$0xff]
        %v288 = vld [vmem:[%s279 + $0x40] sm:$0xff]
        %v289 = vld [vmem:[%s279 + $0x48] sm:$0xff]
        %v290 = vld [vmem:[%s279 + $0x50] sm:$0xff]
        %v291 = vld [vmem:[%s279 + $0x58] sm:$0xff]
        %v292 = vld [vmem:[%s279 + $0x60] sm:$0xff]
        %v293 = vld [vmem:[%s279 + $0x68] sm:$0xff]
        %v294 = vld [vmem:[%s279 + $0x70] sm:$0xff]
        %v295 = vld [vmem:[%s279 + $0x78] sm:$0xff]
        %v296 = vld [vmem:[%s279 + $0x80] sm:$0xff]
        %v297 = vld [vmem:[%s279 + $0x88] sm:$0xff]
        %v298 = vld [vmem:[%s279 + $0x90] sm:$0xff]
        %v299 = vld [vmem:[%s279 + $0x98] sm:$0xff]
        %v300 = vld [vmem:[%s279 + $0xa0] sm:$0xff]
        %v301 = vld [vmem:[%s279 + $0xa8] sm:$0xff]
        %v302 = vld [vmem:[%s279 + $0xb0] sm:$0xff]
        %v303 = vld [vmem:[%s279 + $0xb8] sm:$0xff]
        %v304 = vld [vmem:[%s279 + $0xc0] sm:$0xff]
        %v305 = vld [vmem:[%s279 + $0xc8] sm:$0xff]
        %v306 = vld [vmem:[%s279 + $0xd0] sm:$0xff]
        %v307 = vld [vmem:[%s279 + $0xd8] sm:$0xff]
        %v308 = vld [vmem:[%s279 + $0xe0] sm:$0xff]
        %v309 = vld [vmem:[%s279 + $0xe8] sm:$0xff]
        %v310 = vld [vmem:[%s279 + $0xf0] sm:$0xff]
        %v311 = vld [vmem:[%s279 + $0xf8] sm:$0xff]
        %s312 = smul.u32 %s28, 128
        %s313 = sadd.s32 %s312, 9
        %s314 = sld [smem:[#allocation2 + %s313]]
        %v315 = vstv %s314
        %v316 = vsub.f32 %v214, %v315
        %v317 = vsub.f32 %v215, %v315
        %v318 = vsub.f32 %v216, %v315
        %v319 = vsub.f32 %v217, %v315
        %v320 = vsub.f32 %v218, %v315
        %v321 = vsub.f32 %v219, %v315
        %v322 = vsub.f32 %v220, %v315
        %v323 = vsub.f32 %v221, %v315
        %v324 = vsub.f32 %v222, %v315
        %v325 = vsub.f32 %v223, %v315
        %v326 = vsub.f32 %v224, %v315
        %v327 = vsub.f32 %v225, %v315
        %v328 = vsub.f32 %v226, %v315
        %v329 = vsub.f32 %v227, %v315
        %v330 = vsub.f32 %v228, %v315
        %v331 = vsub.f32 %v229, %v315
        %v332 = vsub.f32 %v230, %v315
        %v333 = vsub.f32 %v231, %v315
        %v334 = vsub.f32 %v232, %v315
        %v335 = vsub.f32 %v233, %v315
        %v336 = vsub.f32 %v234, %v315
        %v337 = vsub.f32 %v235, %v315
        %v338 = vsub.f32 %v236, %v315
        %v339 = vsub.f32 %v237, %v315
        %v340 = vsub.f32 %v238, %v315
        %v341 = vsub.f32 %v239, %v315
        %v342 = vsub.f32 %v240, %v315
        %v343 = vsub.f32 %v241, %v315
        %v344 = vsub.f32 %v242, %v315
        %v345 = vsub.f32 %v243, %v315
        %v346 = vsub.f32 %v244, %v315
        %v347 = vsub.f32 %v245, %v315
        %s348 = sadd.s32 %s312, 10
        %s349 = sld [smem:[#allocation2 + %s348]]
        %v350 = vstv %s349
        %v351 = vsub.f32 %v247, %v350
        %v352 = vsub.f32 %v248, %v350
        %v353 = vsub.f32 %v249, %v350
        %v354 = vsub.f32 %v250, %v350
        %v355 = vsub.f32 %v251, %v350
        %v356 = vsub.f32 %v252, %v350
        %v357 = vsub.f32 %v253, %v350
        %v358 = vsub.f32 %v254, %v350
        %v359 = vsub.f32 %v255, %v350
        %v360 = vsub.f32 %v256, %v350
        %v361 = vsub.f32 %v257, %v350
        %v362 = vsub.f32 %v258, %v350
        %v363 = vsub.f32 %v259, %v350
        %v364 = vsub.f32 %v260, %v350
        %v365 = vsub.f32 %v261, %v350
        %v366 = vsub.f32 %v262, %v350
        %v367 = vsub.f32 %v263, %v350
        %v368 = vsub.f32 %v264, %v350
        %v369 = vsub.f32 %v265, %v350
        %v370 = vsub.f32 %v266, %v350
        %v371 = vsub.f32 %v267, %v350
        %v372 = vsub.f32 %v268, %v350
        %v373 = vsub.f32 %v269, %v350
        %v374 = vsub.f32 %v270, %v350
        %v375 = vsub.f32 %v271, %v350
        %v376 = vsub.f32 %v272, %v350
        %v377 = vsub.f32 %v273, %v350
        %v378 = vsub.f32 %v274, %v350
        %v379 = vsub.f32 %v275, %v350
        %v380 = vsub.f32 %v276, %v350
        %v381 = vsub.f32 %v277, %v350
        %v382 = vsub.f32 %v278, %v350
        %s383 = sadd.s32 %s312, 11
        %s384 = sld [smem:[#allocation2 + %s383]]
        %v385 = vstv %s384
        %v386 = vsub.f32 %v280, %v385
        %v387 = vsub.f32 %v281, %v385
        %v388 = vsub.f32 %v282, %v385
        %v389 = vsub.f32 %v283, %v385
        %v390 = vsub.f32 %v284, %v385
        %v391 = vsub.f32 %v285, %v385
        %v392 = vsub.f32 %v286, %v385
        %v393 = vsub.f32 %v287, %v385
        %v394 = vsub.f32 %v288, %v385
        %v395 = vsub.f32 %v289, %v385
        %v396 = vsub.f32 %v290, %v385
        %v397 = vsub.f32 %v291, %v385
        %v398 = vsub.f32 %v292, %v385
        %v399 = vsub.f32 %v293, %v385
        %v400 = vsub.f32 %v294, %v385
        %v401 = vsub.f32 %v295, %v385
        %v402 = vsub.f32 %v296, %v385
        %v403 = vsub.f32 %v297, %v385
        %v404 = vsub.f32 %v298, %v385
        %v405 = vsub.f32 %v299, %v385
        %v406 = vsub.f32 %v300, %v385
        %v407 = vsub.f32 %v301, %v385
        %v408 = vsub.f32 %v302, %v385
        %v409 = vsub.f32 %v303, %v385
        %v410 = vsub.f32 %v304, %v385
        %v411 = vsub.f32 %v305, %v385
        %v412 = vsub.f32 %v306, %v385
        %v413 = vsub.f32 %v307, %v385
        %v414 = vsub.f32 %v308, %v385
        %v415 = vsub.f32 %v309, %v385
        %v416 = vsub.f32 %v310, %v385
        %v417 = vsub.f32 %v311, %v385
        %s418 = sld [smem:[#allocation2 + %s312]]
        %v419 = vstv %s418
        %v420 = vmul.f32 %v419, %v316
        %v421 = vmul.f32 %v419, %v317
        %v422 = vmul.f32 %v419, %v318
        %v423 = vmul.f32 %v419, %v319
        %v424 = vmul.f32 %v419, %v320
        %v425 = vmul.f32 %v419, %v321
        %v426 = vmul.f32 %v419, %v322
        %v427 = vmul.f32 %v419, %v323
        %v428 = vmul.f32 %v419, %v324
        %v429 = vmul.f32 %v419, %v325
        %v430 = vmul.f32 %v419, %v326
        %v431 = vmul.f32 %v419, %v327
        %v432 = vmul.f32 %v419, %v328
        %v433 = vmul.f32 %v419, %v329
        %v434 = vmul.f32 %v419, %v330
        %v435 = vmul.f32 %v419, %v331
        %v436 = vmul.f32 %v419, %v332
        %v437 = vmul.f32 %v419, %v333
        %v438 = vmul.f32 %v419, %v334
        %v439 = vmul.f32 %v419, %v335
        %v440 = vmul.f32 %v419, %v336
        %v441 = vmul.f32 %v419, %v337
        %v442 = vmul.f32 %v419, %v338
        %v443 = vmul.f32 %v419, %v339
        %v444 = vmul.f32 %v419, %v340
        %v445 = vmul.f32 %v419, %v341
        %v446 = vmul.f32 %v419, %v342
        %v447 = vmul.f32 %v419, %v343
        %v448 = vmul.f32 %v419, %v344
        %v449 = vmul.f32 %v419, %v345
        %v450 = vmul.f32 %v419, %v346
        %v451 = vmul.f32 %v419, %v347
        %s452 = sadd.s32 %s312, 1
        %s453 = sld [smem:[#allocation2 + %s452]]
        %v454 = vstv %s453
        %v455 = vmul.f32 %v454, %v351
        %v456 = vmul.f32 %v454, %v352
        %v457 = vmul.f32 %v454, %v353
        %v458 = vmul.f32 %v454, %v354
        %v459 = vmul.f32 %v454, %v355
        %v460 = vmul.f32 %v454, %v356
        %v461 = vmul.f32 %v454, %v357
        %v462 = vmul.f32 %v454, %v358
        %v463 = vmul.f32 %v454, %v359
        %v464 = vmul.f32 %v454, %v360
        %v465 = vmul.f32 %v454, %v361
        %v466 = vmul.f32 %v454, %v362
        %v467 = vmul.f32 %v454, %v363
        %v468 = vmul.f32 %v454, %v364
        %v469 = vmul.f32 %v454, %v365
        %v470 = vmul.f32 %v454, %v366
        %v471 = vmul.f32 %v454, %v367
        %v472 = vmul.f32 %v454, %v368
        %v473 = vmul.f32 %v454, %v369
        %v474 = vmul.f32 %v454, %v370
        %v475 = vmul.f32 %v454, %v371
        %v476 = vmul.f32 %v454, %v372
        %v477 = vmul.f32 %v454, %v373
        %v478 = vmul.f32 %v454, %v374
        %v479 = vmul.f32 %v454, %v375
        %v480 = vmul.f32 %v454, %v376
        %v481 = vmul.f32 %v454, %v377
        %v482 = vmul.f32 %v454, %v378
        %v483 = vmul.f32 %v454, %v379
        %v484 = vmul.f32 %v454, %v380
        %v485 = vmul.f32 %v454, %v381
        %v486 = vmul.f32 %v454, %v382
        %v487 = vadd.f32 %v420, %v455
        %v488 = vadd.f32 %v421, %v456
        %v489 = vadd.f32 %v422, %v457
        %v490 = vadd.f32 %v423, %v458
        %v491 = vadd.f32 %v424, %v459
        %v492 = vadd.f32 %v425, %v460
        %v493 = vadd.f32 %v426, %v461
        %v494 = vadd.f32 %v427, %v462
        %v495 = vadd.f32 %v428, %v463
        %v496 = vadd.f32 %v429, %v464
        %v497 = vadd.f32 %v430, %v465
        %v498 = vadd.f32 %v431, %v466
        %v499 = vadd.f32 %v432, %v467
        %v500 = vadd.f32 %v433, %v468
        %v501 = vadd.f32 %v434, %v469
        %v502 = vadd.f32 %v435, %v470
        %v503 = vadd.f32 %v436, %v471
        %v504 = vadd.f32 %v437, %v472
        %v505 = vadd.f32 %v438, %v473
        %v506 = vadd.f32 %v439, %v474
        %v507 = vadd.f32 %v440, %v475
        %v508 = vadd.f32 %v441, %v476
        %v509 = vadd.f32 %v442, %v477
        %v510 = vadd.f32 %v443, %v478
        %v511 = vadd.f32 %v444, %v479
        %v512 = vadd.f32 %v445, %v480
        %v513 = vadd.f32 %v446, %v481
        %v514 = vadd.f32 %v447, %v482
        %v515 = vadd.f32 %v448, %v483
        %v516 = vadd.f32 %v449, %v484
        %v517 = vadd.f32 %v450, %v485
        %v518 = vadd.f32 %v451, %v486
        %s519 = sadd.s32 %s312, 2
        %s520 = sld [smem:[#allocation2 + %s519]]
        %v521 = vstv %s520
        %v522 = vmul.f32 %v521, %v386
        %v523 = vmul.f32 %v521, %v387
        %v524 = vmul.f32 %v521, %v388
        %v525 = vmul.f32 %v521, %v389
        %v526 = vmul.f32 %v521, %v390
        %v527 = vmul.f32 %v521, %v391
        %v528 = vmul.f32 %v521, %v392
        %v529 = vmul.f32 %v521, %v393
        %v530 = vmul.f32 %v521, %v394
        %v531 = vmul.f32 %v521, %v395
        %v532 = vmul.f32 %v521, %v396
        %v533 = vmul.f32 %v521, %v397
        %v534 = vmul.f32 %v521, %v398
        %v535 = vmul.f32 %v521, %v399
        %v536 = vmul.f32 %v521, %v400
        %v537 = vmul.f32 %v521, %v401
        %v538 = vmul.f32 %v521, %v402
        %v539 = vmul.f32 %v521, %v403
        %v540 = vmul.f32 %v521, %v404
        %v541 = vmul.f32 %v521, %v405
        %v542 = vmul.f32 %v521, %v406
        %v543 = vmul.f32 %v521, %v407
        %v544 = vmul.f32 %v521, %v408
        %v545 = vmul.f32 %v521, %v409
        %v546 = vmul.f32 %v521, %v410
        %v547 = vmul.f32 %v521, %v411
        %v548 = vmul.f32 %v521, %v412
        %v549 = vmul.f32 %v521, %v413
        %v550 = vmul.f32 %v521, %v414
        %v551 = vmul.f32 %v521, %v415
        %v552 = vmul.f32 %v521, %v416
        %v553 = vmul.f32 %v521, %v417
        %v554 = vadd.f32 %v487, %v522
        %v555 = vadd.f32 %v488, %v523
        %v556 = vadd.f32 %v489, %v524
        %v557 = vadd.f32 %v490, %v525
        %v558 = vadd.f32 %v491, %v526
        %v559 = vadd.f32 %v492, %v527
        %v560 = vadd.f32 %v493, %v528
        %v561 = vadd.f32 %v494, %v529
        %v562 = vadd.f32 %v495, %v530
        %v563 = vadd.f32 %v496, %v531
        %v564 = vadd.f32 %v497, %v532
        %v565 = vadd.f32 %v498, %v533
        %v566 = vadd.f32 %v499, %v534
        %v567 = vadd.f32 %v500, %v535
        %v568 = vadd.f32 %v501, %v536
        %v569 = vadd.f32 %v502, %v537
        %v570 = vadd.f32 %v503, %v538
        %v571 = vadd.f32 %v504, %v539
        %v572 = vadd.f32 %v505, %v540
        %v573 = vadd.f32 %v506, %v541
        %v574 = vadd.f32 %v507, %v542
        %v575 = vadd.f32 %v508, %v543
        %v576 = vadd.f32 %v509, %v544
        %v577 = vadd.f32 %v510, %v545
        %v578 = vadd.f32 %v511, %v546
        %v579 = vadd.f32 %v512, %v547
        %v580 = vadd.f32 %v513, %v548
        %v581 = vadd.f32 %v514, %v549
        %v582 = vadd.f32 %v515, %v550
        %v583 = vadd.f32 %v516, %v551
        %v584 = vadd.f32 %v517, %v552
        %v585 = vadd.f32 %v518, %v553
        %s586 = sadd.s32 %s312, 3
        %s587 = sld [smem:[#allocation2 + %s586]]
        %v588 = vstv %s587
        %v589 = vmul.f32 %v588, %v316
        %v590 = vmul.f32 %v588, %v317
        %v591 = vmul.f32 %v588, %v318
        %v592 = vmul.f32 %v588, %v319
        %v593 = vmul.f32 %v588, %v320
        %v594 = vmul.f32 %v588, %v321
        %v595 = vmul.f32 %v588, %v322
        %v596 = vmul.f32 %v588, %v323
        %v597 = vmul.f32 %v588, %v324
        %v598 = vmul.f32 %v588, %v325
        %v599 = vmul.f32 %v588, %v326
        %v600 = vmul.f32 %v588, %v327
        %v601 = vmul.f32 %v588, %v328
        %v602 = vmul.f32 %v588, %v329
        %v603 = vmul.f32 %v588, %v330
        %v604 = vmul.f32 %v588, %v331
        %v605 = vmul.f32 %v588, %v332
        %v606 = vmul.f32 %v588, %v333
        %v607 = vmul.f32 %v588, %v334
        %v608 = vmul.f32 %v588, %v335
        %v609 = vmul.f32 %v588, %v336
        %v610 = vmul.f32 %v588, %v337
        %v611 = vmul.f32 %v588, %v338
        %v612 = vmul.f32 %v588, %v339
        %v613 = vmul.f32 %v588, %v340
        %v614 = vmul.f32 %v588, %v341
        %v615 = vmul.f32 %v588, %v342
        %v616 = vmul.f32 %v588, %v343
        %v617 = vmul.f32 %v588, %v344
        %v618 = vmul.f32 %v588, %v345
        %v619 = vmul.f32 %v588, %v346
        %v620 = vmul.f32 %v588, %v347
        %s621 = sadd.s32 %s312, 4
        %s622 = sld [smem:[#allocation2 + %s621]]
        %v623 = vstv %s622
        %v624 = vmul.f32 %v623, %v351
        %v625 = vmul.f32 %v623, %v352
        %v626 = vmul.f32 %v623, %v353
        %v627 = vmul.f32 %v623, %v354
        %v628 = vmul.f32 %v623, %v355
        %v629 = vmul.f32 %v623, %v356
        %v630 = vmul.f32 %v623, %v357
        %v631 = vmul.f32 %v623, %v358
        %v632 = vmul.f32 %v623, %v359
        %v633 = vmul.f32 %v623, %v360
        %v634 = vmul.f32 %v623, %v361
        %v635 = vmul.f32 %v623, %v362
        %v636 = vmul.f32 %v623, %v363
        %v637 = vmul.f32 %v623, %v364
        %v638 = vmul.f32 %v623, %v365
        %v639 = vmul.f32 %v623, %v366
        %v640 = vmul.f32 %v623, %v367
        %v641 = vmul.f32 %v623, %v368
        %v642 = vmul.f32 %v623, %v369
        %v643 = vmul.f32 %v623, %v370
        %v644 = vmul.f32 %v623, %v371
        %v645 = vmul.f32 %v623, %v372
        %v646 = vmul.f32 %v623, %v373
        %v647 = vmul.f32 %v623, %v374
        %v648 = vmul.f32 %v623, %v375
        %v649 = vmul.f32 %v623, %v376
        %v650 = vmul.f32 %v623, %v377
        %v651 = vmul.f32 %v623, %v378
        %v652 = vmul.f32 %v623, %v379
        %v653 = vmul.f32 %v623, %v380
        %v654 = vmul.f32 %v623, %v381
        %v655 = vmul.f32 %v623, %v382
        %v656 = vadd.f32 %v589, %v624
        %v657 = vadd.f32 %v590, %v625
        %v658 = vadd.f32 %v591, %v626
        %v659 = vadd.f32 %v592, %v627
        %v660 = vadd.f32 %v593, %v628
        %v661 = vadd.f32 %v594, %v629
        %v662 = vadd.f32 %v595, %v630
        %v663 = vadd.f32 %v596, %v631
        %v664 = vadd.f32 %v597, %v632
        %v665 = vadd.f32 %v598, %v633
        %v666 = vadd.f32 %v599, %v634
        %v667 = vadd.f32 %v600, %v635
        %v668 = vadd.f32 %v601, %v636
        %v669 = vadd.f32 %v602, %v637
        %v670 = vadd.f32 %v603, %v638
        %v671 = vadd.f32 %v604, %v639
        %v672 = vadd.f32 %v605, %v640
        %v673 = vadd.f32 %v606, %v641
        %v674 = vadd.f32 %v607, %v642
        %v675 = vadd.f32 %v608, %v643
        %v676 = vadd.f32 %v609, %v644
        %v677 = vadd.f32 %v610, %v645
        %v678 = vadd.f32 %v611, %v646
        %v679 = vadd.f32 %v612, %v647
        %v680 = vadd.f32 %v613, %v648
        %v681 = vadd.f32 %v614, %v649
        %v682 = vadd.f32 %v615, %v650
        %v683 = vadd.f32 %v616, %v651
        %v684 = vadd.f32 %v617, %v652
        %v685 = vadd.f32 %v618, %v653
        %v686 = vadd.f32 %v619, %v654
        %v687 = vadd.f32 %v620, %v655
        %s688 = sadd.s32 %s312, 5
        %s689 = sld [smem:[#allocation2 + %s688]]
        %v690 = vstv %s689
        %v691 = vmul.f32 %v690, %v386
        %v692 = vmul.f32 %v690, %v387
        %v693 = vmul.f32 %v690, %v388
        %v694 = vmul.f32 %v690, %v389
        %v695 = vmul.f32 %v690, %v390
        %v696 = vmul.f32 %v690, %v391
        %v697 = vmul.f32 %v690, %v392
        %v698 = vmul.f32 %v690, %v393
        %v699 = vmul.f32 %v690, %v394
        %v700 = vmul.f32 %v690, %v395
        %v701 = vmul.f32 %v690, %v396
        %v702 = vmul.f32 %v690, %v397
        %v703 = vmul.f32 %v690, %v398
        %v704 = vmul.f32 %v690, %v399
        %v705 = vmul.f32 %v690, %v400
        %v706 = vmul.f32 %v690, %v401
        %v707 = vmul.f32 %v690, %v402
        %v708 = vmul.f32 %v690, %v403
        %v709 = vmul.f32 %v690, %v404
        %v710 = vmul.f32 %v690, %v405
        %v711 = vmul.f32 %v690, %v406
        %v712 = vmul.f32 %v690, %v407
        %v713 = vmul.f32 %v690, %v408
        %v714 = vmul.f32 %v690, %v409
        %v715 = vmul.f32 %v690, %v410
        %v716 = vmul.f32 %v690, %v411
        %v717 = vmul.f32 %v690, %v412
        %v718 = vmul.f32 %v690, %v413
        %v719 = vmul.f32 %v690, %v414
        %v720 = vmul.f32 %v690, %v415
        %v721 = vmul.f32 %v690, %v416
        %v722 = vmul.f32 %v690, %v417
        %v723 = vadd.f32 %v656, %v691
        %v724 = vadd.f32 %v657, %v692
        %v725 = vadd.f32 %v658, %v693
        %v726 = vadd.f32 %v659, %v694
        %v727 = vadd.f32 %v660, %v695
        %v728 = vadd.f32 %v661, %v696
        %v729 = vadd.f32 %v662, %v697
        %v730 = vadd.f32 %v663, %v698
        %v731 = vadd.f32 %v664, %v699
        %v732 = vadd.f32 %v665, %v700
        %v733 = vadd.f32 %v666, %v701
        %v734 = vadd.f32 %v667, %v702
        %v735 = vadd.f32 %v668, %v703
        %v736 = vadd.f32 %v669, %v704
        %v737 = vadd.f32 %v670, %v705
        %v738 = vadd.f32 %v671, %v706
        %v739 = vadd.f32 %v672, %v707
        %v740 = vadd.f32 %v673, %v708
        %v741 = vadd.f32 %v674, %v709
        %v742 = vadd.f32 %v675, %v710
        %v743 = vadd.f32 %v676, %v711
        %v744 = vadd.f32 %v677, %v712
        %v745 = vadd.f32 %v678, %v713
        %v746 = vadd.f32 %v679, %v714
        %v747 = vadd.f32 %v680, %v715
        %v748 = vadd.f32 %v681, %v716
        %v749 = vadd.f32 %v682, %v717
        %v750 = vadd.f32 %v683, %v718
        %v751 = vadd.f32 %v684, %v719
        %v752 = vadd.f32 %v685, %v720
        %v753 = vadd.f32 %v686, %v721
        %v754 = vadd.f32 %v687, %v722
        %s755 = sadd.s32 %s312, 6
        %s756 = sld [smem:[#allocation2 + %s755]]
        %v757 = vstv %s756
        %v758 = vmul.f32 %v757, %v316
        %v759 = vmul.f32 %v757, %v317
        %v760 = vmul.f32 %v757, %v318
        %v761 = vmul.f32 %v757, %v319
        %v762 = vmul.f32 %v757, %v320
        %v763 = vmul.f32 %v757, %v321
        %v764 = vmul.f32 %v757, %v322
        %v765 = vmul.f32 %v757, %v323
        %v766 = vmul.f32 %v757, %v324
        %v767 = vmul.f32 %v757, %v325
        %v768 = vmul.f32 %v757, %v326
        %v769 = vmul.f32 %v757, %v327
        %v770 = vmul.f32 %v757, %v328
        %v771 = vmul.f32 %v757, %v329
        %v772 = vmul.f32 %v757, %v330
        %v773 = vmul.f32 %v757, %v331
        %v774 = vmul.f32 %v757, %v332
        %v775 = vmul.f32 %v757, %v333
        %v776 = vmul.f32 %v757, %v334
        %v777 = vmul.f32 %v757, %v335
        %v778 = vmul.f32 %v757, %v336
        %v779 = vmul.f32 %v757, %v337
        %v780 = vmul.f32 %v757, %v338
        %v781 = vmul.f32 %v757, %v339
        %v782 = vmul.f32 %v757, %v340
        %v783 = vmul.f32 %v757, %v341
        %v784 = vmul.f32 %v757, %v342
        %v785 = vmul.f32 %v757, %v343
        %v786 = vmul.f32 %v757, %v344
        %v787 = vmul.f32 %v757, %v345
        %v788 = vmul.f32 %v757, %v346
        %v789 = vmul.f32 %v757, %v347
        %s790 = sadd.s32 %s312, 7
        %s791 = sld [smem:[#allocation2 + %s790]]
        %v792 = vstv %s791
        %v793 = vmul.f32 %v792, %v351
        %v794 = vmul.f32 %v792, %v352
        %v795 = vmul.f32 %v792, %v353
        %v796 = vmul.f32 %v792, %v354
        %v797 = vmul.f32 %v792, %v355
        %v798 = vmul.f32 %v792, %v356
        %v799 = vmul.f32 %v792, %v357
        %v800 = vmul.f32 %v792, %v358
        %v801 = vmul.f32 %v792, %v359
        %v802 = vmul.f32 %v792, %v360
        %v803 = vmul.f32 %v792, %v361
        %v804 = vmul.f32 %v792, %v362
        %v805 = vmul.f32 %v792, %v363
        %v806 = vmul.f32 %v792, %v364
        %v807 = vmul.f32 %v792, %v365
        %v808 = vmul.f32 %v792, %v366
        %v809 = vmul.f32 %v792, %v367
        %v810 = vmul.f32 %v792, %v368
        %v811 = vmul.f32 %v792, %v369
        %v812 = vmul.f32 %v792, %v370
        %v813 = vmul.f32 %v792, %v371
        %v814 = vmul.f32 %v792, %v372
        %v815 = vmul.f32 %v792, %v373
        %v816 = vmul.f32 %v792, %v374
        %v817 = vmul.f32 %v792, %v375
        %v818 = vmul.f32 %v792, %v376
        %v819 = vmul.f32 %v792, %v377
        %v820 = vmul.f32 %v792, %v378
        %v821 = vmul.f32 %v792, %v379
        %v822 = vmul.f32 %v792, %v380
        %v823 = vmul.f32 %v792, %v381
        %v824 = vmul.f32 %v792, %v382
        %v825 = vadd.f32 %v758, %v793
        %v826 = vadd.f32 %v759, %v794
        %v827 = vadd.f32 %v760, %v795
        %v828 = vadd.f32 %v761, %v796
        %v829 = vadd.f32 %v762, %v797
        %v830 = vadd.f32 %v763, %v798
        %v831 = vadd.f32 %v764, %v799
        %v832 = vadd.f32 %v765, %v800
        %v833 = vadd.f32 %v766, %v801
        %v834 = vadd.f32 %v767, %v802
        %v835 = vadd.f32 %v768, %v803
        %v836 = vadd.f32 %v769, %v804
        %v837 = vadd.f32 %v770, %v805
        %v838 = vadd.f32 %v771, %v806
        %v839 = vadd.f32 %v772, %v807
        %v840 = vadd.f32 %v773, %v808
        %v841 = vadd.f32 %v774, %v809
        %v842 = vadd.f32 %v775, %v810
        %v843 = vadd.f32 %v776, %v811
        %v844 = vadd.f32 %v777, %v812
        %v845 = vadd.f32 %v778, %v813
        %v846 = vadd.f32 %v779, %v814
        %v847 = vadd.f32 %v780, %v815
        %v848 = vadd.f32 %v781, %v816
        %v849 = vadd.f32 %v782, %v817
        %v850 = vadd.f32 %v783, %v818
        %v851 = vadd.f32 %v784, %v819
        %v852 = vadd.f32 %v785, %v820
        %v853 = vadd.f32 %v786, %v821
        %v854 = vadd.f32 %v787, %v822
        %v855 = vadd.f32 %v788, %v823
        %v856 = vadd.f32 %v789, %v824
        %s857 = sadd.s32 %s312, 8
        %s858 = sld [smem:[#allocation2 + %s857]]
        %v859 = vstv %s858
        %v860 = vmul.f32 %v859, %v386
        %v861 = vmul.f32 %v859, %v387
        %v862 = vmul.f32 %v859, %v388
        %v863 = vmul.f32 %v859, %v389
        %v864 = vmul.f32 %v859, %v390
        %v865 = vmul.f32 %v859, %v391
        %v866 = vmul.f32 %v859, %v392
        %v867 = vmul.f32 %v859, %v393
        %v868 = vmul.f32 %v859, %v394
        %v869 = vmul.f32 %v859, %v395
        %v870 = vmul.f32 %v859, %v396
        %v871 = vmul.f32 %v859, %v397
        %v872 = vmul.f32 %v859, %v398
        %v873 = vmul.f32 %v859, %v399
        %v874 = vmul.f32 %v859, %v400
        %v875 = vmul.f32 %v859, %v401
        %v876 = vmul.f32 %v859, %v402
        %v877 = vmul.f32 %v859, %v403
        %v878 = vmul.f32 %v859, %v404
        %v879 = vmul.f32 %v859, %v405
        %v880 = vmul.f32 %v859, %v406
        %v881 = vmul.f32 %v859, %v407
        %v882 = vmul.f32 %v859, %v408
        %v883 = vmul.f32 %v859, %v409
        %v884 = vmul.f32 %v859, %v410
        %v885 = vmul.f32 %v859, %v411
        %v886 = vmul.f32 %v859, %v412
        %v887 = vmul.f32 %v859, %v413
        %v888 = vmul.f32 %v859, %v414
        %v889 = vmul.f32 %v859, %v415
        %v890 = vmul.f32 %v859, %v416
        %v891 = vmul.f32 %v859, %v417
        %v892 = vadd.f32 %v825, %v860
        %v893 = vadd.f32 %v826, %v861
        %v894 = vadd.f32 %v827, %v862
        %v895 = vadd.f32 %v828, %v863
        %v896 = vadd.f32 %v829, %v864
        %v897 = vadd.f32 %v830, %v865
        %v898 = vadd.f32 %v831, %v866
        %v899 = vadd.f32 %v832, %v867
        %v900 = vadd.f32 %v833, %v868
        %v901 = vadd.f32 %v834, %v869
        %v902 = vadd.f32 %v835, %v870
        %v903 = vadd.f32 %v836, %v871
        %v904 = vadd.f32 %v837, %v872
        %v905 = vadd.f32 %v838, %v873
        %v906 = vadd.f32 %v839, %v874
        %v907 = vadd.f32 %v840, %v875
        %v908 = vadd.f32 %v841, %v876
        %v909 = vadd.f32 %v842, %v877
        %v910 = vadd.f32 %v843, %v878
        %v911 = vadd.f32 %v844, %v879
        %v912 = vadd.f32 %v845, %v880
        %v913 = vadd.f32 %v846, %v881
        %v914 = vadd.f32 %v847, %v882
        %v915 = vadd.f32 %v848, %v883
        %v916 = vadd.f32 %v849, %v884
        %v917 = vadd.f32 %v850, %v885
        %v918 = vadd.f32 %v851, %v886
        %v919 = vadd.f32 %v852, %v887
        %v920 = vadd.f32 %v853, %v888
        %v921 = vadd.f32 %v854, %v889
        %v922 = vadd.f32 %v855, %v890
        %v923 = vadd.f32 %v856, %v891
        %s924 = sadd.s32 %s312, 12
        %s925 = sld [smem:[#allocation2 + %s924]]
        %v926 = vstv %s925
        %v927 = vmul.f32 %v926, %v554
        %v928 = vmul.f32 %v926, %v555
        %v929 = vmul.f32 %v926, %v556
        %v930 = vmul.f32 %v926, %v557
        %v931 = vmul.f32 %v926, %v558
        %v932 = vmul.f32 %v926, %v559
        %v933 = vmul.f32 %v926, %v560
        %v934 = vmul.f32 %v926, %v561
        %v935 = vmul.f32 %v926, %v562
        %v936 = vmul.f32 %v926, %v563
        %v937 = vmul.f32 %v926, %v564
        %v938 = vmul.f32 %v926, %v565
        %v939 = vmul.f32 %v926, %v566
        %v940 = vmul.f32 %v926, %v567
        %v941 = vmul.f32 %v926, %v568
        %v942 = vmul.f32 %v926, %v569
        %v943 = vmul.f32 %v926, %v570
        %v944 = vmul.f32 %v926, %v571
        %v945 = vmul.f32 %v926, %v572
        %v946 = vmul.f32 %v926, %v573
        %v947 = vmul.f32 %v926, %v574
        %v948 = vmul.f32 %v926, %v575
        %v949 = vmul.f32 %v926, %v576
        %v950 = vmul.f32 %v926, %v577
        %v951 = vmul.f32 %v926, %v578
        %v952 = vmul.f32 %v926, %v579
        %v953 = vmul.f32 %v926, %v580
        %v954 = vmul.f32 %v926, %v581
        %v955 = vmul.f32 %v926, %v582
        %v956 = vmul.f32 %v926, %v583
        %v957 = vmul.f32 %v926, %v584
        %v958 = vmul.f32 %v926, %v585
        %s959 = sadd.s32 %s312, 13
        %s960 = sld [smem:[#allocation2 + %s959]]
        %v961 = vstv %s960
        %v962 = vmul.f32 %v961, %v723
        %v963 = vmul.f32 %v961, %v724
        %v964 = vmul.f32 %v961, %v725
        %v965 = vmul.f32 %v961, %v726
        %v966 = vmul.f32 %v961, %v727
        %v967 = vmul.f32 %v961, %v728
        %v968 = vmul.f32 %v961, %v729
        %v969 = vmul.f32 %v961, %v730
        %v970 = vmul.f32 %v961, %v731
        %v971 = vmul.f32 %v961, %v732
        %v972 = vmul.f32 %v961, %v733
        %v973 = vmul.f32 %v961, %v734
        %v974 = vmul.f32 %v961, %v735
        %v975 = vmul.f32 %v961, %v736
        %v976 = vmul.f32 %v961, %v737
        %v977 = vmul.f32 %v961, %v738
        %v978 = vmul.f32 %v961, %v739
        %v979 = vmul.f32 %v961, %v740
        %v980 = vmul.f32 %v961, %v741
        %v981 = vmul.f32 %v961, %v742
        %v982 = vmul.f32 %v961, %v743
        %v983 = vmul.f32 %v961, %v744
        %v984 = vmul.f32 %v961, %v745
        %v985 = vmul.f32 %v961, %v746
        %v986 = vmul.f32 %v961, %v747
        %v987 = vmul.f32 %v961, %v748
        %v988 = vmul.f32 %v961, %v749
        %v989 = vmul.f32 %v961, %v750
        %v990 = vmul.f32 %v961, %v751
        %v991 = vmul.f32 %v961, %v752
        %v992 = vmul.f32 %v961, %v753
        %v993 = vmul.f32 %v961, %v754
        %v994 = vadd.f32 %v927, %v962
        %v995 = vadd.f32 %v928, %v963
        %v996 = vadd.f32 %v929, %v964
        %v997 = vadd.f32 %v930, %v965
        %v998 = vadd.f32 %v931, %v966
        %v999 = vadd.f32 %v932, %v967
        %v1000 = vadd.f32 %v933, %v968
        %v1001 = vadd.f32 %v934, %v969
        %v1002 = vadd.f32 %v935, %v970
        %v1003 = vadd.f32 %v936, %v971
        %v1004 = vadd.f32 %v937, %v972
        %v1005 = vadd.f32 %v938, %v973
        %v1006 = vadd.f32 %v939, %v974
        %v1007 = vadd.f32 %v940, %v975
        %v1008 = vadd.f32 %v941, %v976
        %v1009 = vadd.f32 %v942, %v977
        %v1010 = vadd.f32 %v943, %v978
        %v1011 = vadd.f32 %v944, %v979
        %v1012 = vadd.f32 %v945, %v980
        %v1013 = vadd.f32 %v946, %v981
        %v1014 = vadd.f32 %v947, %v982
        %v1015 = vadd.f32 %v948, %v983
        %v1016 = vadd.f32 %v949, %v984
        %v1017 = vadd.f32 %v950, %v985
        %v1018 = vadd.f32 %v951, %v986
        %v1019 = vadd.f32 %v952, %v987
        %v1020 = vadd.f32 %v953, %v988
        %v1021 = vadd.f32 %v954, %v989
        %v1022 = vadd.f32 %v955, %v990
        %v1023 = vadd.f32 %v956, %v991
        %v1024 = vadd.f32 %v957, %v992
        %v1025 = vadd.f32 %v958, %v993
        %s1026 = sadd.s32 %s312, 14
        %s1027 = sld [smem:[#allocation2 + %s1026]]
        %v1028 = vstv %s1027
        %v1029 = vmul.f32 %v1028, %v892
        %v1030 = vmul.f32 %v1028, %v893
        %v1031 = vmul.f32 %v1028, %v894
        %v1032 = vmul.f32 %v1028, %v895
        %v1033 = vmul.f32 %v1028, %v896
        %v1034 = vmul.f32 %v1028, %v897
        %v1035 = vmul.f32 %v1028, %v898
        %v1036 = vmul.f32 %v1028, %v899
        %v1037 = vmul.f32 %v1028, %v900
        %v1038 = vmul.f32 %v1028, %v901
        %v1039 = vmul.f32 %v1028, %v902
        %v1040 = vmul.f32 %v1028, %v903
        %v1041 = vmul.f32 %v1028, %v904
        %v1042 = vmul.f32 %v1028, %v905
        %v1043 = vmul.f32 %v1028, %v906
        %v1044 = vmul.f32 %v1028, %v907
        %v1045 = vmul.f32 %v1028, %v908
        %v1046 = vmul.f32 %v1028, %v909
        %v1047 = vmul.f32 %v1028, %v910
        %v1048 = vmul.f32 %v1028, %v911
        %v1049 = vmul.f32 %v1028, %v912
        %v1050 = vmul.f32 %v1028, %v913
        %v1051 = vmul.f32 %v1028, %v914
        %v1052 = vmul.f32 %v1028, %v915
        %v1053 = vmul.f32 %v1028, %v916
        %v1054 = vmul.f32 %v1028, %v917
        %v1055 = vmul.f32 %v1028, %v918
        %v1056 = vmul.f32 %v1028, %v919
        %v1057 = vmul.f32 %v1028, %v920
        %v1058 = vmul.f32 %v1028, %v921
        %v1059 = vmul.f32 %v1028, %v922
        %v1060 = vmul.f32 %v1028, %v923
        %v1061 = vadd.f32 %v994, %v1029
        %v1062 = vadd.f32 %v995, %v1030
        %v1063 = vadd.f32 %v996, %v1031
        %v1064 = vadd.f32 %v997, %v1032
        %v1065 = vadd.f32 %v998, %v1033
        %v1066 = vadd.f32 %v999, %v1034
        %v1067 = vadd.f32 %v1000, %v1035
        %v1068 = vadd.f32 %v1001, %v1036
        %v1069 = vadd.f32 %v1002, %v1037
        %v1070 = vadd.f32 %v1003, %v1038
        %v1071 = vadd.f32 %v1004, %v1039
        %v1072 = vadd.f32 %v1005, %v1040
        %v1073 = vadd.f32 %v1006, %v1041
        %v1074 = vadd.f32 %v1007, %v1042
        %v1075 = vadd.f32 %v1008, %v1043
        %v1076 = vadd.f32 %v1009, %v1044
        %v1077 = vadd.f32 %v1010, %v1045
        %v1078 = vadd.f32 %v1011, %v1046
        %v1079 = vadd.f32 %v1012, %v1047
        %v1080 = vadd.f32 %v1013, %v1048
        %v1081 = vadd.f32 %v1014, %v1049
        %v1082 = vadd.f32 %v1015, %v1050
        %v1083 = vadd.f32 %v1016, %v1051
        %v1084 = vadd.f32 %v1017, %v1052
        %v1085 = vadd.f32 %v1018, %v1053
        %v1086 = vadd.f32 %v1019, %v1054
        %v1087 = vadd.f32 %v1020, %v1055
        %v1088 = vadd.f32 %v1021, %v1056
        %v1089 = vadd.f32 %v1022, %v1057
        %v1090 = vadd.f32 %v1023, %v1058
        %v1091 = vadd.f32 %v1024, %v1059
        %v1092 = vadd.f32 %v1025, %v1060
        %s1093 = sadd.s32 %s312, 21
        %s1094 = sld [smem:[#allocation2 + %s1093]]
        %v1095 = vstv %s1094
        %v1096 = vadd.f32 %v1061, %v1095
        %v1097 = vadd.f32 %v1062, %v1095
        %v1098 = vadd.f32 %v1063, %v1095
        %v1099 = vadd.f32 %v1064, %v1095
        %v1100 = vadd.f32 %v1065, %v1095
        %v1101 = vadd.f32 %v1066, %v1095
        %v1102 = vadd.f32 %v1067, %v1095
        %v1103 = vadd.f32 %v1068, %v1095
        %v1104 = vadd.f32 %v1069, %v1095
        %v1105 = vadd.f32 %v1070, %v1095
        %v1106 = vadd.f32 %v1071, %v1095
        %v1107 = vadd.f32 %v1072, %v1095
        %v1108 = vadd.f32 %v1073, %v1095
        %v1109 = vadd.f32 %v1074, %v1095
        %v1110 = vadd.f32 %v1075, %v1095
        %v1111 = vadd.f32 %v1076, %v1095
        %v1112 = vadd.f32 %v1077, %v1095
        %v1113 = vadd.f32 %v1078, %v1095
        %v1114 = vadd.f32 %v1079, %v1095
        %v1115 = vadd.f32 %v1080, %v1095
        %v1116 = vadd.f32 %v1081, %v1095
        %v1117 = vadd.f32 %v1082, %v1095
        %v1118 = vadd.f32 %v1083, %v1095
        %v1119 = vadd.f32 %v1084, %v1095
        %v1120 = vadd.f32 %v1085, %v1095
        %v1121 = vadd.f32 %v1086, %v1095
        %v1122 = vadd.f32 %v1087, %v1095
        %v1123 = vadd.f32 %v1088, %v1095
        %v1124 = vadd.f32 %v1089, %v1095
        %v1125 = vadd.f32 %v1090, %v1095
        %v1126 = vadd.f32 %v1091, %v1095
        %v1127 = vadd.f32 %v1092, %v1095
        %s1128 = sadd.s32 %s312, 15
        %s1129 = sld [smem:[#allocation2 + %s1128]]
        %v1130 = vstv %s1129
        %v1131 = vmul.f32 %v1130, %v554
        %v1132 = vmul.f32 %v1130, %v555
        %v1133 = vmul.f32 %v1130, %v556
        %v1134 = vmul.f32 %v1130, %v557
        %v1135 = vmul.f32 %v1130, %v558
        %v1136 = vmul.f32 %v1130, %v559
        %v1137 = vmul.f32 %v1130, %v560
        %v1138 = vmul.f32 %v1130, %v561
        %v1139 = vmul.f32 %v1130, %v562
        %v1140 = vmul.f32 %v1130, %v563
        %v1141 = vmul.f32 %v1130, %v564
        %v1142 = vmul.f32 %v1130, %v565
        %v1143 = vmul.f32 %v1130, %v566
        %v1144 = vmul.f32 %v1130, %v567
        %v1145 = vmul.f32 %v1130, %v568
        %v1146 = vmul.f32 %v1130, %v569
        %v1147 = vmul.f32 %v1130, %v570
        %v1148 = vmul.f32 %v1130, %v571
        %v1149 = vmul.f32 %v1130, %v572
        %v1150 = vmul.f32 %v1130, %v573
        %v1151 = vmul.f32 %v1130, %v574
        %v1152 = vmul.f32 %v1130, %v575
        %v1153 = vmul.f32 %v1130, %v576
        %v1154 = vmul.f32 %v1130, %v577
        %v1155 = vmul.f32 %v1130, %v578
        %v1156 = vmul.f32 %v1130, %v579
        %v1157 = vmul.f32 %v1130, %v580
        %v1158 = vmul.f32 %v1130, %v581
        %v1159 = vmul.f32 %v1130, %v582
        %v1160 = vmul.f32 %v1130, %v583
        %v1161 = vmul.f32 %v1130, %v584
        %v1162 = vmul.f32 %v1130, %v585
        %s1163 = sadd.s32 %s312, 16
        %s1164 = sld [smem:[#allocation2 + %s1163]]
        %v1165 = vstv %s1164
        %v1166 = vmul.f32 %v1165, %v723
        %v1167 = vmul.f32 %v1165, %v724
        %v1168 = vmul.f32 %v1165, %v725
        %v1169 = vmul.f32 %v1165, %v726
        %v1170 = vmul.f32 %v1165, %v727
        %v1171 = vmul.f32 %v1165, %v728
        %v1172 = vmul.f32 %v1165, %v729
        %v1173 = vmul.f32 %v1165, %v730
        %v1174 = vmul.f32 %v1165, %v731
        %v1175 = vmul.f32 %v1165, %v732
        %v1176 = vmul.f32 %v1165, %v733
        %v1177 = vmul.f32 %v1165, %v734
        %v1178 = vmul.f32 %v1165, %v735
        %v1179 = vmul.f32 %v1165, %v736
        %v1180 = vmul.f32 %v1165, %v737
        %v1181 = vmul.f32 %v1165, %v738
        %v1182 = vmul.f32 %v1165, %v739
        %v1183 = vmul.f32 %v1165, %v740
        %v1184 = vmul.f32 %v1165, %v741
        %v1185 = vmul.f32 %v1165, %v742
        %v1186 = vmul.f32 %v1165, %v743
        %v1187 = vmul.f32 %v1165, %v744
        %v1188 = vmul.f32 %v1165, %v745
        %v1189 = vmul.f32 %v1165, %v746
        %v1190 = vmul.f32 %v1165, %v747
        %v1191 = vmul.f32 %v1165, %v748
        %v1192 = vmul.f32 %v1165, %v749
        %v1193 = vmul.f32 %v1165, %v750
        %v1194 = vmul.f32 %v1165, %v751
        %v1195 = vmul.f32 %v1165, %v752
        %v1196 = vmul.f32 %v1165, %v753
        %v1197 = vmul.f32 %v1165, %v754
        %v1198 = vadd.f32 %v1131, %v1166
        %v1199 = vadd.f32 %v1132, %v1167
        %v1200 = vadd.f32 %v1133, %v1168
        %v1201 = vadd.f32 %v1134, %v1169
        %v1202 = vadd.f32 %v1135, %v1170
        %v1203 = vadd.f32 %v1136, %v1171
        %v1204 = vadd.f32 %v1137, %v1172
        %v1205 = vadd.f32 %v1138, %v1173
        %v1206 = vadd.f32 %v1139, %v1174
        %v1207 = vadd.f32 %v1140, %v1175
        %v1208 = vadd.f32 %v1141, %v1176
        %v1209 = vadd.f32 %v1142, %v1177
        %v1210 = vadd.f32 %v1143, %v1178
        %v1211 = vadd.f32 %v1144, %v1179
        %v1212 = vadd.f32 %v1145, %v1180
        %v1213 = vadd.f32 %v1146, %v1181
        %v1214 = vadd.f32 %v1147, %v1182
        %v1215 = vadd.f32 %v1148, %v1183
        %v1216 = vadd.f32 %v1149, %v1184
        %v1217 = vadd.f32 %v1150, %v1185
        %v1218 = vadd.f32 %v1151, %v1186
        %v1219 = vadd.f32 %v1152, %v1187
        %v1220 = vadd.f32 %v1153, %v1188
        %v1221 = vadd.f32 %v1154, %v1189
        %v1222 = vadd.f32 %v1155, %v1190
        %v1223 = vadd.f32 %v1156, %v1191
        %v1224 = vadd.f32 %v1157, %v1192
        %v1225 = vadd.f32 %v1158, %v1193
        %v1226 = vadd.f32 %v1159, %v1194
        %v1227 = vadd.f32 %v1160, %v1195
        %v1228 = vadd.f32 %v1161, %v1196
        %v1229 = vadd.f32 %v1162, %v1197
        %s1230 = sadd.s32 %s312, 17
        %s1231 = sld [smem:[#allocation2 + %s1230]]
        %v1232 = vstv %s1231
        %v1233 = vmul.f32 %v1232, %v892
        %v1234 = vmul.f32 %v1232, %v893
        %v1235 = vmul.f32 %v1232, %v894
        %v1236 = vmul.f32 %v1232, %v895
        %v1237 = vmul.f32 %v1232, %v896
        %v1238 = vmul.f32 %v1232, %v897
        %v1239 = vmul.f32 %v1232, %v898
        %v1240 = vmul.f32 %v1232, %v899
        %v1241 = vmul.f32 %v1232, %v900
        %v1242 = vmul.f32 %v1232, %v901
        %v1243 = vmul.f32 %v1232, %v902
        %v1244 = vmul.f32 %v1232, %v903
        %v1245 = vmul.f32 %v1232, %v904
        %v1246 = vmul.f32 %v1232, %v905
        %v1247 = vmul.f32 %v1232, %v906
        %v1248 = vmul.f32 %v1232, %v907
        %v1249 = vmul.f32 %v1232, %v908
        %v1250 = vmul.f32 %v1232, %v909
        %v1251 = vmul.f32 %v1232, %v910
        %v1252 = vmul.f32 %v1232, %v911
        %v1253 = vmul.f32 %v1232, %v912
        %v1254 = vmul.f32 %v1232, %v913
        %v1255 = vmul.f32 %v1232, %v914
        %v1256 = vmul.f32 %v1232, %v915
        %v1257 = vmul.f32 %v1232, %v916
        %v1258 = vmul.f32 %v1232, %v917
        %v1259 = vmul.f32 %v1232, %v918
        %v1260 = vmul.f32 %v1232, %v919
        %v1261 = vmul.f32 %v1232, %v920
        %v1262 = vmul.f32 %v1232, %v921
        %v1263 = vmul.f32 %v1232, %v922
        %v1264 = vmul.f32 %v1232, %v923
        %v1265 = vadd.f32 %v1198, %v1233
        %v1266 = vadd.f32 %v1199, %v1234
        %v1267 = vadd.f32 %v1200, %v1235
        %v1268 = vadd.f32 %v1201, %v1236
        %v1269 = vadd.f32 %v1202, %v1237
        %v1270 = vadd.f32 %v1203, %v1238
        %v1271 = vadd.f32 %v1204, %v1239
        %v1272 = vadd.f32 %v1205, %v1240
        %v1273 = vadd.f32 %v1206, %v1241
        %v1274 = vadd.f32 %v1207, %v1242
        %v1275 = vadd.f32 %v1208, %v1243
        %v1276 = vadd.f32 %v1209, %v1244
        %v1277 = vadd.f32 %v1210, %v1245
        %v1278 = vadd.f32 %v1211, %v1246
        %v1279 = vadd.f32 %v1212, %v1247
        %v1280 = vadd.f32 %v1213, %v1248
        %v1281 = vadd.f32 %v1214, %v1249
        %v1282 = vadd.f32 %v1215, %v1250
        %v1283 = vadd.f32 %v1216, %v1251
        %v1284 = vadd.f32 %v1217, %v1252
        %v1285 = vadd.f32 %v1218, %v1253
        %v1286 = vadd.f32 %v1219, %v1254
        %v1287 = vadd.f32 %v1220, %v1255
        %v1288 = vadd.f32 %v1221, %v1256
        %v1289 = vadd.f32 %v1222, %v1257
        %v1290 = vadd.f32 %v1223, %v1258
        %v1291 = vadd.f32 %v1224, %v1259
        %v1292 = vadd.f32 %v1225, %v1260
        %v1293 = vadd.f32 %v1226, %v1261
        %v1294 = vadd.f32 %v1227, %v1262
        %v1295 = vadd.f32 %v1228, %v1263
        %v1296 = vadd.f32 %v1229, %v1264
        %s1297 = sadd.s32 %s312, 22
        %s1298 = sld [smem:[#allocation2 + %s1297]]
        %v1299 = vstv %s1298
        %v1300 = vadd.f32 %v1265, %v1299
        %v1301 = vadd.f32 %v1266, %v1299
        %v1302 = vadd.f32 %v1267, %v1299
        %v1303 = vadd.f32 %v1268, %v1299
        %v1304 = vadd.f32 %v1269, %v1299
        %v1305 = vadd.f32 %v1270, %v1299
        %v1306 = vadd.f32 %v1271, %v1299
        %v1307 = vadd.f32 %v1272, %v1299
        %v1308 = vadd.f32 %v1273, %v1299
        %v1309 = vadd.f32 %v1274, %v1299
        %v1310 = vadd.f32 %v1275, %v1299
        %v1311 = vadd.f32 %v1276, %v1299
        %v1312 = vadd.f32 %v1277, %v1299
        %v1313 = vadd.f32 %v1278, %v1299
        %v1314 = vadd.f32 %v1279, %v1299
        %v1315 = vadd.f32 %v1280, %v1299
        %v1316 = vadd.f32 %v1281, %v1299
        %v1317 = vadd.f32 %v1282, %v1299
        %v1318 = vadd.f32 %v1283, %v1299
        %v1319 = vadd.f32 %v1284, %v1299
        %v1320 = vadd.f32 %v1285, %v1299
        %v1321 = vadd.f32 %v1286, %v1299
        %v1322 = vadd.f32 %v1287, %v1299
        %v1323 = vadd.f32 %v1288, %v1299
        %v1324 = vadd.f32 %v1289, %v1299
        %v1325 = vadd.f32 %v1290, %v1299
        %v1326 = vadd.f32 %v1291, %v1299
        %v1327 = vadd.f32 %v1292, %v1299
        %v1328 = vadd.f32 %v1293, %v1299
        %v1329 = vadd.f32 %v1294, %v1299
        %v1330 = vadd.f32 %v1295, %v1299
        %v1331 = vadd.f32 %v1296, %v1299
        %s1332 = sadd.s32 %s312, 18
        %s1333 = sld [smem:[#allocation2 + %s1332]]
        %v1334 = vstv %s1333
        %v1335 = vmul.f32 %v1334, %v554
        %v1336 = vmul.f32 %v1334, %v555
        %v1337 = vmul.f32 %v1334, %v556
        %v1338 = vmul.f32 %v1334, %v557
        %v1339 = vmul.f32 %v1334, %v558
        %v1340 = vmul.f32 %v1334, %v559
        %v1341 = vmul.f32 %v1334, %v560
        %v1342 = vmul.f32 %v1334, %v561
        %v1343 = vmul.f32 %v1334, %v562
        %v1344 = vmul.f32 %v1334, %v563
        %v1345 = vmul.f32 %v1334, %v564
        %v1346 = vmul.f32 %v1334, %v565
        %v1347 = vmul.f32 %v1334, %v566
        %v1348 = vmul.f32 %v1334, %v567
        %v1349 = vmul.f32 %v1334, %v568
        %v1350 = vmul.f32 %v1334, %v569
        %v1351 = vmul.f32 %v1334, %v570
        %v1352 = vmul.f32 %v1334, %v571
        %v1353 = vmul.f32 %v1334, %v572
        %v1354 = vmul.f32 %v1334, %v573
        %v1355 = vmul.f32 %v1334, %v574
        %v1356 = vmul.f32 %v1334, %v575
        %v1357 = vmul.f32 %v1334, %v576
        %v1358 = vmul.f32 %v1334, %v577
        %v1359 = vmul.f32 %v1334, %v578
        %v1360 = vmul.f32 %v1334, %v579
        %v1361 = vmul.f32 %v1334, %v580
        %v1362 = vmul.f32 %v1334, %v581
        %v1363 = vmul.f32 %v1334, %v582
        %v1364 = vmul.f32 %v1334, %v583
        %v1365 = vmul.f32 %v1334, %v584
        %v1366 = vmul.f32 %v1334, %v585
        %s1367 = sadd.s32 %s312, 19
        %s1368 = sld [smem:[#allocation2 + %s1367]]
        %v1369 = vstv %s1368
        %v1370 = vmul.f32 %v1369, %v723
        %v1371 = vmul.f32 %v1369, %v724
        %v1372 = vmul.f32 %v1369, %v725
        %v1373 = vmul.f32 %v1369, %v726
        %v1374 = vmul.f32 %v1369, %v727
        %v1375 = vmul.f32 %v1369, %v728
        %v1376 = vmul.f32 %v1369, %v729
        %v1377 = vmul.f32 %v1369, %v730
        %v1378 = vmul.f32 %v1369, %v731
        %v1379 = vmul.f32 %v1369, %v732
        %v1380 = vmul.f32 %v1369, %v733
        %v1381 = vmul.f32 %v1369, %v734
        %v1382 = vmul.f32 %v1369, %v735
        %v1383 = vmul.f32 %v1369, %v736
        %v1384 = vmul.f32 %v1369, %v737
        %v1385 = vmul.f32 %v1369, %v738
        %v1386 = vmul.f32 %v1369, %v739
        %v1387 = vmul.f32 %v1369, %v740
        %v1388 = vmul.f32 %v1369, %v741
        %v1389 = vmul.f32 %v1369, %v742
        %v1390 = vmul.f32 %v1369, %v743
        %v1391 = vmul.f32 %v1369, %v744
        %v1392 = vmul.f32 %v1369, %v745
        %v1393 = vmul.f32 %v1369, %v746
        %v1394 = vmul.f32 %v1369, %v747
        %v1395 = vmul.f32 %v1369, %v748
        %v1396 = vmul.f32 %v1369, %v749
        %v1397 = vmul.f32 %v1369, %v750
        %v1398 = vmul.f32 %v1369, %v751
        %v1399 = vmul.f32 %v1369, %v752
        %v1400 = vmul.f32 %v1369, %v753
        %v1401 = vmul.f32 %v1369, %v754
        %v1402 = vadd.f32 %v1335, %v1370
        %v1403 = vadd.f32 %v1336, %v1371
        %v1404 = vadd.f32 %v1337, %v1372
        %v1405 = vadd.f32 %v1338, %v1373
        %v1406 = vadd.f32 %v1339, %v1374
        %v1407 = vadd.f32 %v1340, %v1375
        %v1408 = vadd.f32 %v1341, %v1376
        %v1409 = vadd.f32 %v1342, %v1377
        %v1410 = vadd.f32 %v1343, %v1378
        %v1411 = vadd.f32 %v1344, %v1379
        %v1412 = vadd.f32 %v1345, %v1380
        %v1413 = vadd.f32 %v1346, %v1381
        %v1414 = vadd.f32 %v1347, %v1382
        %v1415 = vadd.f32 %v1348, %v1383
        %v1416 = vadd.f32 %v1349, %v1384
        %v1417 = vadd.f32 %v1350, %v1385
        %v1418 = vadd.f32 %v1351, %v1386
        %v1419 = vadd.f32 %v1352, %v1387
        %v1420 = vadd.f32 %v1353, %v1388
        %v1421 = vadd.f32 %v1354, %v1389
        %v1422 = vadd.f32 %v1355, %v1390
        %v1423 = vadd.f32 %v1356, %v1391
        %v1424 = vadd.f32 %v1357, %v1392
        %v1425 = vadd.f32 %v1358, %v1393
        %v1426 = vadd.f32 %v1359, %v1394
        %v1427 = vadd.f32 %v1360, %v1395
        %v1428 = vadd.f32 %v1361, %v1396
        %v1429 = vadd.f32 %v1362, %v1397
        %v1430 = vadd.f32 %v1363, %v1398
        %v1431 = vadd.f32 %v1364, %v1399
        %v1432 = vadd.f32 %v1365, %v1400
        %v1433 = vadd.f32 %v1366, %v1401
        %s1434 = sadd.s32 %s312, 20
        %s1435 = sld [smem:[#allocation2 + %s1434]]
        %v1436 = vstv %s1435
        %v1437 = vmul.f32 %v1436, %v892
        %v1438 = vmul.f32 %v1436, %v893
        %v1439 = vmul.f32 %v1436, %v894
        %v1440 = vmul.f32 %v1436, %v895
        %v1441 = vmul.f32 %v1436, %v896
        %v1442 = vmul.f32 %v1436, %v897
        %v1443 = vmul.f32 %v1436, %v898
        %v1444 = vmul.f32 %v1436, %v899
        %v1445 = vmul.f32 %v1436, %v900
        %v1446 = vmul.f32 %v1436, %v901
        %v1447 = vmul.f32 %v1436, %v902
        %v1448 = vmul.f32 %v1436, %v903
        %v1449 = vmul.f32 %v1436, %v904
        %v1450 = vmul.f32 %v1436, %v905
        %v1451 = vmul.f32 %v1436, %v906
        %v1452 = vmul.f32 %v1436, %v907
        %v1453 = vmul.f32 %v1436, %v908
        %v1454 = vmul.f32 %v1436, %v909
        %v1455 = vmul.f32 %v1436, %v910
        %v1456 = vmul.f32 %v1436, %v911
        %v1457 = vmul.f32 %v1436, %v912
        %v1458 = vmul.f32 %v1436, %v913
        %v1459 = vmul.f32 %v1436, %v914
        %v1460 = vmul.f32 %v1436, %v915
        %v1461 = vmul.f32 %v1436, %v916
        %v1462 = vmul.f32 %v1436, %v917
        %v1463 = vmul.f32 %v1436, %v918
        %v1464 = vmul.f32 %v1436, %v919
        %v1465 = vmul.f32 %v1436, %v920
        %v1466 = vmul.f32 %v1436, %v921
        %v1467 = vmul.f32 %v1436, %v922
        %v1468 = vmul.f32 %v1436, %v923
        %v1469 = vadd.f32 %v1402, %v1437
        %v1470 = vadd.f32 %v1403, %v1438
        %v1471 = vadd.f32 %v1404, %v1439
        %v1472 = vadd.f32 %v1405, %v1440
        %v1473 = vadd.f32 %v1406, %v1441
        %v1474 = vadd.f32 %v1407, %v1442
        %v1475 = vadd.f32 %v1408, %v1443
        %v1476 = vadd.f32 %v1409, %v1444
        %v1477 = vadd.f32 %v1410, %v1445
        %v1478 = vadd.f32 %v1411, %v1446
        %v1479 = vadd.f32 %v1412, %v1447
        %v1480 = vadd.f32 %v1413, %v1448
        %v1481 = vadd.f32 %v1414, %v1449
        %v1482 = vadd.f32 %v1415, %v1450
        %v1483 = vadd.f32 %v1416, %v1451
        %v1484 = vadd.f32 %v1417, %v1452
        %v1485 = vadd.f32 %v1418, %v1453
        %v1486 = vadd.f32 %v1419, %v1454
        %v1487 = vadd.f32 %v1420, %v1455
        %v1488 = vadd.f32 %v1421, %v1456
        %v1489 = vadd.f32 %v1422, %v1457
        %v1490 = vadd.f32 %v1423, %v1458
        %v1491 = vadd.f32 %v1424, %v1459
        %v1492 = vadd.f32 %v1425, %v1460
        %v1493 = vadd.f32 %v1426, %v1461
        %v1494 = vadd.f32 %v1427, %v1462
        %v1495 = vadd.f32 %v1428, %v1463
        %v1496 = vadd.f32 %v1429, %v1464
        %v1497 = vadd.f32 %v1430, %v1465
        %v1498 = vadd.f32 %v1431, %v1466
        %v1499 = vadd.f32 %v1432, %v1467
        %v1500 = vadd.f32 %v1433, %v1468
        %s1501 = sadd.s32 %s312, 23
        %s1502 = sld [smem:[#allocation2 + %s1501]]
        %v1503 = vstv %s1502
        %v1504 = vadd.f32 %v1469, %v1503
        %v1505 = vadd.f32 %v1470, %v1503
        %v1506 = vadd.f32 %v1471, %v1503
        %v1507 = vadd.f32 %v1472, %v1503
        %v1508 = vadd.f32 %v1473, %v1503
        %v1509 = vadd.f32 %v1474, %v1503
        %v1510 = vadd.f32 %v1475, %v1503
        %v1511 = vadd.f32 %v1476, %v1503
        %v1512 = vadd.f32 %v1477, %v1503
        %v1513 = vadd.f32 %v1478, %v1503
        %v1514 = vadd.f32 %v1479, %v1503
        %v1515 = vadd.f32 %v1480, %v1503
        %v1516 = vadd.f32 %v1481, %v1503
        %v1517 = vadd.f32 %v1482, %v1503
        %v1518 = vadd.f32 %v1483, %v1503
        %v1519 = vadd.f32 %v1484, %v1503
        %v1520 = vadd.f32 %v1485, %v1503
        %v1521 = vadd.f32 %v1486, %v1503
        %v1522 = vadd.f32 %v1487, %v1503
        %v1523 = vadd.f32 %v1488, %v1503
        %v1524 = vadd.f32 %v1489, %v1503
        %v1525 = vadd.f32 %v1490, %v1503
        %v1526 = vadd.f32 %v1491, %v1503
        %v1527 = vadd.f32 %v1492, %v1503
        %v1528 = vadd.f32 %v1493, %v1503
        %v1529 = vadd.f32 %v1494, %v1503
        %v1530 = vadd.f32 %v1495, %v1503
        %v1531 = vadd.f32 %v1496, %v1503
        %v1532 = vadd.f32 %v1497, %v1503
        %v1533 = vadd.f32 %v1498, %v1503
        %v1534 = vadd.f32 %v1499, %v1503
        %v1535 = vadd.f32 %v1500, %v1503
        %v1536 = vmax.f32 %v1504, 1e-05
        %v1537 = vmax.f32 %v1505, 1e-05
        %v1538 = vmax.f32 %v1506, 1e-05
        %v1539 = vmax.f32 %v1507, 1e-05
        %v1540 = vmax.f32 %v1508, 1e-05
        %v1541 = vmax.f32 %v1509, 1e-05
        %v1542 = vmax.f32 %v1510, 1e-05
        %v1543 = vmax.f32 %v1511, 1e-05
        %v1544 = vmax.f32 %v1512, 1e-05
        %v1545 = vmax.f32 %v1513, 1e-05
        %v1546 = vmax.f32 %v1514, 1e-05
        %v1547 = vmax.f32 %v1515, 1e-05
        %v1548 = vmax.f32 %v1516, 1e-05
        %v1549 = vmax.f32 %v1517, 1e-05
        %v1550 = vmax.f32 %v1518, 1e-05
        %v1551 = vmax.f32 %v1519, 1e-05
        %v1552 = vmax.f32 %v1520, 1e-05
        %v1553 = vmax.f32 %v1521, 1e-05
        %v1554 = vmax.f32 %v1522, 1e-05
        %v1555 = vmax.f32 %v1523, 1e-05
        %v1556 = vmax.f32 %v1524, 1e-05
        %v1557 = vmax.f32 %v1525, 1e-05
        %v1558 = vmax.f32 %v1526, 1e-05
        %v1559 = vmax.f32 %v1527, 1e-05
        %v1560 = vmax.f32 %v1528, 1e-05
        %v1561 = vmax.f32 %v1529, 1e-05
        %v1562 = vmax.f32 %v1530, 1e-05
        %v1563 = vmax.f32 %v1531, 1e-05
        %v1564 = vmax.f32 %v1532, 1e-05
        %v1565 = vmax.f32 %v1533, 1e-05
        %v1566 = vmax.f32 %v1534, 1e-05
        %v1567 = vmax.f32 %v1535, 1e-05
        %v1568 = vmin.f32 %v1536, 100000.0
        %v1569 = vmin.f32 %v1537, 100000.0
        %v1570 = vmin.f32 %v1538, 100000.0
        %v1571 = vmin.f32 %v1539, 100000.0
        %v1572 = vmin.f32 %v1540, 100000.0
        %v1573 = vmin.f32 %v1541, 100000.0
        %v1574 = vmin.f32 %v1542, 100000.0
        %v1575 = vmin.f32 %v1543, 100000.0
        %v1576 = vmin.f32 %v1544, 100000.0
        %v1577 = vmin.f32 %v1545, 100000.0
        %v1578 = vmin.f32 %v1546, 100000.0
        %v1579 = vmin.f32 %v1547, 100000.0
        %v1580 = vmin.f32 %v1548, 100000.0
        %v1581 = vmin.f32 %v1549, 100000.0
        %v1582 = vmin.f32 %v1550, 100000.0
        %v1583 = vmin.f32 %v1551, 100000.0
        %v1584 = vmin.f32 %v1552, 100000.0
        %v1585 = vmin.f32 %v1553, 100000.0
        %v1586 = vmin.f32 %v1554, 100000.0
        %v1587 = vmin.f32 %v1555, 100000.0
        %v1588 = vmin.f32 %v1556, 100000.0
        %v1589 = vmin.f32 %v1557, 100000.0
        %v1590 = vmin.f32 %v1558, 100000.0
        %v1591 = vmin.f32 %v1559, 100000.0
        %v1592 = vmin.f32 %v1560, 100000.0
        %v1593 = vmin.f32 %v1561, 100000.0
        %v1594 = vmin.f32 %v1562, 100000.0
        %v1595 = vmin.f32 %v1563, 100000.0
        %v1596 = vmin.f32 %v1564, 100000.0
        %v1597 = vmin.f32 %v1565, 100000.0
        %v1598 = vmin.f32 %v1566, 100000.0
        %v1599 = vmin.f32 %v1567, 100000.0
        %v1600 = vrcp.pop %v1568
        %v1601 = vmul.f32 %v1096, %v1600
        %v1602 = vrcp.pop %v1569
        %v1603 = vmul.f32 %v1097, %v1602
        %v1604 = vrcp.pop %v1570
        %v1605 = vmul.f32 %v1098, %v1604
        %v1606 = vrcp.pop %v1571
        %v1607 = vmul.f32 %v1099, %v1606
        %v1608 = vrcp.pop %v1572
        %v1609 = vmul.f32 %v1100, %v1608
        %v1610 = vrcp.pop %v1573
        %v1611 = vmul.f32 %v1101, %v1610
        %v1612 = vrcp.pop %v1574
        %v1613 = vmul.f32 %v1102, %v1612
        %v1614 = vrcp.pop %v1575
        %v1615 = vmul.f32 %v1103, %v1614
        %v1616 = vrcp.pop %v1576
        %v1617 = vmul.f32 %v1104, %v1616
        %v1618 = vrcp.pop %v1577
        %v1619 = vmul.f32 %v1105, %v1618
        %v1620 = vrcp.pop %v1578
        %v1621 = vmul.f32 %v1106, %v1620
        %v1622 = vrcp.pop %v1579
        %v1623 = vmul.f32 %v1107, %v1622
        %v1624 = vrcp.pop %v1580
        %v1625 = vmul.f32 %v1108, %v1624
        %v1626 = vrcp.pop %v1581
        %v1627 = vmul.f32 %v1109, %v1626
        %v1628 = vrcp.pop %v1582
        %v1629 = vmul.f32 %v1110, %v1628
        %v1630 = vrcp.pop %v1583
        %v1631 = vmul.f32 %v1111, %v1630
        %v1632 = vrcp.pop %v1584
        %v1633 = vmul.f32 %v1112, %v1632
        %v1634 = vrcp.pop %v1585
        %v1635 = vmul.f32 %v1113, %v1634
        %v1636 = vrcp.pop %v1586
        %v1637 = vmul.f32 %v1114, %v1636
        %v1638 = vrcp.pop %v1587
        %v1639 = vmul.f32 %v1115, %v1638
        %v1640 = vrcp.pop %v1588
        %v1641 = vmul.f32 %v1116, %v1640
        %v1642 = vrcp.pop %v1589
        %v1643 = vmul.f32 %v1117, %v1642
        %v1644 = vrcp.pop %v1590
        %v1645 = vmul.f32 %v1118, %v1644
        %v1646 = vrcp.pop %v1591
        %v1647 = vmul.f32 %v1119, %v1646
        %v1648 = vrcp.pop %v1592
        %v1649 = vmul.f32 %v1120, %v1648
        %v1650 = vrcp.pop %v1593
        %v1651 = vmul.f32 %v1121, %v1650
        %v1652 = vrcp.pop %v1594
        %v1653 = vmul.f32 %v1122, %v1652
        %v1654 = vrcp.pop %v1595
        %v1655 = vmul.f32 %v1123, %v1654
        %v1656 = vrcp.pop %v1596
        %v1657 = vmul.f32 %v1124, %v1656
        %v1658 = vrcp.pop %v1597
        %v1659 = vmul.f32 %v1125, %v1658
        %v1660 = vrcp.pop %v1598
        %v1661 = vmul.f32 %v1126, %v1660
        %v1662 = vrcp.pop %v1599
        %v1663 = vmul.f32 %v1127, %v1662
        %v1664 = vmul.f32 %v1300, %v1600
        %v1665 = vmul.f32 %v1301, %v1602
        %v1666 = vmul.f32 %v1302, %v1604
        %v1667 = vmul.f32 %v1303, %v1606
        %v1668 = vmul.f32 %v1304, %v1608
        %v1669 = vmul.f32 %v1305, %v1610
        %v1670 = vmul.f32 %v1306, %v1612
        %v1671 = vmul.f32 %v1307, %v1614
        %v1672 = vmul.f32 %v1308, %v1616
        %v1673 = vmul.f32 %v1309, %v1618
        %v1674 = vmul.f32 %v1310, %v1620
        %v1675 = vmul.f32 %v1311, %v1622
        %v1676 = vmul.f32 %v1312, %v1624
        %v1677 = vmul.f32 %v1313, %v1626
        %v1678 = vmul.f32 %v1314, %v1628
        %v1679 = vmul.f32 %v1315, %v1630
        %v1680 = vmul.f32 %v1316, %v1632
        %v1681 = vmul.f32 %v1317, %v1634
        %v1682 = vmul.f32 %v1318, %v1636
        %v1683 = vmul.f32 %v1319, %v1638
        %v1684 = vmul.f32 %v1320, %v1640
        %v1685 = vmul.f32 %v1321, %v1642
        %v1686 = vmul.f32 %v1322, %v1644
        %v1687 = vmul.f32 %v1323, %v1646
        %v1688 = vmul.f32 %v1324, %v1648
        %v1689 = vmul.f32 %v1325, %v1650
        %v1690 = vmul.f32 %v1326, %v1652
        %v1691 = vmul.f32 %v1327, %v1654
        %v1692 = vmul.f32 %v1328, %v1656
        %v1693 = vmul.f32 %v1329, %v1658
        %v1694 = vmul.f32 %v1330, %v1660
        %v1695 = vmul.f32 %v1331, %v1662
        %s1696 = sadd.s32 %s312, 24
        %s1697 = sld [smem:[#allocation2 + %s1696]]
        %v1698 = vstv %s1697
        %v1699 = vmul.f32 %v1698, %v1601
        %v1700 = vmul.f32 %v1698, %v1603
        %v1701 = vmul.f32 %v1698, %v1605
        %v1702 = vmul.f32 %v1698, %v1607
        %v1703 = vmul.f32 %v1698, %v1609
        %v1704 = vmul.f32 %v1698, %v1611
        %v1705 = vmul.f32 %v1698, %v1613
        %v1706 = vmul.f32 %v1698, %v1615
        %v1707 = vmul.f32 %v1698, %v1617
        %v1708 = vmul.f32 %v1698, %v1619
        %v1709 = vmul.f32 %v1698, %v1621
        %v1710 = vmul.f32 %v1698, %v1623
        %v1711 = vmul.f32 %v1698, %v1625
        %v1712 = vmul.f32 %v1698, %v1627
        %v1713 = vmul.f32 %v1698, %v1629
        %v1714 = vmul.f32 %v1698, %v1631
        %v1715 = vmul.f32 %v1698, %v1633
        %v1716 = vmul.f32 %v1698, %v1635
        %v1717 = vmul.f32 %v1698, %v1637
        %v1718 = vmul.f32 %v1698, %v1639
        %v1719 = vmul.f32 %v1698, %v1641
        %v1720 = vmul.f32 %v1698, %v1643
        %v1721 = vmul.f32 %v1698, %v1645
        %v1722 = vmul.f32 %v1698, %v1647
        %v1723 = vmul.f32 %v1698, %v1649
        %v1724 = vmul.f32 %v1698, %v1651
        %v1725 = vmul.f32 %v1698, %v1653
        %v1726 = vmul.f32 %v1698, %v1655
        %v1727 = vmul.f32 %v1698, %v1657
        %v1728 = vmul.f32 %v1698, %v1659
        %v1729 = vmul.f32 %v1698, %v1661
        %v1730 = vmul.f32 %v1698, %v1663
        %s1731 = sadd.s32 %s312, 25
        %s1732 = sld [smem:[#allocation2 + %s1731]]
        %v1733 = vstv %s1732
        %v1734 = vmul.f32 %v1733, %v1664
        %v1735 = vmul.f32 %v1733, %v1665
        %v1736 = vmul.f32 %v1733, %v1666
        %v1737 = vmul.f32 %v1733, %v1667
        %v1738 = vmul.f32 %v1733, %v1668
        %v1739 = vmul.f32 %v1733, %v1669
        %v1740 = vmul.f32 %v1733, %v1670
        %v1741 = vmul.f32 %v1733, %v1671
        %v1742 = vmul.f32 %v1733, %v1672
        %v1743 = vmul.f32 %v1733, %v1673
        %v1744 = vmul.f32 %v1733, %v1674
        %v1745 = vmul.f32 %v1733, %v1675
        %v1746 = vmul.f32 %v1733, %v1676
        %v1747 = vmul.f32 %v1733, %v1677
        %v1748 = vmul.f32 %v1733, %v1678
        %v1749 = vmul.f32 %v1733, %v1679
        %v1750 = vmul.f32 %v1733, %v1680
        %v1751 = vmul.f32 %v1733, %v1681
        %v1752 = vmul.f32 %v1733, %v1682
        %v1753 = vmul.f32 %v1733, %v1683
        %v1754 = vmul.f32 %v1733, %v1684
        %v1755 = vmul.f32 %v1733, %v1685
        %v1756 = vmul.f32 %v1733, %v1686
        %v1757 = vmul.f32 %v1733, %v1687
        %v1758 = vmul.f32 %v1733, %v1688
        %v1759 = vmul.f32 %v1733, %v1689
        %v1760 = vmul.f32 %v1733, %v1690
        %v1761 = vmul.f32 %v1733, %v1691
        %v1762 = vmul.f32 %v1733, %v1692
        %v1763 = vmul.f32 %v1733, %v1693
        %v1764 = vmul.f32 %v1733, %v1694
        %v1765 = vmul.f32 %v1733, %v1695
        %v1766 = vadd.f32 %v1699, %v1734
        %v1767 = vadd.f32 %v1700, %v1735
        %v1768 = vadd.f32 %v1701, %v1736
        %v1769 = vadd.f32 %v1702, %v1737
        %v1770 = vadd.f32 %v1703, %v1738
        %v1771 = vadd.f32 %v1704, %v1739
        %v1772 = vadd.f32 %v1705, %v1740
        %v1773 = vadd.f32 %v1706, %v1741
        %v1774 = vadd.f32 %v1707, %v1742
        %v1775 = vadd.f32 %v1708, %v1743
        %v1776 = vadd.f32 %v1709, %v1744
        %v1777 = vadd.f32 %v1710, %v1745
        %v1778 = vadd.f32 %v1711, %v1746
        %v1779 = vadd.f32 %v1712, %v1747
        %v1780 = vadd.f32 %v1713, %v1748
        %v1781 = vadd.f32 %v1714, %v1749
        %v1782 = vadd.f32 %v1715, %v1750
        %v1783 = vadd.f32 %v1716, %v1751
        %v1784 = vadd.f32 %v1717, %v1752
        %v1785 = vadd.f32 %v1718, %v1753
        %v1786 = vadd.f32 %v1719, %v1754
        %v1787 = vadd.f32 %v1720, %v1755
        %v1788 = vadd.f32 %v1721, %v1756
        %v1789 = vadd.f32 %v1722, %v1757
        %v1790 = vadd.f32 %v1723, %v1758
        %v1791 = vadd.f32 %v1724, %v1759
        %v1792 = vadd.f32 %v1725, %v1760
        %v1793 = vadd.f32 %v1726, %v1761
        %v1794 = vadd.f32 %v1727, %v1762
        %v1795 = vadd.f32 %v1728, %v1763
        %v1796 = vadd.f32 %v1729, %v1764
        %v1797 = vadd.f32 %v1730, %v1765
        %s1798 = sadd.s32 %s312, 26
        %s1799 = sld [smem:[#allocation2 + %s1798]]
        %v1800 = vstv %s1799
        %v1801 = vmul.f32 %v1800, %v1568
        %v1802 = vmul.f32 %v1800, %v1569
        %v1803 = vmul.f32 %v1800, %v1570
        %v1804 = vmul.f32 %v1800, %v1571
        %v1805 = vmul.f32 %v1800, %v1572
        %v1806 = vmul.f32 %v1800, %v1573
        %v1807 = vmul.f32 %v1800, %v1574
        %v1808 = vmul.f32 %v1800, %v1575
        %v1809 = vmul.f32 %v1800, %v1576
        %v1810 = vmul.f32 %v1800, %v1577
        %v1811 = vmul.f32 %v1800, %v1578
        %v1812 = vmul.f32 %v1800, %v1579
        %v1813 = vmul.f32 %v1800, %v1580
        %v1814 = vmul.f32 %v1800, %v1581
        %v1815 = vmul.f32 %v1800, %v1582
        %v1816 = vmul.f32 %v1800, %v1583
        %v1817 = vmul.f32 %v1800, %v1584
        %v1818 = vmul.f32 %v1800, %v1585
        %v1819 = vmul.f32 %v1800, %v1586
        %v1820 = vmul.f32 %v1800, %v1587
        %v1821 = vmul.f32 %v1800, %v1588
        %v1822 = vmul.f32 %v1800, %v1589
        %v1823 = vmul.f32 %v1800, %v1590
        %v1824 = vmul.f32 %v1800, %v1591
        %v1825 = vmul.f32 %v1800, %v1592
        %v1826 = vmul.f32 %v1800, %v1593
        %v1827 = vmul.f32 %v1800, %v1594
        %v1828 = vmul.f32 %v1800, %v1595
        %v1829 = vmul.f32 %v1800, %v1596
        %v1830 = vmul.f32 %v1800, %v1597
        %v1831 = vmul.f32 %v1800, %v1598
        %v1832 = vmul.f32 %v1800, %v1599
        %v1833 = vadd.f32 %v1766, %v1801
        %v1834 = vadd.f32 %v1767, %v1802
        %v1835 = vadd.f32 %v1768, %v1803
        %v1836 = vadd.f32 %v1769, %v1804
        %v1837 = vadd.f32 %v1770, %v1805
        %v1838 = vadd.f32 %v1771, %v1806
        %v1839 = vadd.f32 %v1772, %v1807
        %v1840 = vadd.f32 %v1773, %v1808
        %v1841 = vadd.f32 %v1774, %v1809
        %v1842 = vadd.f32 %v1775, %v1810
        %v1843 = vadd.f32 %v1776, %v1811
        %v1844 = vadd.f32 %v1777, %v1812
        %v1845 = vadd.f32 %v1778, %v1813
        %v1846 = vadd.f32 %v1779, %v1814
        %v1847 = vadd.f32 %v1780, %v1815
        %v1848 = vadd.f32 %v1781, %v1816
        %v1849 = vadd.f32 %v1782, %v1817
        %v1850 = vadd.f32 %v1783, %v1818
        %v1851 = vadd.f32 %v1784, %v1819
        %v1852 = vadd.f32 %v1785, %v1820
        %v1853 = vadd.f32 %v1786, %v1821
        %v1854 = vadd.f32 %v1787, %v1822
        %v1855 = vadd.f32 %v1788, %v1823
        %v1856 = vadd.f32 %v1789, %v1824
        %v1857 = vadd.f32 %v1790, %v1825
        %v1858 = vadd.f32 %v1791, %v1826
        %v1859 = vadd.f32 %v1792, %v1827
        %v1860 = vadd.f32 %v1793, %v1828
        %v1861 = vadd.f32 %v1794, %v1829
        %v1862 = vadd.f32 %v1795, %v1830
        %v1863 = vadd.f32 %v1796, %v1831
        %v1864 = vadd.f32 %v1797, %v1832
        %s1865 = sadd.s32 %s312, 33
        %s1866 = sld [smem:[#allocation2 + %s1865]]
        %v1867 = vstv %s1866
        %v1868 = vadd.f32 %v1833, %v1867
        %v1869 = vadd.f32 %v1834, %v1867
        %v1870 = vadd.f32 %v1835, %v1867
        %v1871 = vadd.f32 %v1836, %v1867
        %v1872 = vadd.f32 %v1837, %v1867
        %v1873 = vadd.f32 %v1838, %v1867
        %v1874 = vadd.f32 %v1839, %v1867
        %v1875 = vadd.f32 %v1840, %v1867
        %v1876 = vadd.f32 %v1841, %v1867
        %v1877 = vadd.f32 %v1842, %v1867
        %v1878 = vadd.f32 %v1843, %v1867
        %v1879 = vadd.f32 %v1844, %v1867
        %v1880 = vadd.f32 %v1845, %v1867
        %v1881 = vadd.f32 %v1846, %v1867
        %v1882 = vadd.f32 %v1847, %v1867
        %v1883 = vadd.f32 %v1848, %v1867
        %v1884 = vadd.f32 %v1849, %v1867
        %v1885 = vadd.f32 %v1850, %v1867
        %v1886 = vadd.f32 %v1851, %v1867
        %v1887 = vadd.f32 %v1852, %v1867
        %v1888 = vadd.f32 %v1853, %v1867
        %v1889 = vadd.f32 %v1854, %v1867
        %v1890 = vadd.f32 %v1855, %v1867
        %v1891 = vadd.f32 %v1856, %v1867
        %v1892 = vadd.f32 %v1857, %v1867
        %v1893 = vadd.f32 %v1858, %v1867
        %v1894 = vadd.f32 %v1859, %v1867
        %v1895 = vadd.f32 %v1860, %v1867
        %v1896 = vadd.f32 %v1861, %v1867
        %v1897 = vadd.f32 %v1862, %v1867
        %v1898 = vadd.f32 %v1863, %v1867
        %v1899 = vadd.f32 %v1864, %v1867
        %s1900 = sadd.s32 %s312, 27
        %s1901 = sld [smem:[#allocation2 + %s1900]]
        %v1902 = vstv %s1901
        %v1903 = vmul.f32 %v1902, %v1601
        %v1904 = vmul.f32 %v1902, %v1603
        %v1905 = vmul.f32 %v1902, %v1605
        %v1906 = vmul.f32 %v1902, %v1607
        %v1907 = vmul.f32 %v1902, %v1609
        %v1908 = vmul.f32 %v1902, %v1611
        %v1909 = vmul.f32 %v1902, %v1613
        %v1910 = vmul.f32 %v1902, %v1615
        %v1911 = vmul.f32 %v1902, %v1617
        %v1912 = vmul.f32 %v1902, %v1619
        %v1913 = vmul.f32 %v1902, %v1621
        %v1914 = vmul.f32 %v1902, %v1623
        %v1915 = vmul.f32 %v1902, %v1625
        %v1916 = vmul.f32 %v1902, %v1627
        %v1917 = vmul.f32 %v1902, %v1629
        %v1918 = vmul.f32 %v1902, %v1631
        %v1919 = vmul.f32 %v1902, %v1633
        %v1920 = vmul.f32 %v1902, %v1635
        %v1921 = vmul.f32 %v1902, %v1637
        %v1922 = vmul.f32 %v1902, %v1639
        %v1923 = vmul.f32 %v1902, %v1641
        %v1924 = vmul.f32 %v1902, %v1643
        %v1925 = vmul.f32 %v1902, %v1645
        %v1926 = vmul.f32 %v1902, %v1647
        %v1927 = vmul.f32 %v1902, %v1649
        %v1928 = vmul.f32 %v1902, %v1651
        %v1929 = vmul.f32 %v1902, %v1653
        %v1930 = vmul.f32 %v1902, %v1655
        %v1931 = vmul.f32 %v1902, %v1657
        %v1932 = vmul.f32 %v1902, %v1659
        %v1933 = vmul.f32 %v1902, %v1661
        %v1934 = vmul.f32 %v1902, %v1663
        %s1935 = sadd.s32 %s312, 28
        %s1936 = sld [smem:[#allocation2 + %s1935]]
        %v1937 = vstv %s1936
        %v1938 = vmul.f32 %v1937, %v1664
        %v1939 = vmul.f32 %v1937, %v1665
        %v1940 = vmul.f32 %v1937, %v1666
        %v1941 = vmul.f32 %v1937, %v1667
        %v1942 = vmul.f32 %v1937, %v1668
        %v1943 = vmul.f32 %v1937, %v1669
        %v1944 = vmul.f32 %v1937, %v1670
        %v1945 = vmul.f32 %v1937, %v1671
        %v1946 = vmul.f32 %v1937, %v1672
        %v1947 = vmul.f32 %v1937, %v1673
        %v1948 = vmul.f32 %v1937, %v1674
        %v1949 = vmul.f32 %v1937, %v1675
        %v1950 = vmul.f32 %v1937, %v1676
        %v1951 = vmul.f32 %v1937, %v1677
        %v1952 = vmul.f32 %v1937, %v1678
        %v1953 = vmul.f32 %v1937, %v1679
        %v1954 = vmul.f32 %v1937, %v1680
        %v1955 = vmul.f32 %v1937, %v1681
        %v1956 = vmul.f32 %v1937, %v1682
        %v1957 = vmul.f32 %v1937, %v1683
        %v1958 = vmul.f32 %v1937, %v1684
        %v1959 = vmul.f32 %v1937, %v1685
        %v1960 = vmul.f32 %v1937, %v1686
        %v1961 = vmul.f32 %v1937, %v1687
        %v1962 = vmul.f32 %v1937, %v1688
        %v1963 = vmul.f32 %v1937, %v1689
        %v1964 = vmul.f32 %v1937, %v1690
        %v1965 = vmul.f32 %v1937, %v1691
        %v1966 = vmul.f32 %v1937, %v1692
        %v1967 = vmul.f32 %v1937, %v1693
        %v1968 = vmul.f32 %v1937, %v1694
        %v1969 = vmul.f32 %v1937, %v1695
        %v1970 = vadd.f32 %v1903, %v1938
        %v1971 = vadd.f32 %v1904, %v1939
        %v1972 = vadd.f32 %v1905, %v1940
        %v1973 = vadd.f32 %v1906, %v1941
        %v1974 = vadd.f32 %v1907, %v1942
        %v1975 = vadd.f32 %v1908, %v1943
        %v1976 = vadd.f32 %v1909, %v1944
        %v1977 = vadd.f32 %v1910, %v1945
        %v1978 = vadd.f32 %v1911, %v1946
        %v1979 = vadd.f32 %v1912, %v1947
        %v1980 = vadd.f32 %v1913, %v1948
        %v1981 = vadd.f32 %v1914, %v1949
        %v1982 = vadd.f32 %v1915, %v1950
        %v1983 = vadd.f32 %v1916, %v1951
        %v1984 = vadd.f32 %v1917, %v1952
        %v1985 = vadd.f32 %v1918, %v1953
        %v1986 = vadd.f32 %v1919, %v1954
        %v1987 = vadd.f32 %v1920, %v1955
        %v1988 = vadd.f32 %v1921, %v1956
        %v1989 = vadd.f32 %v1922, %v1957
        %v1990 = vadd.f32 %v1923, %v1958
        %v1991 = vadd.f32 %v1924, %v1959
        %v1992 = vadd.f32 %v1925, %v1960
        %v1993 = vadd.f32 %v1926, %v1961
        %v1994 = vadd.f32 %v1927, %v1962
        %v1995 = vadd.f32 %v1928, %v1963
        %v1996 = vadd.f32 %v1929, %v1964
        %v1997 = vadd.f32 %v1930, %v1965
        %v1998 = vadd.f32 %v1931, %v1966
        %v1999 = vadd.f32 %v1932, %v1967
        %v2000 = vadd.f32 %v1933, %v1968
        %v2001 = vadd.f32 %v1934, %v1969
        %s2002 = sadd.s32 %s312, 29
        %s2003 = sld [smem:[#allocation2 + %s2002]]
        %v2004 = vstv %s2003
        %v2005 = vmul.f32 %v2004, %v1568
        %v2006 = vmul.f32 %v2004, %v1569
        %v2007 = vmul.f32 %v2004, %v1570
        %v2008 = vmul.f32 %v2004, %v1571
        %v2009 = vmul.f32 %v2004, %v1572
        %v2010 = vmul.f32 %v2004, %v1573
        %v2011 = vmul.f32 %v2004, %v1574
        %v2012 = vmul.f32 %v2004, %v1575
        %v2013 = vmul.f32 %v2004, %v1576
        %v2014 = vmul.f32 %v2004, %v1577
        %v2015 = vmul.f32 %v2004, %v1578
        %v2016 = vmul.f32 %v2004, %v1579
        %v2017 = vmul.f32 %v2004, %v1580
        %v2018 = vmul.f32 %v2004, %v1581
        %v2019 = vmul.f32 %v2004, %v1582
        %v2020 = vmul.f32 %v2004, %v1583
        %v2021 = vmul.f32 %v2004, %v1584
        %v2022 = vmul.f32 %v2004, %v1585
        %v2023 = vmul.f32 %v2004, %v1586
        %v2024 = vmul.f32 %v2004, %v1587
        %v2025 = vmul.f32 %v2004, %v1588
        %v2026 = vmul.f32 %v2004, %v1589
        %v2027 = vmul.f32 %v2004, %v1590
        %v2028 = vmul.f32 %v2004, %v1591
        %v2029 = vmul.f32 %v2004, %v1592
        %v2030 = vmul.f32 %v2004, %v1593
        %v2031 = vmul.f32 %v2004, %v1594
        %v2032 = vmul.f32 %v2004, %v1595
        %v2033 = vmul.f32 %v2004, %v1596
        %v2034 = vmul.f32 %v2004, %v1597
        %v2035 = vmul.f32 %v2004, %v1598
        %v2036 = vmul.f32 %v2004, %v1599
        %v2037 = vadd.f32 %v1970, %v2005
        %v2038 = vadd.f32 %v1971, %v2006
        %v2039 = vadd.f32 %v1972, %v2007
        %v2040 = vadd.f32 %v1973, %v2008
        %v2041 = vadd.f32 %v1974, %v2009
        %v2042 = vadd.f32 %v1975, %v2010
        %v2043 = vadd.f32 %v1976, %v2011
        %v2044 = vadd.f32 %v1977, %v2012
        %v2045 = vadd.f32 %v1978, %v2013
        %v2046 = vadd.f32 %v1979, %v2014
        %v2047 = vadd.f32 %v1980, %v2015
        %v2048 = vadd.f32 %v1981, %v2016
        %v2049 = vadd.f32 %v1982, %v2017
        %v2050 = vadd.f32 %v1983, %v2018
        %v2051 = vadd.f32 %v1984, %v2019
        %v2052 = vadd.f32 %v1985, %v2020
        %v2053 = vadd.f32 %v1986, %v2021
        %v2054 = vadd.f32 %v1987, %v2022
        %v2055 = vadd.f32 %v1988, %v2023
        %v2056 = vadd.f32 %v1989, %v2024
        %v2057 = vadd.f32 %v1990, %v2025
        %v2058 = vadd.f32 %v1991, %v2026
        %v2059 = vadd.f32 %v1992, %v2027
        %v2060 = vadd.f32 %v1993, %v2028
        %v2061 = vadd.f32 %v1994, %v2029
        %v2062 = vadd.f32 %v1995, %v2030
        %v2063 = vadd.f32 %v1996, %v2031
        %v2064 = vadd.f32 %v1997, %v2032
        %v2065 = vadd.f32 %v1998, %v2033
        %v2066 = vadd.f32 %v1999, %v2034
        %v2067 = vadd.f32 %v2000, %v2035
        %v2068 = vadd.f32 %v2001, %v2036
        %s2069 = sadd.s32 %s312, 34
        %s2070 = sld [smem:[#allocation2 + %s2069]]
        %v2071 = vstv %s2070
        %v2072 = vadd.f32 %v2037, %v2071
        %v2073 = vadd.f32 %v2038, %v2071
        %v2074 = vadd.f32 %v2039, %v2071
        %v2075 = vadd.f32 %v2040, %v2071
        %v2076 = vadd.f32 %v2041, %v2071
        %v2077 = vadd.f32 %v2042, %v2071
        %v2078 = vadd.f32 %v2043, %v2071
        %v2079 = vadd.f32 %v2044, %v2071
        %v2080 = vadd.f32 %v2045, %v2071
        %v2081 = vadd.f32 %v2046, %v2071
        %v2082 = vadd.f32 %v2047, %v2071
        %v2083 = vadd.f32 %v2048, %v2071
        %v2084 = vadd.f32 %v2049, %v2071
        %v2085 = vadd.f32 %v2050, %v2071
        %v2086 = vadd.f32 %v2051, %v2071
        %v2087 = vadd.f32 %v2052, %v2071
        %v2088 = vadd.f32 %v2053, %v2071
        %v2089 = vadd.f32 %v2054, %v2071
        %v2090 = vadd.f32 %v2055, %v2071
        %v2091 = vadd.f32 %v2056, %v2071
        %v2092 = vadd.f32 %v2057, %v2071
        %v2093 = vadd.f32 %v2058, %v2071
        %v2094 = vadd.f32 %v2059, %v2071
        %v2095 = vadd.f32 %v2060, %v2071
        %v2096 = vadd.f32 %v2061, %v2071
        %v2097 = vadd.f32 %v2062, %v2071
        %v2098 = vadd.f32 %v2063, %v2071
        %v2099 = vadd.f32 %v2064, %v2071
        %v2100 = vadd.f32 %v2065, %v2071
        %v2101 = vadd.f32 %v2066, %v2071
        %v2102 = vadd.f32 %v2067, %v2071
        %v2103 = vadd.f32 %v2068, %v2071
        %vm2104 = vcmp.lt.f32.partialorder %v2072, 128.0
        %vm2105 = vcmp.lt.f32.partialorder %v2073, 128.0
        %vm2106 = vcmp.lt.f32.partialorder %v2074, 128.0
        %vm2107 = vcmp.lt.f32.partialorder %v2075, 128.0
        %vm2108 = vcmp.lt.f32.partialorder %v2076, 128.0
        %vm2109 = vcmp.lt.f32.partialorder %v2077, 128.0
        %vm2110 = vcmp.lt.f32.partialorder %v2078, 128.0
        %vm2111 = vcmp.lt.f32.partialorder %v2079, 128.0
        %vm2112 = vcmp.lt.f32.partialorder %v2080, 128.0
        %vm2113 = vcmp.lt.f32.partialorder %v2081, 128.0
        %vm2114 = vcmp.lt.f32.partialorder %v2082, 128.0
        %vm2115 = vcmp.lt.f32.partialorder %v2083, 128.0
        %vm2116 = vcmp.lt.f32.partialorder %v2084, 128.0
        %vm2117 = vcmp.lt.f32.partialorder %v2085, 128.0
        %vm2118 = vcmp.lt.f32.partialorder %v2086, 128.0
        %vm2119 = vcmp.lt.f32.partialorder %v2087, 128.0
        %vm2120 = vcmp.lt.f32.partialorder %v2088, 128.0
        %vm2121 = vcmp.lt.f32.partialorder %v2089, 128.0
        %vm2122 = vcmp.lt.f32.partialorder %v2090, 128.0
        %vm2123 = vcmp.lt.f32.partialorder %v2091, 128.0
        %vm2124 = vcmp.lt.f32.partialorder %v2092, 128.0
        %vm2125 = vcmp.lt.f32.partialorder %v2093, 128.0
        %vm2126 = vcmp.lt.f32.partialorder %v2094, 128.0
        %vm2127 = vcmp.lt.f32.partialorder %v2095, 128.0
        %vm2128 = vcmp.lt.f32.partialorder %v2096, 128.0
        %vm2129 = vcmp.lt.f32.partialorder %v2097, 128.0
        %vm2130 = vcmp.lt.f32.partialorder %v2098, 128.0
        %vm2131 = vcmp.lt.f32.partialorder %v2099, 128.0
        %vm2132 = vcmp.lt.f32.partialorder %v2100, 128.0
        %vm2133 = vcmp.lt.f32.partialorder %v2101, 128.0
        %vm2134 = vcmp.lt.f32.partialorder %v2102, 128.0
        %vm2135 = vcmp.lt.f32.partialorder %v2103, 128.0
        %vm2136 = vcmp.ge.f32.partialorder %v2072, 0.0
        %vm2137 = vcmp.ge.f32.partialorder %v2073, 0.0
        %vm2138 = vcmp.ge.f32.partialorder %v2074, 0.0
        %vm2139 = vcmp.ge.f32.partialorder %v2075, 0.0
        %vm2140 = vcmp.ge.f32.partialorder %v2076, 0.0
        %vm2141 = vcmp.ge.f32.partialorder %v2077, 0.0
        %vm2142 = vcmp.ge.f32.partialorder %v2078, 0.0
        %vm2143 = vcmp.ge.f32.partialorder %v2079, 0.0
        %vm2144 = vcmp.ge.f32.partialorder %v2080, 0.0
        %vm2145 = vcmp.ge.f32.partialorder %v2081, 0.0
        %vm2146 = vcmp.ge.f32.partialorder %v2082, 0.0
        %vm2147 = vcmp.ge.f32.partialorder %v2083, 0.0
        %vm2148 = vcmp.ge.f32.partialorder %v2084, 0.0
        %vm2149 = vcmp.ge.f32.partialorder %v2085, 0.0
        %vm2150 = vcmp.ge.f32.partialorder %v2086, 0.0
        %vm2151 = vcmp.ge.f32.partialorder %v2087, 0.0
        %vm2152 = vcmp.ge.f32.partialorder %v2088, 0.0
        %vm2153 = vcmp.ge.f32.partialorder %v2089, 0.0
        %vm2154 = vcmp.ge.f32.partialorder %v2090, 0.0
        %vm2155 = vcmp.ge.f32.partialorder %v2091, 0.0
        %vm2156 = vcmp.ge.f32.partialorder %v2092, 0.0
        %vm2157 = vcmp.ge.f32.partialorder %v2093, 0.0
        %vm2158 = vcmp.ge.f32.partialorder %v2094, 0.0
        %vm2159 = vcmp.ge.f32.partialorder %v2095, 0.0
        %vm2160 = vcmp.ge.f32.partialorder %v2096, 0.0
        %vm2161 = vcmp.ge.f32.partialorder %v2097, 0.0
        %vm2162 = vcmp.ge.f32.partialorder %v2098, 0.0
        %vm2163 = vcmp.ge.f32.partialorder %v2099, 0.0
        %vm2164 = vcmp.ge.f32.partialorder %v2100, 0.0
        %vm2165 = vcmp.ge.f32.partialorder %v2101, 0.0
        %vm2166 = vcmp.ge.f32.partialorder %v2102, 0.0
        %vm2167 = vcmp.ge.f32.partialorder %v2103, 0.0
        %vm2168 = vmand %vm2104, %vm2136
        %vm2169 = vmand %vm2105, %vm2137
        %vm2170 = vmand %vm2106, %vm2138
        %vm2171 = vmand %vm2107, %vm2139
        %vm2172 = vmand %vm2108, %vm2140
        %vm2173 = vmand %vm2109, %vm2141
        %vm2174 = vmand %vm2110, %vm2142
        %vm2175 = vmand %vm2111, %vm2143
        %vm2176 = vmand %vm2112, %vm2144
        %vm2177 = vmand %vm2113, %vm2145
        %vm2178 = vmand %vm2114, %vm2146
        %vm2179 = vmand %vm2115, %vm2147
        %vm2180 = vmand %vm2116, %vm2148
        %vm2181 = vmand %vm2117, %vm2149
        %vm2182 = vmand %vm2118, %vm2150
        %vm2183 = vmand %vm2119, %vm2151
        %vm2184 = vmand %vm2120, %vm2152
        %vm2185 = vmand %vm2121, %vm2153
        %vm2186 = vmand %vm2122, %vm2154
        %vm2187 = vmand %vm2123, %vm2155
        %vm2188 = vmand %vm2124, %vm2156
        %vm2189 = vmand %vm2125, %vm2157
        %vm2190 = vmand %vm2126, %vm2158
        %vm2191 = vmand %vm2127, %vm2159
        %vm2192 = vmand %vm2128, %vm2160
        %vm2193 = vmand %vm2129, %vm2161
        %vm2194 = vmand %vm2130, %vm2162
        %vm2195 = vmand %vm2131, %vm2163
        %vm2196 = vmand %vm2132, %vm2164
        %vm2197 = vmand %vm2133, %vm2165
        %vm2198 = vmand %vm2134, %vm2166
        %vm2199 = vmand %vm2135, %vm2167
        %vm2200 = vcmp.lt.f32.partialorder %v1868, 128.0
        %vm2201 = vcmp.lt.f32.partialorder %v1869, 128.0
        %vm2202 = vcmp.lt.f32.partialorder %v1870, 128.0
        %vm2203 = vcmp.lt.f32.partialorder %v1871, 128.0
        %vm2204 = vcmp.lt.f32.partialorder %v1872, 128.0
        %vm2205 = vcmp.lt.f32.partialorder %v1873, 128.0
        %vm2206 = vcmp.lt.f32.partialorder %v1874, 128.0
        %vm2207 = vcmp.lt.f32.partialorder %v1875, 128.0
        %vm2208 = vcmp.lt.f32.partialorder %v1876, 128.0
        %vm2209 = vcmp.lt.f32.partialorder %v1877, 128.0
        %vm2210 = vcmp.lt.f32.partialorder %v1878, 128.0
        %vm2211 = vcmp.lt.f32.partialorder %v1879, 128.0
        %vm2212 = vcmp.lt.f32.partialorder %v1880, 128.0
        %vm2213 = vcmp.lt.f32.partialorder %v1881, 128.0
        %vm2214 = vcmp.lt.f32.partialorder %v1882, 128.0
        %vm2215 = vcmp.lt.f32.partialorder %v1883, 128.0
        %vm2216 = vcmp.lt.f32.partialorder %v1884, 128.0
        %vm2217 = vcmp.lt.f32.partialorder %v1885, 128.0
        %vm2218 = vcmp.lt.f32.partialorder %v1886, 128.0
        %vm2219 = vcmp.lt.f32.partialorder %v1887, 128.0
        %vm2220 = vcmp.lt.f32.partialorder %v1888, 128.0
        %vm2221 = vcmp.lt.f32.partialorder %v1889, 128.0
        %vm2222 = vcmp.lt.f32.partialorder %v1890, 128.0
        %vm2223 = vcmp.lt.f32.partialorder %v1891, 128.0
        %vm2224 = vcmp.lt.f32.partialorder %v1892, 128.0
        %vm2225 = vcmp.lt.f32.partialorder %v1893, 128.0
        %vm2226 = vcmp.lt.f32.partialorder %v1894, 128.0
        %vm2227 = vcmp.lt.f32.partialorder %v1895, 128.0
        %vm2228 = vcmp.lt.f32.partialorder %v1896, 128.0
        %vm2229 = vcmp.lt.f32.partialorder %v1897, 128.0
        %vm2230 = vcmp.lt.f32.partialorder %v1898, 128.0
        %vm2231 = vcmp.lt.f32.partialorder %v1899, 128.0
        %vm2232 = vmand %vm2168, %vm2200
        %vm2233 = vmand %vm2169, %vm2201
        %vm2234 = vmand %vm2170, %vm2202
        %vm2235 = vmand %vm2171, %vm2203
        %vm2236 = vmand %vm2172, %vm2204
        %vm2237 = vmand %vm2173, %vm2205
        %vm2238 = vmand %vm2174, %vm2206
        %vm2239 = vmand %vm2175, %vm2207
        %vm2240 = vmand %vm2176, %vm2208
        %vm2241 = vmand %vm2177, %vm2209
        %vm2242 = vmand %vm2178, %vm2210
        %vm2243 = vmand %vm2179, %vm2211
        %vm2244 = vmand %vm2180, %vm2212
        %vm2245 = vmand %vm2181, %vm2213
        %vm2246 = vmand %vm2182, %vm2214
        %vm2247 = vmand %vm2183, %vm2215
        %vm2248 = vmand %vm2184, %vm2216
        %vm2249 = vmand %vm2185, %vm2217
        %vm2250 = vmand %vm2186, %vm2218
        %vm2251 = vmand %vm2187, %vm2219
        %vm2252 = vmand %vm2188, %vm2220
        %vm2253 = vmand %vm2189, %vm2221
        %vm2254 = vmand %vm2190, %vm2222
        %vm2255 = vmand %vm2191, %vm2223
        %vm2256 = vmand %vm2192, %vm2224
        %vm2257 = vmand %vm2193, %vm2225
        %vm2258 = vmand %vm2194, %vm2226
        %vm2259 = vmand %vm2195, %vm2227
        %vm2260 = vmand %vm2196, %vm2228
        %vm2261 = vmand %vm2197, %vm2229
        %vm2262 = vmand %vm2198, %vm2230
        %vm2263 = vmand %vm2199, %vm2231
        %vm2264 = vcmp.ge.f32.partialorder %v1868, 0.0
        %vm2265 = vcmp.ge.f32.partialorder %v1869, 0.0
        %vm2266 = vcmp.ge.f32.partialorder %v1870, 0.0
        %vm2267 = vcmp.ge.f32.partialorder %v1871, 0.0
        %vm2268 = vcmp.ge.f32.partialorder %v1872, 0.0
        %vm2269 = vcmp.ge.f32.partialorder %v1873, 0.0
        %vm2270 = vcmp.ge.f32.partialorder %v1874, 0.0
        %vm2271 = vcmp.ge.f32.partialorder %v1875, 0.0
        %vm2272 = vcmp.ge.f32.partialorder %v1876, 0.0
        %vm2273 = vcmp.ge.f32.partialorder %v1877, 0.0
        %vm2274 = vcmp.ge.f32.partialorder %v1878, 0.0
        %vm2275 = vcmp.ge.f32.partialorder %v1879, 0.0
        %vm2276 = vcmp.ge.f32.partialorder %v1880, 0.0
        %vm2277 = vcmp.ge.f32.partialorder %v1881, 0.0
        %vm2278 = vcmp.ge.f32.partialorder %v1882, 0.0
        %vm2279 = vcmp.ge.f32.partialorder %v1883, 0.0
        %vm2280 = vcmp.ge.f32.partialorder %v1884, 0.0
        %vm2281 = vcmp.ge.f32.partialorder %v1885, 0.0
        %vm2282 = vcmp.ge.f32.partialorder %v1886, 0.0
        %vm2283 = vcmp.ge.f32.partialorder %v1887, 0.0
        %vm2284 = vcmp.ge.f32.partialorder %v1888, 0.0
        %vm2285 = vcmp.ge.f32.partialorder %v1889, 0.0
        %vm2286 = vcmp.ge.f32.partialorder %v1890, 0.0
        %vm2287 = vcmp.ge.f32.partialorder %v1891, 0.0
        %vm2288 = vcmp.ge.f32.partialorder %v1892, 0.0
        %vm2289 = vcmp.ge.f32.partialorder %v1893, 0.0
        %vm2290 = vcmp.ge.f32.partialorder %v1894, 0.0
        %vm2291 = vcmp.ge.f32.partialorder %v1895, 0.0
        %vm2292 = vcmp.ge.f32.partialorder %v1896, 0.0
        %vm2293 = vcmp.ge.f32.partialorder %v1897, 0.0
        %vm2294 = vcmp.ge.f32.partialorder %v1898, 0.0
        %vm2295 = vcmp.ge.f32.partialorder %v1899, 0.0
        %vm2296 = vmand %vm2232, %vm2264
        %vm2297 = vmand %vm2233, %vm2265
        %vm2298 = vmand %vm2234, %vm2266
        %vm2299 = vmand %vm2235, %vm2267
        %vm2300 = vmand %vm2236, %vm2268
        %vm2301 = vmand %vm2237, %vm2269
        %vm2302 = vmand %vm2238, %vm2270
        %vm2303 = vmand %vm2239, %vm2271
        %vm2304 = vmand %vm2240, %vm2272
        %vm2305 = vmand %vm2241, %vm2273
        %vm2306 = vmand %vm2242, %vm2274
        %vm2307 = vmand %vm2243, %vm2275
        %vm2308 = vmand %vm2244, %vm2276
        %vm2309 = vmand %vm2245, %vm2277
        %vm2310 = vmand %vm2246, %vm2278
        %vm2311 = vmand %vm2247, %vm2279
        %vm2312 = vmand %vm2248, %vm2280
        %vm2313 = vmand %vm2249, %vm2281
        %vm2314 = vmand %vm2250, %vm2282
        %vm2315 = vmand %vm2251, %vm2283
        %vm2316 = vmand %vm2252, %vm2284
        %vm2317 = vmand %vm2253, %vm2285
        %vm2318 = vmand %vm2254, %vm2286
        %vm2319 = vmand %vm2255, %vm2287
        %vm2320 = vmand %vm2256, %vm2288
        %vm2321 = vmand %vm2257, %vm2289
        %vm2322 = vmand %vm2258, %vm2290
        %vm2323 = vmand %vm2259, %vm2291
        %vm2324 = vmand %vm2260, %vm2292
        %vm2325 = vmand %vm2261, %vm2293
        %vm2326 = vmand %vm2262, %vm2294
        %vm2327 = vmand %vm2263, %vm2295
        %v2328 = vmul.f32 %v2072, 0.125
        %v2329 = vmul.f32 %v2073, 0.125
        %v2330 = vmul.f32 %v2074, 0.125
        %v2331 = vmul.f32 %v2075, 0.125
        %v2332 = vmul.f32 %v2076, 0.125
        %v2333 = vmul.f32 %v2077, 0.125
        %v2334 = vmul.f32 %v2078, 0.125
        %v2335 = vmul.f32 %v2079, 0.125
        %v2336 = vmul.f32 %v2080, 0.125
        %v2337 = vmul.f32 %v2081, 0.125
        %v2338 = vmul.f32 %v2082, 0.125
        %v2339 = vmul.f32 %v2083, 0.125
        %v2340 = vmul.f32 %v2084, 0.125
        %v2341 = vmul.f32 %v2085, 0.125
        %v2342 = vmul.f32 %v2086, 0.125
        %v2343 = vmul.f32 %v2087, 0.125
        %v2344 = vmul.f32 %v2088, 0.125
        %v2345 = vmul.f32 %v2089, 0.125
        %v2346 = vmul.f32 %v2090, 0.125
        %v2347 = vmul.f32 %v2091, 0.125
        %v2348 = vmul.f32 %v2092, 0.125
        %v2349 = vmul.f32 %v2093, 0.125
        %v2350 = vmul.f32 %v2094, 0.125
        %v2351 = vmul.f32 %v2095, 0.125
        %v2352 = vmul.f32 %v2096, 0.125
        %v2353 = vmul.f32 %v2097, 0.125
        %v2354 = vmul.f32 %v2098, 0.125
        %v2355 = vmul.f32 %v2099, 0.125
        %v2356 = vmul.f32 %v2100, 0.125
        %v2357 = vmul.f32 %v2101, 0.125
        %v2358 = vmul.f32 %v2102, 0.125
        %v2359 = vmul.f32 %v2103, 0.125
        %v2360 = vmul.f32 %v1868, 0.125
        %v2361 = vmul.f32 %v1869, 0.125
        %v2362 = vmul.f32 %v1870, 0.125
        %v2363 = vmul.f32 %v1871, 0.125
        %v2364 = vmul.f32 %v1872, 0.125
        %v2365 = vmul.f32 %v1873, 0.125
        %v2366 = vmul.f32 %v1874, 0.125
        %v2367 = vmul.f32 %v1875, 0.125
        %v2368 = vmul.f32 %v1876, 0.125
        %v2369 = vmul.f32 %v1877, 0.125
        %v2370 = vmul.f32 %v1878, 0.125
        %v2371 = vmul.f32 %v1879, 0.125
        %v2372 = vmul.f32 %v1880, 0.125
        %v2373 = vmul.f32 %v1881, 0.125
        %v2374 = vmul.f32 %v1882, 0.125
        %v2375 = vmul.f32 %v1883, 0.125
        %v2376 = vmul.f32 %v1884, 0.125
        %v2377 = vmul.f32 %v1885, 0.125
        %v2378 = vmul.f32 %v1886, 0.125
        %v2379 = vmul.f32 %v1887, 0.125
        %v2380 = vmul.f32 %v1888, 0.125
        %v2381 = vmul.f32 %v1889, 0.125
        %v2382 = vmul.f32 %v1890, 0.125
        %v2383 = vmul.f32 %v1891, 0.125
        %v2384 = vmul.f32 %v1892, 0.125
        %v2385 = vmul.f32 %v1893, 0.125
        %v2386 = vmul.f32 %v1894, 0.125
        %v2387 = vmul.f32 %v1895, 0.125
        %v2388 = vmul.f32 %v1896, 0.125
        %v2389 = vmul.f32 %v1897, 0.125
        %v2390 = vmul.f32 %v1898, 0.125
        %v2391 = vmul.f32 %v1899, 0.125
        %v2392 = vmul.f32 %v2328, %v1568
        %v2393 = vmul.f32 %v2329, %v1569
        %v2394 = vmul.f32 %v2330, %v1570
        %v2395 = vmul.f32 %v2331, %v1571
        %v2396 = vmul.f32 %v2332, %v1572
        %v2397 = vmul.f32 %v2333, %v1573
        %v2398 = vmul.f32 %v2334, %v1574
        %v2399 = vmul.f32 %v2335, %v1575
        %v2400 = vmul.f32 %v2336, %v1576
        %v2401 = vmul.f32 %v2337, %v1577
        %v2402 = vmul.f32 %v2338, %v1578
        %v2403 = vmul.f32 %v2339, %v1579
        %v2404 = vmul.f32 %v2340, %v1580
        %v2405 = vmul.f32 %v2341, %v1581
        %v2406 = vmul.f32 %v2342, %v1582
        %v2407 = vmul.f32 %v2343, %v1583
        %v2408 = vmul.f32 %v2344, %v1584
        %v2409 = vmul.f32 %v2345, %v1585
        %v2410 = vmul.f32 %v2346, %v1586
        %v2411 = vmul.f32 %v2347, %v1587
        %v2412 = vmul.f32 %v2348, %v1588
        %v2413 = vmul.f32 %v2349, %v1589
        %v2414 = vmul.f32 %v2350, %v1590
        %v2415 = vmul.f32 %v2351, %v1591
        %v2416 = vmul.f32 %v2352, %v1592
        %v2417 = vmul.f32 %v2353, %v1593
        %v2418 = vmul.f32 %v2354, %v1594
        %v2419 = vmul.f32 %v2355, %v1595
        %v2420 = vmul.f32 %v2356, %v1596
        %v2421 = vmul.f32 %v2357, %v1597
        %v2422 = vmul.f32 %v2358, %v1598
        %v2423 = vmul.f32 %v2359, %v1599
        %v2424 = vmul.f32 %v2360, %v1568
        %v2425 = vmul.f32 %v2361, %v1569
        %v2426 = vmul.f32 %v2362, %v1570
        %v2427 = vmul.f32 %v2363, %v1571
        %v2428 = vmul.f32 %v2364, %v1572
        %v2429 = vmul.f32 %v2365, %v1573
        %v2430 = vmul.f32 %v2366, %v1574
        %v2431 = vmul.f32 %v2367, %v1575
        %v2432 = vmul.f32 %v2368, %v1576
        %v2433 = vmul.f32 %v2369, %v1577
        %v2434 = vmul.f32 %v2370, %v1578
        %v2435 = vmul.f32 %v2371, %v1579
        %v2436 = vmul.f32 %v2372, %v1580
        %v2437 = vmul.f32 %v2373, %v1581
        %v2438 = vmul.f32 %v2374, %v1582
        %v2439 = vmul.f32 %v2375, %v1583
        %v2440 = vmul.f32 %v2376, %v1584
        %v2441 = vmul.f32 %v2377, %v1585
        %v2442 = vmul.f32 %v2378, %v1586
        %v2443 = vmul.f32 %v2379, %v1587
        %v2444 = vmul.f32 %v2380, %v1588
        %v2445 = vmul.f32 %v2381, %v1589
        %v2446 = vmul.f32 %v2382, %v1590
        %v2447 = vmul.f32 %v2383, %v1591
        %v2448 = vmul.f32 %v2384, %v1592
        %v2449 = vmul.f32 %v2385, %v1593
        %v2450 = vmul.f32 %v2386, %v1594
        %v2451 = vmul.f32 %v2387, %v1595
        %v2452 = vmul.f32 %v2388, %v1596
        %v2453 = vmul.f32 %v2389, %v1597
        %v2454 = vmul.f32 %v2390, %v1598
        %v2455 = vmul.f32 %v2391, %v1599
        %s2456 = sadd.s32 %s312, 45
        %s2457 = sld [smem:[#allocation2 + %s2456]]
        %v2458 = vstv %s2457
        %v2459 = vsub.f32 %v2392, %v2458
        %v2460 = vsub.f32 %v2393, %v2458
        %v2461 = vsub.f32 %v2394, %v2458
        %v2462 = vsub.f32 %v2395, %v2458
        %v2463 = vsub.f32 %v2396, %v2458
        %v2464 = vsub.f32 %v2397, %v2458
        %v2465 = vsub.f32 %v2398, %v2458
        %v2466 = vsub.f32 %v2399, %v2458
        %v2467 = vsub.f32 %v2400, %v2458
        %v2468 = vsub.f32 %v2401, %v2458
        %v2469 = vsub.f32 %v2402, %v2458
        %v2470 = vsub.f32 %v2403, %v2458
        %v2471 = vsub.f32 %v2404, %v2458
        %v2472 = vsub.f32 %v2405, %v2458
        %v2473 = vsub.f32 %v2406, %v2458
        %v2474 = vsub.f32 %v2407, %v2458
        %v2475 = vsub.f32 %v2408, %v2458
        %v2476 = vsub.f32 %v2409, %v2458
        %v2477 = vsub.f32 %v2410, %v2458
        %v2478 = vsub.f32 %v2411, %v2458
        %v2479 = vsub.f32 %v2412, %v2458
        %v2480 = vsub.f32 %v2413, %v2458
        %v2481 = vsub.f32 %v2414, %v2458
        %v2482 = vsub.f32 %v2415, %v2458
        %v2483 = vsub.f32 %v2416, %v2458
        %v2484 = vsub.f32 %v2417, %v2458
        %v2485 = vsub.f32 %v2418, %v2458
        %v2486 = vsub.f32 %v2419, %v2458
        %v2487 = vsub.f32 %v2420, %v2458
        %v2488 = vsub.f32 %v2421, %v2458
        %v2489 = vsub.f32 %v2422, %v2458
        %v2490 = vsub.f32 %v2423, %v2458
        %s2491 = sadd.s32 %s312, 46
        %s2492 = sld [smem:[#allocation2 + %s2491]]
        %v2493 = vstv %s2492
        %v2494 = vsub.f32 %v2424, %v2493
        %v2495 = vsub.f32 %v2425, %v2493
        %v2496 = vsub.f32 %v2426, %v2493
        %v2497 = vsub.f32 %v2427, %v2493
        %v2498 = vsub.f32 %v2428, %v2493
        %v2499 = vsub.f32 %v2429, %v2493
        %v2500 = vsub.f32 %v2430, %v2493
        %v2501 = vsub.f32 %v2431, %v2493
        %v2502 = vsub.f32 %v2432, %v2493
        %v2503 = vsub.f32 %v2433, %v2493
        %v2504 = vsub.f32 %v2434, %v2493
        %v2505 = vsub.f32 %v2435, %v2493
        %v2506 = vsub.f32 %v2436, %v2493
        %v2507 = vsub.f32 %v2437, %v2493
        %v2508 = vsub.f32 %v2438, %v2493
        %v2509 = vsub.f32 %v2439, %v2493
        %v2510 = vsub.f32 %v2440, %v2493
        %v2511 = vsub.f32 %v2441, %v2493
        %v2512 = vsub.f32 %v2442, %v2493
        %v2513 = vsub.f32 %v2443, %v2493
        %v2514 = vsub.f32 %v2444, %v2493
        %v2515 = vsub.f32 %v2445, %v2493
        %v2516 = vsub.f32 %v2446, %v2493
        %v2517 = vsub.f32 %v2447, %v2493
        %v2518 = vsub.f32 %v2448, %v2493
        %v2519 = vsub.f32 %v2449, %v2493
        %v2520 = vsub.f32 %v2450, %v2493
        %v2521 = vsub.f32 %v2451, %v2493
        %v2522 = vsub.f32 %v2452, %v2493
        %v2523 = vsub.f32 %v2453, %v2493
        %v2524 = vsub.f32 %v2454, %v2493
        %v2525 = vsub.f32 %v2455, %v2493
        %s2526 = sadd.s32 %s312, 47
        %s2527 = sld [smem:[#allocation2 + %s2526]]
        %v2528 = vstv %s2527
        %v2529 = vsub.f32 %v1568, %v2528
        %v2530 = vsub.f32 %v1569, %v2528
        %v2531 = vsub.f32 %v1570, %v2528
        %v2532 = vsub.f32 %v1571, %v2528
        %v2533 = vsub.f32 %v1572, %v2528
        %v2534 = vsub.f32 %v1573, %v2528
        %v2535 = vsub.f32 %v1574, %v2528
        %v2536 = vsub.f32 %v1575, %v2528
        %v2537 = vsub.f32 %v1576, %v2528
        %v2538 = vsub.f32 %v1577, %v2528
        %v2539 = vsub.f32 %v1578, %v2528
        %v2540 = vsub.f32 %v1579, %v2528
        %v2541 = vsub.f32 %v1580, %v2528
        %v2542 = vsub.f32 %v1581, %v2528
        %v2543 = vsub.f32 %v1582, %v2528
        %v2544 = vsub.f32 %v1583, %v2528
        %v2545 = vsub.f32 %v1584, %v2528
        %v2546 = vsub.f32 %v1585, %v2528
        %v2547 = vsub.f32 %v1586, %v2528
        %v2548 = vsub.f32 %v1587, %v2528
        %v2549 = vsub.f32 %v1588, %v2528
        %v2550 = vsub.f32 %v1589, %v2528
        %v2551 = vsub.f32 %v1590, %v2528
        %v2552 = vsub.f32 %v1591, %v2528
        %v2553 = vsub.f32 %v1592, %v2528
        %v2554 = vsub.f32 %v1593, %v2528
        %v2555 = vsub.f32 %v1594, %v2528
        %v2556 = vsub.f32 %v1595, %v2528
        %v2557 = vsub.f32 %v1596, %v2528
        %v2558 = vsub.f32 %v1597, %v2528
        %v2559 = vsub.f32 %v1598, %v2528
        %v2560 = vsub.f32 %v1599, %v2528
        %s2561 = sadd.s32 %s312, 36
        %s2562 = sld [smem:[#allocation2 + %s2561]]
        %v2563 = vstv %s2562
        %v2564 = vmul.f32 %v2563, %v2459
        %v2565 = vmul.f32 %v2563, %v2460
        %v2566 = vmul.f32 %v2563, %v2461
        %v2567 = vmul.f32 %v2563, %v2462
        %v2568 = vmul.f32 %v2563, %v2463
        %v2569 = vmul.f32 %v2563, %v2464
        %v2570 = vmul.f32 %v2563, %v2465
        %v2571 = vmul.f32 %v2563, %v2466
        %v2572 = vmul.f32 %v2563, %v2467
        %v2573 = vmul.f32 %v2563, %v2468
        %v2574 = vmul.f32 %v2563, %v2469
        %v2575 = vmul.f32 %v2563, %v2470
        %v2576 = vmul.f32 %v2563, %v2471
        %v2577 = vmul.f32 %v2563, %v2472
        %v2578 = vmul.f32 %v2563, %v2473
        %v2579 = vmul.f32 %v2563, %v2474
        %v2580 = vmul.f32 %v2563, %v2475
        %v2581 = vmul.f32 %v2563, %v2476
        %v2582 = vmul.f32 %v2563, %v2477
        %v2583 = vmul.f32 %v2563, %v2478
        %v2584 = vmul.f32 %v2563, %v2479
        %v2585 = vmul.f32 %v2563, %v2480
        %v2586 = vmul.f32 %v2563, %v2481
        %v2587 = vmul.f32 %v2563, %v2482
        %v2588 = vmul.f32 %v2563, %v2483
        %v2589 = vmul.f32 %v2563, %v2484
        %v2590 = vmul.f32 %v2563, %v2485
        %v2591 = vmul.f32 %v2563, %v2486
        %v2592 = vmul.f32 %v2563, %v2487
        %v2593 = vmul.f32 %v2563, %v2488
        %v2594 = vmul.f32 %v2563, %v2489
        %v2595 = vmul.f32 %v2563, %v2490
        %s2596 = sadd.s32 %s312, 37
        %s2597 = sld [smem:[#allocation2 + %s2596]]
        %v2598 = vstv %s2597
        %v2599 = vmul.f32 %v2598, %v2494
        %v2600 = vmul.f32 %v2598, %v2495
        %v2601 = vmul.f32 %v2598, %v2496
        %v2602 = vmul.f32 %v2598, %v2497
        %v2603 = vmul.f32 %v2598, %v2498
        %v2604 = vmul.f32 %v2598, %v2499
        %v2605 = vmul.f32 %v2598, %v2500
        %v2606 = vmul.f32 %v2598, %v2501
        %v2607 = vmul.f32 %v2598, %v2502
        %v2608 = vmul.f32 %v2598, %v2503
        %v2609 = vmul.f32 %v2598, %v2504
        %v2610 = vmul.f32 %v2598, %v2505
        %v2611 = vmul.f32 %v2598, %v2506
        %v2612 = vmul.f32 %v2598, %v2507
        %v2613 = vmul.f32 %v2598, %v2508
        %v2614 = vmul.f32 %v2598, %v2509
        %v2615 = vmul.f32 %v2598, %v2510
        %v2616 = vmul.f32 %v2598, %v2511
        %v2617 = vmul.f32 %v2598, %v2512
        %v2618 = vmul.f32 %v2598, %v2513
        %v2619 = vmul.f32 %v2598, %v2514
        %v2620 = vmul.f32 %v2598, %v2515
        %v2621 = vmul.f32 %v2598, %v2516
        %v2622 = vmul.f32 %v2598, %v2517
        %v2623 = vmul.f32 %v2598, %v2518
        %v2624 = vmul.f32 %v2598, %v2519
        %v2625 = vmul.f32 %v2598, %v2520
        %v2626 = vmul.f32 %v2598, %v2521
        %v2627 = vmul.f32 %v2598, %v2522
        %v2628 = vmul.f32 %v2598, %v2523
        %v2629 = vmul.f32 %v2598, %v2524
        %v2630 = vmul.f32 %v2598, %v2525
        %v2631 = vadd.f32 %v2564, %v2599
        %v2632 = vadd.f32 %v2565, %v2600
        %v2633 = vadd.f32 %v2566, %v2601
        %v2634 = vadd.f32 %v2567, %v2602
        %v2635 = vadd.f32 %v2568, %v2603
        %v2636 = vadd.f32 %v2569, %v2604
        %v2637 = vadd.f32 %v2570, %v2605
        %v2638 = vadd.f32 %v2571, %v2606
        %v2639 = vadd.f32 %v2572, %v2607
        %v2640 = vadd.f32 %v2573, %v2608
        %v2641 = vadd.f32 %v2574, %v2609
        %v2642 = vadd.f32 %v2575, %v2610
        %v2643 = vadd.f32 %v2576, %v2611
        %v2644 = vadd.f32 %v2577, %v2612
        %v2645 = vadd.f32 %v2578, %v2613
        %v2646 = vadd.f32 %v2579, %v2614
        %v2647 = vadd.f32 %v2580, %v2615
        %v2648 = vadd.f32 %v2581, %v2616
        %v2649 = vadd.f32 %v2582, %v2617
        %v2650 = vadd.f32 %v2583, %v2618
        %v2651 = vadd.f32 %v2584, %v2619
        %v2652 = vadd.f32 %v2585, %v2620
        %v2653 = vadd.f32 %v2586, %v2621
        %v2654 = vadd.f32 %v2587, %v2622
        %v2655 = vadd.f32 %v2588, %v2623
        %v2656 = vadd.f32 %v2589, %v2624
        %v2657 = vadd.f32 %v2590, %v2625
        %v2658 = vadd.f32 %v2591, %v2626
        %v2659 = vadd.f32 %v2592, %v2627
        %v2660 = vadd.f32 %v2593, %v2628
        %v2661 = vadd.f32 %v2594, %v2629
        %v2662 = vadd.f32 %v2595, %v2630
        %s2663 = sadd.s32 %s312, 38
        %s2664 = sld [smem:[#allocation2 + %s2663]]
        %v2665 = vstv %s2664
        %v2666 = vmul.f32 %v2665, %v2529
        %v2667 = vmul.f32 %v2665, %v2530
        %v2668 = vmul.f32 %v2665, %v2531
        %v2669 = vmul.f32 %v2665, %v2532
        %v2670 = vmul.f32 %v2665, %v2533
        %v2671 = vmul.f32 %v2665, %v2534
        %v2672 = vmul.f32 %v2665, %v2535
        %v2673 = vmul.f32 %v2665, %v2536
        %v2674 = vmul.f32 %v2665, %v2537
        %v2675 = vmul.f32 %v2665, %v2538
        %v2676 = vmul.f32 %v2665, %v2539
        %v2677 = vmul.f32 %v2665, %v2540
        %v2678 = vmul.f32 %v2665, %v2541
        %v2679 = vmul.f32 %v2665, %v2542
        %v2680 = vmul.f32 %v2665, %v2543
        %v2681 = vmul.f32 %v2665, %v2544
        %v2682 = vmul.f32 %v2665, %v2545
        %v2683 = vmul.f32 %v2665, %v2546
        %v2684 = vmul.f32 %v2665, %v2547
        %v2685 = vmul.f32 %v2665, %v2548
        %v2686 = vmul.f32 %v2665, %v2549
        %v2687 = vmul.f32 %v2665, %v2550
        %v2688 = vmul.f32 %v2665, %v2551
        %v2689 = vmul.f32 %v2665, %v2552
        %v2690 = vmul.f32 %v2665, %v2553
        %v2691 = vmul.f32 %v2665, %v2554
        %v2692 = vmul.f32 %v2665, %v2555
        %v2693 = vmul.f32 %v2665, %v2556
        %v2694 = vmul.f32 %v2665, %v2557
        %v2695 = vmul.f32 %v2665, %v2558
        %v2696 = vmul.f32 %v2665, %v2559
        %v2697 = vmul.f32 %v2665, %v2560
        %v2698 = vadd.f32 %v2631, %v2666
        %v2699 = vadd.f32 %v2632, %v2667
        %v2700 = vadd.f32 %v2633, %v2668
        %v2701 = vadd.f32 %v2634, %v2669
        %v2702 = vadd.f32 %v2635, %v2670
        %v2703 = vadd.f32 %v2636, %v2671
        %v2704 = vadd.f32 %v2637, %v2672
        %v2705 = vadd.f32 %v2638, %v2673
        %v2706 = vadd.f32 %v2639, %v2674
        %v2707 = vadd.f32 %v2640, %v2675
        %v2708 = vadd.f32 %v2641, %v2676
        %v2709 = vadd.f32 %v2642, %v2677
        %v2710 = vadd.f32 %v2643, %v2678
        %v2711 = vadd.f32 %v2644, %v2679
        %v2712 = vadd.f32 %v2645, %v2680
        %v2713 = vadd.f32 %v2646, %v2681
        %v2714 = vadd.f32 %v2647, %v2682
        %v2715 = vadd.f32 %v2648, %v2683
        %v2716 = vadd.f32 %v2649, %v2684
        %v2717 = vadd.f32 %v2650, %v2685
        %v2718 = vadd.f32 %v2651, %v2686
        %v2719 = vadd.f32 %v2652, %v2687
        %v2720 = vadd.f32 %v2653, %v2688
        %v2721 = vadd.f32 %v2654, %v2689
        %v2722 = vadd.f32 %v2655, %v2690
        %v2723 = vadd.f32 %v2656, %v2691
        %v2724 = vadd.f32 %v2657, %v2692
        %v2725 = vadd.f32 %v2658, %v2693
        %v2726 = vadd.f32 %v2659, %v2694
        %v2727 = vadd.f32 %v2660, %v2695
        %v2728 = vadd.f32 %v2661, %v2696
        %v2729 = vadd.f32 %v2662, %v2697
        %s2730 = sadd.s32 %s312, 39
        %s2731 = sld [smem:[#allocation2 + %s2730]]
        %v2732 = vstv %s2731
        %v2733 = vmul.f32 %v2732, %v2459
        %v2734 = vmul.f32 %v2732, %v2460
        %v2735 = vmul.f32 %v2732, %v2461
        %v2736 = vmul.f32 %v2732, %v2462
        %v2737 = vmul.f32 %v2732, %v2463
        %v2738 = vmul.f32 %v2732, %v2464
        %v2739 = vmul.f32 %v2732, %v2465
        %v2740 = vmul.f32 %v2732, %v2466
        %v2741 = vmul.f32 %v2732, %v2467
        %v2742 = vmul.f32 %v2732, %v2468
        %v2743 = vmul.f32 %v2732, %v2469
        %v2744 = vmul.f32 %v2732, %v2470
        %v2745 = vmul.f32 %v2732, %v2471
        %v2746 = vmul.f32 %v2732, %v2472
        %v2747 = vmul.f32 %v2732, %v2473
        %v2748 = vmul.f32 %v2732, %v2474
        %v2749 = vmul.f32 %v2732, %v2475
        %v2750 = vmul.f32 %v2732, %v2476
        %v2751 = vmul.f32 %v2732, %v2477
        %v2752 = vmul.f32 %v2732, %v2478
        %v2753 = vmul.f32 %v2732, %v2479
        %v2754 = vmul.f32 %v2732, %v2480
        %v2755 = vmul.f32 %v2732, %v2481
        %v2756 = vmul.f32 %v2732, %v2482
        %v2757 = vmul.f32 %v2732, %v2483
        %v2758 = vmul.f32 %v2732, %v2484
        %v2759 = vmul.f32 %v2732, %v2485
        %v2760 = vmul.f32 %v2732, %v2486
        %v2761 = vmul.f32 %v2732, %v2487
        %v2762 = vmul.f32 %v2732, %v2488
        %v2763 = vmul.f32 %v2732, %v2489
        %v2764 = vmul.f32 %v2732, %v2490
        %s2765 = sadd.s32 %s312, 40
        %s2766 = sld [smem:[#allocation2 + %s2765]]
        %v2767 = vstv %s2766
        %v2768 = vmul.f32 %v2767, %v2494
        %v2769 = vmul.f32 %v2767, %v2495
        %v2770 = vmul.f32 %v2767, %v2496
        %v2771 = vmul.f32 %v2767, %v2497
        %v2772 = vmul.f32 %v2767, %v2498
        %v2773 = vmul.f32 %v2767, %v2499
        %v2774 = vmul.f32 %v2767, %v2500
        %v2775 = vmul.f32 %v2767, %v2501
        %v2776 = vmul.f32 %v2767, %v2502
        %v2777 = vmul.f32 %v2767, %v2503
        %v2778 = vmul.f32 %v2767, %v2504
        %v2779 = vmul.f32 %v2767, %v2505
        %v2780 = vmul.f32 %v2767, %v2506
        %v2781 = vmul.f32 %v2767, %v2507
        %v2782 = vmul.f32 %v2767, %v2508
        %v2783 = vmul.f32 %v2767, %v2509
        %v2784 = vmul.f32 %v2767, %v2510
        %v2785 = vmul.f32 %v2767, %v2511
        %v2786 = vmul.f32 %v2767, %v2512
        %v2787 = vmul.f32 %v2767, %v2513
        %v2788 = vmul.f32 %v2767, %v2514
        %v2789 = vmul.f32 %v2767, %v2515
        %v2790 = vmul.f32 %v2767, %v2516
        %v2791 = vmul.f32 %v2767, %v2517
        %v2792 = vmul.f32 %v2767, %v2518
        %v2793 = vmul.f32 %v2767, %v2519
        %v2794 = vmul.f32 %v2767, %v2520
        %v2795 = vmul.f32 %v2767, %v2521
        %v2796 = vmul.f32 %v2767, %v2522
        %v2797 = vmul.f32 %v2767, %v2523
        %v2798 = vmul.f32 %v2767, %v2524
        %v2799 = vmul.f32 %v2767, %v2525
        %v2800 = vadd.f32 %v2733, %v2768
        %v2801 = vadd.f32 %v2734, %v2769
        %v2802 = vadd.f32 %v2735, %v2770
        %v2803 = vadd.f32 %v2736, %v2771
        %v2804 = vadd.f32 %v2737, %v2772
        %v2805 = vadd.f32 %v2738, %v2773
        %v2806 = vadd.f32 %v2739, %v2774
        %v2807 = vadd.f32 %v2740, %v2775
        %v2808 = vadd.f32 %v2741, %v2776
        %v2809 = vadd.f32 %v2742, %v2777
        %v2810 = vadd.f32 %v2743, %v2778
        %v2811 = vadd.f32 %v2744, %v2779
        %v2812 = vadd.f32 %v2745, %v2780
        %v2813 = vadd.f32 %v2746, %v2781
        %v2814 = vadd.f32 %v2747, %v2782
        %v2815 = vadd.f32 %v2748, %v2783
        %v2816 = vadd.f32 %v2749, %v2784
        %v2817 = vadd.f32 %v2750, %v2785
        %v2818 = vadd.f32 %v2751, %v2786
        %v2819 = vadd.f32 %v2752, %v2787
        %v2820 = vadd.f32 %v2753, %v2788
        %v2821 = vadd.f32 %v2754, %v2789
        %v2822 = vadd.f32 %v2755, %v2790
        %v2823 = vadd.f32 %v2756, %v2791
        %v2824 = vadd.f32 %v2757, %v2792
        %v2825 = vadd.f32 %v2758, %v2793
        %v2826 = vadd.f32 %v2759, %v2794
        %v2827 = vadd.f32 %v2760, %v2795
        %v2828 = vadd.f32 %v2761, %v2796
        %v2829 = vadd.f32 %v2762, %v2797
        %v2830 = vadd.f32 %v2763, %v2798
        %v2831 = vadd.f32 %v2764, %v2799
        %s2832 = sadd.s32 %s312, 41
        %s2833 = sld [smem:[#allocation2 + %s2832]]
        %v2834 = vstv %s2833
        %v2835 = vmul.f32 %v2834, %v2529
        %v2836 = vmul.f32 %v2834, %v2530
        %v2837 = vmul.f32 %v2834, %v2531
        %v2838 = vmul.f32 %v2834, %v2532
        %v2839 = vmul.f32 %v2834, %v2533
        %v2840 = vmul.f32 %v2834, %v2534
        %v2841 = vmul.f32 %v2834, %v2535
        %v2842 = vmul.f32 %v2834, %v2536
        %v2843 = vmul.f32 %v2834, %v2537
        %v2844 = vmul.f32 %v2834, %v2538
        %v2845 = vmul.f32 %v2834, %v2539
        %v2846 = vmul.f32 %v2834, %v2540
        %v2847 = vmul.f32 %v2834, %v2541
        %v2848 = vmul.f32 %v2834, %v2542
        %v2849 = vmul.f32 %v2834, %v2543
        %v2850 = vmul.f32 %v2834, %v2544
        %v2851 = vmul.f32 %v2834, %v2545
        %v2852 = vmul.f32 %v2834, %v2546
        %v2853 = vmul.f32 %v2834, %v2547
        %v2854 = vmul.f32 %v2834, %v2548
        %v2855 = vmul.f32 %v2834, %v2549
        %v2856 = vmul.f32 %v2834, %v2550
        %v2857 = vmul.f32 %v2834, %v2551
        %v2858 = vmul.f32 %v2834, %v2552
        %v2859 = vmul.f32 %v2834, %v2553
        %v2860 = vmul.f32 %v2834, %v2554
        %v2861 = vmul.f32 %v2834, %v2555
        %v2862 = vmul.f32 %v2834, %v2556
        %v2863 = vmul.f32 %v2834, %v2557
        %v2864 = vmul.f32 %v2834, %v2558
        %v2865 = vmul.f32 %v2834, %v2559
        %v2866 = vmul.f32 %v2834, %v2560
        %v2867 = vadd.f32 %v2800, %v2835
        %v2868 = vadd.f32 %v2801, %v2836
        %v2869 = vadd.f32 %v2802, %v2837
        %v2870 = vadd.f32 %v2803, %v2838
        %v2871 = vadd.f32 %v2804, %v2839
        %v2872 = vadd.f32 %v2805, %v2840
        %v2873 = vadd.f32 %v2806, %v2841
        %v2874 = vadd.f32 %v2807, %v2842
        %v2875 = vadd.f32 %v2808, %v2843
        %v2876 = vadd.f32 %v2809, %v2844
        %v2877 = vadd.f32 %v2810, %v2845
        %v2878 = vadd.f32 %v2811, %v2846
        %v2879 = vadd.f32 %v2812, %v2847
        %v2880 = vadd.f32 %v2813, %v2848
        %v2881 = vadd.f32 %v2814, %v2849
        %v2882 = vadd.f32 %v2815, %v2850
        %v2883 = vadd.f32 %v2816, %v2851
        %v2884 = vadd.f32 %v2817, %v2852
        %v2885 = vadd.f32 %v2818, %v2853
        %v2886 = vadd.f32 %v2819, %v2854
        %v2887 = vadd.f32 %v2820, %v2855
        %v2888 = vadd.f32 %v2821, %v2856
        %v2889 = vadd.f32 %v2822, %v2857
        %v2890 = vadd.f32 %v2823, %v2858
        %v2891 = vadd.f32 %v2824, %v2859
        %v2892 = vadd.f32 %v2825, %v2860
        %v2893 = vadd.f32 %v2826, %v2861
        %v2894 = vadd.f32 %v2827, %v2862
        %v2895 = vadd.f32 %v2828, %v2863
        %v2896 = vadd.f32 %v2829, %v2864
        %v2897 = vadd.f32 %v2830, %v2865
        %v2898 = vadd.f32 %v2831, %v2866
        %s2899 = sadd.s32 %s312, 42
        %s2900 = sld [smem:[#allocation2 + %s2899]]
        %v2901 = vstv %s2900
        %v2902 = vmul.f32 %v2901, %v2459
        %v2903 = vmul.f32 %v2901, %v2460
        %v2904 = vmul.f32 %v2901, %v2461
        %v2905 = vmul.f32 %v2901, %v2462
        %v2906 = vmul.f32 %v2901, %v2463
        %v2907 = vmul.f32 %v2901, %v2464
        %v2908 = vmul.f32 %v2901, %v2465
        %v2909 = vmul.f32 %v2901, %v2466
        %v2910 = vmul.f32 %v2901, %v2467
        %v2911 = vmul.f32 %v2901, %v2468
        %v2912 = vmul.f32 %v2901, %v2469
        %v2913 = vmul.f32 %v2901, %v2470
        %v2914 = vmul.f32 %v2901, %v2471
        %v2915 = vmul.f32 %v2901, %v2472
        %v2916 = vmul.f32 %v2901, %v2473
        %v2917 = vmul.f32 %v2901, %v2474
        %v2918 = vmul.f32 %v2901, %v2475
        %v2919 = vmul.f32 %v2901, %v2476
        %v2920 = vmul.f32 %v2901, %v2477
        %v2921 = vmul.f32 %v2901, %v2478
        %v2922 = vmul.f32 %v2901, %v2479
        %v2923 = vmul.f32 %v2901, %v2480
        %v2924 = vmul.f32 %v2901, %v2481
        %v2925 = vmul.f32 %v2901, %v2482
        %v2926 = vmul.f32 %v2901, %v2483
        %v2927 = vmul.f32 %v2901, %v2484
        %v2928 = vmul.f32 %v2901, %v2485
        %v2929 = vmul.f32 %v2901, %v2486
        %v2930 = vmul.f32 %v2901, %v2487
        %v2931 = vmul.f32 %v2901, %v2488
        %v2932 = vmul.f32 %v2901, %v2489
        %v2933 = vmul.f32 %v2901, %v2490
        %s2934 = sadd.s32 %s312, 43
        %s2935 = sld [smem:[#allocation2 + %s2934]]
        %v2936 = vstv %s2935
        %v2937 = vmul.f32 %v2936, %v2494
        %v2938 = vmul.f32 %v2936, %v2495
        %v2939 = vmul.f32 %v2936, %v2496
        %v2940 = vmul.f32 %v2936, %v2497
        %v2941 = vmul.f32 %v2936, %v2498
        %v2942 = vmul.f32 %v2936, %v2499
        %v2943 = vmul.f32 %v2936, %v2500
        %v2944 = vmul.f32 %v2936, %v2501
        %v2945 = vmul.f32 %v2936, %v2502
        %v2946 = vmul.f32 %v2936, %v2503
        %v2947 = vmul.f32 %v2936, %v2504
        %v2948 = vmul.f32 %v2936, %v2505
        %v2949 = vmul.f32 %v2936, %v2506
        %v2950 = vmul.f32 %v2936, %v2507
        %v2951 = vmul.f32 %v2936, %v2508
        %v2952 = vmul.f32 %v2936, %v2509
        %v2953 = vmul.f32 %v2936, %v2510
        %v2954 = vmul.f32 %v2936, %v2511
        %v2955 = vmul.f32 %v2936, %v2512
        %v2956 = vmul.f32 %v2936, %v2513
        %v2957 = vmul.f32 %v2936, %v2514
        %v2958 = vmul.f32 %v2936, %v2515
        %v2959 = vmul.f32 %v2936, %v2516
        %v2960 = vmul.f32 %v2936, %v2517
        %v2961 = vmul.f32 %v2936, %v2518
        %v2962 = vmul.f32 %v2936, %v2519
        %v2963 = vmul.f32 %v2936, %v2520
        %v2964 = vmul.f32 %v2936, %v2521
        %v2965 = vmul.f32 %v2936, %v2522
        %v2966 = vmul.f32 %v2936, %v2523
        %v2967 = vmul.f32 %v2936, %v2524
        %v2968 = vmul.f32 %v2936, %v2525
        %v2969 = vadd.f32 %v2902, %v2937
        %v2970 = vadd.f32 %v2903, %v2938
        %v2971 = vadd.f32 %v2904, %v2939
        %v2972 = vadd.f32 %v2905, %v2940
        %v2973 = vadd.f32 %v2906, %v2941
        %v2974 = vadd.f32 %v2907, %v2942
        %v2975 = vadd.f32 %v2908, %v2943
        %v2976 = vadd.f32 %v2909, %v2944
        %v2977 = vadd.f32 %v2910, %v2945
        %v2978 = vadd.f32 %v2911, %v2946
        %v2979 = vadd.f32 %v2912, %v2947
        %v2980 = vadd.f32 %v2913, %v2948
        %v2981 = vadd.f32 %v2914, %v2949
        %v2982 = vadd.f32 %v2915, %v2950
        %v2983 = vadd.f32 %v2916, %v2951
        %v2984 = vadd.f32 %v2917, %v2952
        %v2985 = vadd.f32 %v2918, %v2953
        %v2986 = vadd.f32 %v2919, %v2954
        %v2987 = vadd.f32 %v2920, %v2955
        %v2988 = vadd.f32 %v2921, %v2956
        %v2989 = vadd.f32 %v2922, %v2957
        %v2990 = vadd.f32 %v2923, %v2958
        %v2991 = vadd.f32 %v2924, %v2959
        %v2992 = vadd.f32 %v2925, %v2960
        %v2993 = vadd.f32 %v2926, %v2961
        %v2994 = vadd.f32 %v2927, %v2962
        %v2995 = vadd.f32 %v2928, %v2963
        %v2996 = vadd.f32 %v2929, %v2964
        %v2997 = vadd.f32 %v2930, %v2965
        %v2998 = vadd.f32 %v2931, %v2966
        %v2999 = vadd.f32 %v2932, %v2967
        %v3000 = vadd.f32 %v2933, %v2968
        %s3001 = sadd.s32 %s312, 44
        %s3002 = sld [smem:[#allocation2 + %s3001]]
        %v3003 = vstv %s3002
        %v3004 = vmul.f32 %v3003, %v2529
        %v3005 = vmul.f32 %v3003, %v2530
        %v3006 = vmul.f32 %v3003, %v2531
        %v3007 = vmul.f32 %v3003, %v2532
        %v3008 = vmul.f32 %v3003, %v2533
        %v3009 = vmul.f32 %v3003, %v2534
        %v3010 = vmul.f32 %v3003, %v2535
        %v3011 = vmul.f32 %v3003, %v2536
        %v3012 = vmul.f32 %v3003, %v2537
        %v3013 = vmul.f32 %v3003, %v2538
        %v3014 = vmul.f32 %v3003, %v2539
        %v3015 = vmul.f32 %v3003, %v2540
        %v3016 = vmul.f32 %v3003, %v2541
        %v3017 = vmul.f32 %v3003, %v2542
        %v3018 = vmul.f32 %v3003, %v2543
        %v3019 = vmul.f32 %v3003, %v2544
        %v3020 = vmul.f32 %v3003, %v2545
        %v3021 = vmul.f32 %v3003, %v2546
        %v3022 = vmul.f32 %v3003, %v2547
        %v3023 = vmul.f32 %v3003, %v2548
        %v3024 = vmul.f32 %v3003, %v2549
        %v3025 = vmul.f32 %v3003, %v2550
        %v3026 = vmul.f32 %v3003, %v2551
        %v3027 = vmul.f32 %v3003, %v2552
        %v3028 = vmul.f32 %v3003, %v2553
        %v3029 = vmul.f32 %v3003, %v2554
        %v3030 = vmul.f32 %v3003, %v2555
        %v3031 = vmul.f32 %v3003, %v2556
        %v3032 = vmul.f32 %v3003, %v2557
        %v3033 = vmul.f32 %v3003, %v2558
        %v3034 = vmul.f32 %v3003, %v2559
        %v3035 = vmul.f32 %v3003, %v2560
        %v3036 = vadd.f32 %v2969, %v3004
        %v3037 = vadd.f32 %v2970, %v3005
        %v3038 = vadd.f32 %v2971, %v3006
        %v3039 = vadd.f32 %v2972, %v3007
        %v3040 = vadd.f32 %v2973, %v3008
        %v3041 = vadd.f32 %v2974, %v3009
        %v3042 = vadd.f32 %v2975, %v3010
        %v3043 = vadd.f32 %v2976, %v3011
        %v3044 = vadd.f32 %v2977, %v3012
        %v3045 = vadd.f32 %v2978, %v3013
        %v3046 = vadd.f32 %v2979, %v3014
        %v3047 = vadd.f32 %v2980, %v3015
        %v3048 = vadd.f32 %v2981, %v3016
        %v3049 = vadd.f32 %v2982, %v3017
        %v3050 = vadd.f32 %v2983, %v3018
        %v3051 = vadd.f32 %v2984, %v3019
        %v3052 = vadd.f32 %v2985, %v3020
        %v3053 = vadd.f32 %v2986, %v3021
        %v3054 = vadd.f32 %v2987, %v3022
        %v3055 = vadd.f32 %v2988, %v3023
        %v3056 = vadd.f32 %v2989, %v3024
        %v3057 = vadd.f32 %v2990, %v3025
        %v3058 = vadd.f32 %v2991, %v3026
        %v3059 = vadd.f32 %v2992, %v3027
        %v3060 = vadd.f32 %v2993, %v3028
        %v3061 = vadd.f32 %v2994, %v3029
        %v3062 = vadd.f32 %v2995, %v3030
        %v3063 = vadd.f32 %v2996, %v3031
        %v3064 = vadd.f32 %v2997, %v3032
        %v3065 = vadd.f32 %v2998, %v3033
        %v3066 = vadd.f32 %v2999, %v3034
        %v3067 = vadd.f32 %v3000, %v3035
        %v3068 = vcvt.f32.s32.to.zero.pseudo %v2698
        %v3069 = vcvt.f32.s32.to.zero.pseudo %v2699
        %v3070 = vcvt.f32.s32.to.zero.pseudo %v2700
        %v3071 = vcvt.f32.s32.to.zero.pseudo %v2701
        %v3072 = vcvt.f32.s32.to.zero.pseudo %v2702
        %v3073 = vcvt.f32.s32.to.zero.pseudo %v2703
        %v3074 = vcvt.f32.s32.to.zero.pseudo %v2704
        %v3075 = vcvt.f32.s32.to.zero.pseudo %v2705
        %v3076 = vcvt.f32.s32.to.zero.pseudo %v2706
        %v3077 = vcvt.f32.s32.to.zero.pseudo %v2707
        %v3078 = vcvt.f32.s32.to.zero.pseudo %v2708
        %v3079 = vcvt.f32.s32.to.zero.pseudo %v2709
        %v3080 = vcvt.f32.s32.to.zero.pseudo %v2710
        %v3081 = vcvt.f32.s32.to.zero.pseudo %v2711
        %v3082 = vcvt.f32.s32.to.zero.pseudo %v2712
        %v3083 = vcvt.f32.s32.to.zero.pseudo %v2713
        %v3084 = vcvt.f32.s32.to.zero.pseudo %v2714
        %v3085 = vcvt.f32.s32.to.zero.pseudo %v2715
        %v3086 = vcvt.f32.s32.to.zero.pseudo %v2716
        %v3087 = vcvt.f32.s32.to.zero.pseudo %v2717
        %v3088 = vcvt.f32.s32.to.zero.pseudo %v2718
        %v3089 = vcvt.f32.s32.to.zero.pseudo %v2719
        %v3090 = vcvt.f32.s32.to.zero.pseudo %v2720
        %v3091 = vcvt.f32.s32.to.zero.pseudo %v2721
        %v3092 = vcvt.f32.s32.to.zero.pseudo %v2722
        %v3093 = vcvt.f32.s32.to.zero.pseudo %v2723
        %v3094 = vcvt.f32.s32.to.zero.pseudo %v2724
        %v3095 = vcvt.f32.s32.to.zero.pseudo %v2725
        %v3096 = vcvt.f32.s32.to.zero.pseudo %v2726
        %v3097 = vcvt.f32.s32.to.zero.pseudo %v2727
        %v3098 = vcvt.f32.s32.to.zero.pseudo %v2728
        %v3099 = vcvt.f32.s32.to.zero.pseudo %v2729
        %v3100 = vcvt.f32.s32.to.zero.pseudo %v2867
        %v3101 = vcvt.f32.s32.to.zero.pseudo %v2868
        %v3102 = vcvt.f32.s32.to.zero.pseudo %v2869
        %v3103 = vcvt.f32.s32.to.zero.pseudo %v2870
        %v3104 = vcvt.f32.s32.to.zero.pseudo %v2871
        %v3105 = vcvt.f32.s32.to.zero.pseudo %v2872
        %v3106 = vcvt.f32.s32.to.zero.pseudo %v2873
        %v3107 = vcvt.f32.s32.to.zero.pseudo %v2874
        %v3108 = vcvt.f32.s32.to.zero.pseudo %v2875
        %v3109 = vcvt.f32.s32.to.zero.pseudo %v2876
        %v3110 = vcvt.f32.s32.to.zero.pseudo %v2877
        %v3111 = vcvt.f32.s32.to.zero.pseudo %v2878
        %v3112 = vcvt.f32.s32.to.zero.pseudo %v2879
        %v3113 = vcvt.f32.s32.to.zero.pseudo %v2880
        %v3114 = vcvt.f32.s32.to.zero.pseudo %v2881
        %v3115 = vcvt.f32.s32.to.zero.pseudo %v2882
        %v3116 = vcvt.f32.s32.to.zero.pseudo %v2883
        %v3117 = vcvt.f32.s32.to.zero.pseudo %v2884
        %v3118 = vcvt.f32.s32.to.zero.pseudo %v2885
        %v3119 = vcvt.f32.s32.to.zero.pseudo %v2886
        %v3120 = vcvt.f32.s32.to.zero.pseudo %v2887
        %v3121 = vcvt.f32.s32.to.zero.pseudo %v2888
        %v3122 = vcvt.f32.s32.to.zero.pseudo %v2889
        %v3123 = vcvt.f32.s32.to.zero.pseudo %v2890
        %v3124 = vcvt.f32.s32.to.zero.pseudo %v2891
        %v3125 = vcvt.f32.s32.to.zero.pseudo %v2892
        %v3126 = vcvt.f32.s32.to.zero.pseudo %v2893
        %v3127 = vcvt.f32.s32.to.zero.pseudo %v2894
        %v3128 = vcvt.f32.s32.to.zero.pseudo %v2895
        %v3129 = vcvt.f32.s32.to.zero.pseudo %v2896
        %v3130 = vcvt.f32.s32.to.zero.pseudo %v2897
        %v3131 = vcvt.f32.s32.to.zero.pseudo %v2898
        %vm3132 = vcmp.ge.f32.partialorder %v3036, 0.0
        %vm3133 = vcmp.ge.f32.partialorder %v3037, 0.0
        %vm3134 = vcmp.ge.f32.partialorder %v3038, 0.0
        %vm3135 = vcmp.ge.f32.partialorder %v3039, 0.0
        %vm3136 = vcmp.ge.f32.partialorder %v3040, 0.0
        %vm3137 = vcmp.ge.f32.partialorder %v3041, 0.0
        %vm3138 = vcmp.ge.f32.partialorder %v3042, 0.0
        %vm3139 = vcmp.ge.f32.partialorder %v3043, 0.0
        %vm3140 = vcmp.ge.f32.partialorder %v3044, 0.0
        %vm3141 = vcmp.ge.f32.partialorder %v3045, 0.0
        %vm3142 = vcmp.ge.f32.partialorder %v3046, 0.0
        %vm3143 = vcmp.ge.f32.partialorder %v3047, 0.0
        %vm3144 = vcmp.ge.f32.partialorder %v3048, 0.0
        %vm3145 = vcmp.ge.f32.partialorder %v3049, 0.0
        %vm3146 = vcmp.ge.f32.partialorder %v3050, 0.0
        %vm3147 = vcmp.ge.f32.partialorder %v3051, 0.0
        %vm3148 = vcmp.ge.f32.partialorder %v3052, 0.0
        %vm3149 = vcmp.ge.f32.partialorder %v3053, 0.0
        %vm3150 = vcmp.ge.f32.partialorder %v3054, 0.0
        %vm3151 = vcmp.ge.f32.partialorder %v3055, 0.0
        %vm3152 = vcmp.ge.f32.partialorder %v3056, 0.0
        %vm3153 = vcmp.ge.f32.partialorder %v3057, 0.0
        %vm3154 = vcmp.ge.f32.partialorder %v3058, 0.0
        %vm3155 = vcmp.ge.f32.partialorder %v3059, 0.0
        %vm3156 = vcmp.ge.f32.partialorder %v3060, 0.0
        %vm3157 = vcmp.ge.f32.partialorder %v3061, 0.0
        %vm3158 = vcmp.ge.f32.partialorder %v3062, 0.0
        %vm3159 = vcmp.ge.f32.partialorder %v3063, 0.0
        %vm3160 = vcmp.ge.f32.partialorder %v3064, 0.0
        %vm3161 = vcmp.ge.f32.partialorder %v3065, 0.0
        %vm3162 = vcmp.ge.f32.partialorder %v3066, 0.0
        %vm3163 = vcmp.ge.f32.partialorder %v3067, 0.0
        %vm3164 = vcmp.ge.s32.totalorder %v3068, 4294967242
        %vm3165 = vcmp.ge.s32.totalorder %v3069, 4294967242
        %vm3166 = vcmp.ge.s32.totalorder %v3070, 4294967242
        %vm3167 = vcmp.ge.s32.totalorder %v3071, 4294967242
        %vm3168 = vcmp.ge.s32.totalorder %v3072, 4294967242
        %vm3169 = vcmp.ge.s32.totalorder %v3073, 4294967242
        %vm3170 = vcmp.ge.s32.totalorder %v3074, 4294967242
        %vm3171 = vcmp.ge.s32.totalorder %v3075, 4294967242
        %vm3172 = vcmp.ge.s32.totalorder %v3076, 4294967242
        %vm3173 = vcmp.ge.s32.totalorder %v3077, 4294967242
        %vm3174 = vcmp.ge.s32.totalorder %v3078, 4294967242
        %vm3175 = vcmp.ge.s32.totalorder %v3079, 4294967242
        %vm3176 = vcmp.ge.s32.totalorder %v3080, 4294967242
        %vm3177 = vcmp.ge.s32.totalorder %v3081, 4294967242
        %vm3178 = vcmp.ge.s32.totalorder %v3082, 4294967242
        %vm3179 = vcmp.ge.s32.totalorder %v3083, 4294967242
        %vm3180 = vcmp.ge.s32.totalorder %v3084, 4294967242
        %vm3181 = vcmp.ge.s32.totalorder %v3085, 4294967242
        %vm3182 = vcmp.ge.s32.totalorder %v3086, 4294967242
        %vm3183 = vcmp.ge.s32.totalorder %v3087, 4294967242
        %vm3184 = vcmp.ge.s32.totalorder %v3088, 4294967242
        %vm3185 = vcmp.ge.s32.totalorder %v3089, 4294967242
        %vm3186 = vcmp.ge.s32.totalorder %v3090, 4294967242
        %vm3187 = vcmp.ge.s32.totalorder %v3091, 4294967242
        %vm3188 = vcmp.ge.s32.totalorder %v3092, 4294967242
        %vm3189 = vcmp.ge.s32.totalorder %v3093, 4294967242
        %vm3190 = vcmp.ge.s32.totalorder %v3094, 4294967242
        %vm3191 = vcmp.ge.s32.totalorder %v3095, 4294967242
        %vm3192 = vcmp.ge.s32.totalorder %v3096, 4294967242
        %vm3193 = vcmp.ge.s32.totalorder %v3097, 4294967242
        %vm3194 = vcmp.ge.s32.totalorder %v3098, 4294967242
        %vm3195 = vcmp.ge.s32.totalorder %v3099, 4294967242
        %vm3196 = vmand %vm3132, %vm3164
        %vm3197 = vmand %vm3133, %vm3165
        %vm3198 = vmand %vm3134, %vm3166
        %vm3199 = vmand %vm3135, %vm3167
        %vm3200 = vmand %vm3136, %vm3168
        %vm3201 = vmand %vm3137, %vm3169
        %vm3202 = vmand %vm3138, %vm3170
        %vm3203 = vmand %vm3139, %vm3171
        %vm3204 = vmand %vm3140, %vm3172
        %vm3205 = vmand %vm3141, %vm3173
        %vm3206 = vmand %vm3142, %vm3174
        %vm3207 = vmand %vm3143, %vm3175
        %vm3208 = vmand %vm3144, %vm3176
        %vm3209 = vmand %vm3145, %vm3177
        %vm3210 = vmand %vm3146, %vm3178
        %vm3211 = vmand %vm3147, %vm3179
        %vm3212 = vmand %vm3148, %vm3180
        %vm3213 = vmand %vm3149, %vm3181
        %vm3214 = vmand %vm3150, %vm3182
        %vm3215 = vmand %vm3151, %vm3183
        %vm3216 = vmand %vm3152, %vm3184
        %vm3217 = vmand %vm3153, %vm3185
        %vm3218 = vmand %vm3154, %vm3186
        %vm3219 = vmand %vm3155, %vm3187
        %vm3220 = vmand %vm3156, %vm3188
        %vm3221 = vmand %vm3157, %vm3189
        %vm3222 = vmand %vm3158, %vm3190
        %vm3223 = vmand %vm3159, %vm3191
        %vm3224 = vmand %vm3160, %vm3192
        %vm3225 = vmand %vm3161, %vm3193
        %vm3226 = vmand %vm3162, %vm3194
        %vm3227 = vmand %vm3163, %vm3195
        %vm3228 = vcmp.ge.s32.totalorder %v3100, 4294967242
        %vm3229 = vcmp.ge.s32.totalorder %v3101, 4294967242
        %vm3230 = vcmp.ge.s32.totalorder %v3102, 4294967242
        %vm3231 = vcmp.ge.s32.totalorder %v3103, 4294967242
        %vm3232 = vcmp.ge.s32.totalorder %v3104, 4294967242
        %vm3233 = vcmp.ge.s32.totalorder %v3105, 4294967242
        %vm3234 = vcmp.ge.s32.totalorder %v3106, 4294967242
        %vm3235 = vcmp.ge.s32.totalorder %v3107, 4294967242
        %vm3236 = vcmp.ge.s32.totalorder %v3108, 4294967242
        %vm3237 = vcmp.ge.s32.totalorder %v3109, 4294967242
        %vm3238 = vcmp.ge.s32.totalorder %v3110, 4294967242
        %vm3239 = vcmp.ge.s32.totalorder %v3111, 4294967242
        %vm3240 = vcmp.ge.s32.totalorder %v3112, 4294967242
        %vm3241 = vcmp.ge.s32.totalorder %v3113, 4294967242
        %vm3242 = vcmp.ge.s32.totalorder %v3114, 4294967242
        %vm3243 = vcmp.ge.s32.totalorder %v3115, 4294967242
        %vm3244 = vcmp.ge.s32.totalorder %v3116, 4294967242
        %vm3245 = vcmp.ge.s32.totalorder %v3117, 4294967242
        %vm3246 = vcmp.ge.s32.totalorder %v3118, 4294967242
        %vm3247 = vcmp.ge.s32.totalorder %v3119, 4294967242
        %vm3248 = vcmp.ge.s32.totalorder %v3120, 4294967242
        %vm3249 = vcmp.ge.s32.totalorder %v3121, 4294967242
        %vm3250 = vcmp.ge.s32.totalorder %v3122, 4294967242
        %vm3251 = vcmp.ge.s32.totalorder %v3123, 4294967242
        %vm3252 = vcmp.ge.s32.totalorder %v3124, 4294967242
        %vm3253 = vcmp.ge.s32.totalorder %v3125, 4294967242
        %vm3254 = vcmp.ge.s32.totalorder %v3126, 4294967242
        %vm3255 = vcmp.ge.s32.totalorder %v3127, 4294967242
        %vm3256 = vcmp.ge.s32.totalorder %v3128, 4294967242
        %vm3257 = vcmp.ge.s32.totalorder %v3129, 4294967242
        %vm3258 = vcmp.ge.s32.totalorder %v3130, 4294967242
        %vm3259 = vcmp.ge.s32.totalorder %v3131, 4294967242
        %vm3260 = vmand %vm3196, %vm3228
        %vm3261 = vmand %vm3197, %vm3229
        %vm3262 = vmand %vm3198, %vm3230
        %vm3263 = vmand %vm3199, %vm3231
        %vm3264 = vmand %vm3200, %vm3232
        %vm3265 = vmand %vm3201, %vm3233
        %vm3266 = vmand %vm3202, %vm3234
        %vm3267 = vmand %vm3203, %vm3235
        %vm3268 = vmand %vm3204, %vm3236
        %vm3269 = vmand %vm3205, %vm3237
        %vm3270 = vmand %vm3206, %vm3238
        %vm3271 = vmand %vm3207, %vm3239
        %vm3272 = vmand %vm3208, %vm3240
        %vm3273 = vmand %vm3209, %vm3241
        %vm3274 = vmand %vm3210, %vm3242
        %vm3275 = vmand %vm3211, %vm3243
        %vm3276 = vmand %vm3212, %vm3244
        %vm3277 = vmand %vm3213, %vm3245
        %vm3278 = vmand %vm3214, %vm3246
        %vm3279 = vmand %vm3215, %vm3247
        %vm3280 = vmand %vm3216, %vm3248
        %vm3281 = vmand %vm3217, %vm3249
        %vm3282 = vmand %vm3218, %vm3250
        %vm3283 = vmand %vm3219, %vm3251
        %vm3284 = vmand %vm3220, %vm3252
        %vm3285 = vmand %vm3221, %vm3253
        %vm3286 = vmand %vm3222, %vm3254
        %vm3287 = vmand %vm3223, %vm3255
        %vm3288 = vmand %vm3224, %vm3256
        %vm3289 = vmand %vm3225, %vm3257
        %vm3290 = vmand %vm3226, %vm3258
        %vm3291 = vmand %vm3227, %vm3259
        %vm3292 = vcmp.lt.s32.totalorder %v3068, 54
        %vm3293 = vcmp.lt.s32.totalorder %v3069, 54
        %vm3294 = vcmp.lt.s32.totalorder %v3070, 54
        %vm3295 = vcmp.lt.s32.totalorder %v3071, 54
        %vm3296 = vcmp.lt.s32.totalorder %v3072, 54
        %vm3297 = vcmp.lt.s32.totalorder %v3073, 54
        %vm3298 = vcmp.lt.s32.totalorder %v3074, 54
        %vm3299 = vcmp.lt.s32.totalorder %v3075, 54
        %vm3300 = vcmp.lt.s32.totalorder %v3076, 54
        %vm3301 = vcmp.lt.s32.totalorder %v3077, 54
        %vm3302 = vcmp.lt.s32.totalorder %v3078, 54
        %vm3303 = vcmp.lt.s32.totalorder %v3079, 54
        %vm3304 = vcmp.lt.s32.totalorder %v3080, 54
        %vm3305 = vcmp.lt.s32.totalorder %v3081, 54
        %vm3306 = vcmp.lt.s32.totalorder %v3082, 54
        %vm3307 = vcmp.lt.s32.totalorder %v3083, 54
        %vm3308 = vcmp.lt.s32.totalorder %v3084, 54
        %vm3309 = vcmp.lt.s32.totalorder %v3085, 54
        %vm3310 = vcmp.lt.s32.totalorder %v3086, 54
        %vm3311 = vcmp.lt.s32.totalorder %v3087, 54
        %vm3312 = vcmp.lt.s32.totalorder %v3088, 54
        %vm3313 = vcmp.lt.s32.totalorder %v3089, 54
        %vm3314 = vcmp.lt.s32.totalorder %v3090, 54
        %vm3315 = vcmp.lt.s32.totalorder %v3091, 54
        %vm3316 = vcmp.lt.s32.totalorder %v3092, 54
        %vm3317 = vcmp.lt.s32.totalorder %v3093, 54
        %vm3318 = vcmp.lt.s32.totalorder %v3094, 54
        %vm3319 = vcmp.lt.s32.totalorder %v3095, 54
        %vm3320 = vcmp.lt.s32.totalorder %v3096, 54
        %vm3321 = vcmp.lt.s32.totalorder %v3097, 54
        %vm3322 = vcmp.lt.s32.totalorder %v3098, 54
        %vm3323 = vcmp.lt.s32.totalorder %v3099, 54
        %vm3324 = vmand %vm3260, %vm3292
        %vm3325 = vmand %vm3261, %vm3293
        %vm3326 = vmand %vm3262, %vm3294
        %vm3327 = vmand %vm3263, %vm3295
        %vm3328 = vmand %vm3264, %vm3296
        %vm3329 = vmand %vm3265, %vm3297
        %vm3330 = vmand %vm3266, %vm3298
        %vm3331 = vmand %vm3267, %vm3299
        %vm3332 = vmand %vm3268, %vm3300
        %vm3333 = vmand %vm3269, %vm3301
        %vm3334 = vmand %vm3270, %vm3302
        %vm3335 = vmand %vm3271, %vm3303
        %vm3336 = vmand %vm3272, %vm3304
        %vm3337 = vmand %vm3273, %vm3305
        %vm3338 = vmand %vm3274, %vm3306
        %vm3339 = vmand %vm3275, %vm3307
        %vm3340 = vmand %vm3276, %vm3308
        %vm3341 = vmand %vm3277, %vm3309
        %vm3342 = vmand %vm3278, %vm3310
        %vm3343 = vmand %vm3279, %vm3311
        %vm3344 = vmand %vm3280, %vm3312
        %vm3345 = vmand %vm3281, %vm3313
        %vm3346 = vmand %vm3282, %vm3314
        %vm3347 = vmand %vm3283, %vm3315
        %vm3348 = vmand %vm3284, %vm3316
        %vm3349 = vmand %vm3285, %vm3317
        %vm3350 = vmand %vm3286, %vm3318
        %vm3351 = vmand %vm3287, %vm3319
        %vm3352 = vmand %vm3288, %vm3320
        %vm3353 = vmand %vm3289, %vm3321
        %vm3354 = vmand %vm3290, %vm3322
        %vm3355 = vmand %vm3291, %vm3323
        %vm3356 = vcmp.lt.s32.totalorder %v3100, 54
        %vm3357 = vcmp.lt.s32.totalorder %v3101, 54
        %vm3358 = vcmp.lt.s32.totalorder %v3102, 54
        %vm3359 = vcmp.lt.s32.totalorder %v3103, 54
        %vm3360 = vcmp.lt.s32.totalorder %v3104, 54
        %vm3361 = vcmp.lt.s32.totalorder %v3105, 54
        %vm3362 = vcmp.lt.s32.totalorder %v3106, 54
        %vm3363 = vcmp.lt.s32.totalorder %v3107, 54
        %vm3364 = vcmp.lt.s32.totalorder %v3108, 54
        %vm3365 = vcmp.lt.s32.totalorder %v3109, 54
        %vm3366 = vcmp.lt.s32.totalorder %v3110, 54
        %vm3367 = vcmp.lt.s32.totalorder %v3111, 54
        %vm3368 = vcmp.lt.s32.totalorder %v3112, 54
        %vm3369 = vcmp.lt.s32.totalorder %v3113, 54
        %vm3370 = vcmp.lt.s32.totalorder %v3114, 54
        %vm3371 = vcmp.lt.s32.totalorder %v3115, 54
        %vm3372 = vcmp.lt.s32.totalorder %v3116, 54
        %vm3373 = vcmp.lt.s32.totalorder %v3117, 54
        %vm3374 = vcmp.lt.s32.totalorder %v3118, 54
        %vm3375 = vcmp.lt.s32.totalorder %v3119, 54
        %vm3376 = vcmp.lt.s32.totalorder %v3120, 54
        %vm3377 = vcmp.lt.s32.totalorder %v3121, 54
        %vm3378 = vcmp.lt.s32.totalorder %v3122, 54
        %vm3379 = vcmp.lt.s32.totalorder %v3123, 54
        %vm3380 = vcmp.lt.s32.totalorder %v3124, 54
        %vm3381 = vcmp.lt.s32.totalorder %v3125, 54
        %vm3382 = vcmp.lt.s32.totalorder %v3126, 54
        %vm3383 = vcmp.lt.s32.totalorder %v3127, 54
        %vm3384 = vcmp.lt.s32.totalorder %v3128, 54
        %vm3385 = vcmp.lt.s32.totalorder %v3129, 54
        %vm3386 = vcmp.lt.s32.totalorder %v3130, 54
        %vm3387 = vcmp.lt.s32.totalorder %v3131, 54
        %vm3388 = vmand %vm3324, %vm3356
        %vm3389 = vmand %vm3325, %vm3357
        %vm3390 = vmand %vm3326, %vm3358
        %vm3391 = vmand %vm3327, %vm3359
        %vm3392 = vmand %vm3328, %vm3360
        %vm3393 = vmand %vm3329, %vm3361
        %vm3394 = vmand %vm3330, %vm3362
        %vm3395 = vmand %vm3331, %vm3363
        %vm3396 = vmand %vm3332, %vm3364
        %vm3397 = vmand %vm3333, %vm3365
        %vm3398 = vmand %vm3334, %vm3366
        %vm3399 = vmand %vm3335, %vm3367
        %vm3400 = vmand %vm3336, %vm3368
        %vm3401 = vmand %vm3337, %vm3369
        %vm3402 = vmand %vm3338, %vm3370
        %vm3403 = vmand %vm3339, %vm3371
        %vm3404 = vmand %vm3340, %vm3372
        %vm3405 = vmand %vm3341, %vm3373
        %vm3406 = vmand %vm3342, %vm3374
        %vm3407 = vmand %vm3343, %vm3375
        %vm3408 = vmand %vm3344, %vm3376
        %vm3409 = vmand %vm3345, %vm3377
        %vm3410 = vmand %vm3346, %vm3378
        %vm3411 = vmand %vm3347, %vm3379
        %vm3412 = vmand %vm3348, %vm3380
        %vm3413 = vmand %vm3349, %vm3381
        %vm3414 = vmand %vm3350, %vm3382
        %vm3415 = vmand %vm3351, %vm3383
        %vm3416 = vmand %vm3352, %vm3384
        %vm3417 = vmand %vm3353, %vm3385
        %vm3418 = vmand %vm3354, %vm3386
        %vm3419 = vmand %vm3355, %vm3387
        %vm3420 = vcmp.ge.f32.partialorder %v2328, 0.0
        %vm3421 = vcmp.ge.f32.partialorder %v2329, 0.0
        %vm3422 = vcmp.ge.f32.partialorder %v2330, 0.0
        %vm3423 = vcmp.ge.f32.partialorder %v2331, 0.0
        %vm3424 = vcmp.ge.f32.partialorder %v2332, 0.0
        %vm3425 = vcmp.ge.f32.partialorder %v2333, 0.0
        %vm3426 = vcmp.ge.f32.partialorder %v2334, 0.0
        %vm3427 = vcmp.ge.f32.partialorder %v2335, 0.0
        %vm3428 = vcmp.ge.f32.partialorder %v2336, 0.0
        %vm3429 = vcmp.ge.f32.partialorder %v2337, 0.0
        %vm3430 = vcmp.ge.f32.partialorder %v2338, 0.0
        %vm3431 = vcmp.ge.f32.partialorder %v2339, 0.0
        %vm3432 = vcmp.ge.f32.partialorder %v2340, 0.0
        %vm3433 = vcmp.ge.f32.partialorder %v2341, 0.0
        %vm3434 = vcmp.ge.f32.partialorder %v2342, 0.0
        %vm3435 = vcmp.ge.f32.partialorder %v2343, 0.0
        %vm3436 = vcmp.ge.f32.partialorder %v2344, 0.0
        %vm3437 = vcmp.ge.f32.partialorder %v2345, 0.0
        %vm3438 = vcmp.ge.f32.partialorder %v2346, 0.0
        %vm3439 = vcmp.ge.f32.partialorder %v2347, 0.0
        %vm3440 = vcmp.ge.f32.partialorder %v2348, 0.0
        %vm3441 = vcmp.ge.f32.partialorder %v2349, 0.0
        %vm3442 = vcmp.ge.f32.partialorder %v2350, 0.0
        %vm3443 = vcmp.ge.f32.partialorder %v2351, 0.0
        %vm3444 = vcmp.ge.f32.partialorder %v2352, 0.0
        %vm3445 = vcmp.ge.f32.partialorder %v2353, 0.0
        %vm3446 = vcmp.ge.f32.partialorder %v2354, 0.0
        %vm3447 = vcmp.ge.f32.partialorder %v2355, 0.0
        %vm3448 = vcmp.ge.f32.partialorder %v2356, 0.0
        %vm3449 = vcmp.ge.f32.partialorder %v2357, 0.0
        %vm3450 = vcmp.ge.f32.partialorder %v2358, 0.0
        %vm3451 = vcmp.ge.f32.partialorder %v2359, 0.0
        %vm3452 = vcmp.lt.f32.partialorder %v2328, 16.0
        %vm3453 = vcmp.lt.f32.partialorder %v2329, 16.0
        %vm3454 = vcmp.lt.f32.partialorder %v2330, 16.0
        %vm3455 = vcmp.lt.f32.partialorder %v2331, 16.0
        %vm3456 = vcmp.lt.f32.partialorder %v2332, 16.0
        %vm3457 = vcmp.lt.f32.partialorder %v2333, 16.0
        %vm3458 = vcmp.lt.f32.partialorder %v2334, 16.0
        %vm3459 = vcmp.lt.f32.partialorder %v2335, 16.0
        %vm3460 = vcmp.lt.f32.partialorder %v2336, 16.0
        %vm3461 = vcmp.lt.f32.partialorder %v2337, 16.0
        %vm3462 = vcmp.lt.f32.partialorder %v2338, 16.0
        %vm3463 = vcmp.lt.f32.partialorder %v2339, 16.0
        %vm3464 = vcmp.lt.f32.partialorder %v2340, 16.0
        %vm3465 = vcmp.lt.f32.partialorder %v2341, 16.0
        %vm3466 = vcmp.lt.f32.partialorder %v2342, 16.0
        %vm3467 = vcmp.lt.f32.partialorder %v2343, 16.0
        %vm3468 = vcmp.lt.f32.partialorder %v2344, 16.0
        %vm3469 = vcmp.lt.f32.partialorder %v2345, 16.0
        %vm3470 = vcmp.lt.f32.partialorder %v2346, 16.0
        %vm3471 = vcmp.lt.f32.partialorder %v2347, 16.0
        %vm3472 = vcmp.lt.f32.partialorder %v2348, 16.0
        %vm3473 = vcmp.lt.f32.partialorder %v2349, 16.0
        %vm3474 = vcmp.lt.f32.partialorder %v2350, 16.0
        %vm3475 = vcmp.lt.f32.partialorder %v2351, 16.0
        %vm3476 = vcmp.lt.f32.partialorder %v2352, 16.0
        %vm3477 = vcmp.lt.f32.partialorder %v2353, 16.0
        %vm3478 = vcmp.lt.f32.partialorder %v2354, 16.0
        %vm3479 = vcmp.lt.f32.partialorder %v2355, 16.0
        %vm3480 = vcmp.lt.f32.partialorder %v2356, 16.0
        %vm3481 = vcmp.lt.f32.partialorder %v2357, 16.0
        %vm3482 = vcmp.lt.f32.partialorder %v2358, 16.0
        %vm3483 = vcmp.lt.f32.partialorder %v2359, 16.0
        %vm3484 = vmand %vm3420, %vm3452
        %vm3485 = vmand %vm3421, %vm3453
        %vm3486 = vmand %vm3422, %vm3454
        %vm3487 = vmand %vm3423, %vm3455
        %vm3488 = vmand %vm3424, %vm3456
        %vm3489 = vmand %vm3425, %vm3457
        %vm3490 = vmand %vm3426, %vm3458
        %vm3491 = vmand %vm3427, %vm3459
        %vm3492 = vmand %vm3428, %vm3460
        %vm3493 = vmand %vm3429, %vm3461
        %vm3494 = vmand %vm3430, %vm3462
        %vm3495 = vmand %vm3431, %vm3463
        %vm3496 = vmand %vm3432, %vm3464
        %vm3497 = vmand %vm3433, %vm3465
        %vm3498 = vmand %vm3434, %vm3466
        %vm3499 = vmand %vm3435, %vm3467
        %vm3500 = vmand %vm3436, %vm3468
        %vm3501 = vmand %vm3437, %vm3469
        %vm3502 = vmand %vm3438, %vm3470
        %vm3503 = vmand %vm3439, %vm3471
        %vm3504 = vmand %vm3440, %vm3472
        %vm3505 = vmand %vm3441, %vm3473
        %vm3506 = vmand %vm3442, %vm3474
        %vm3507 = vmand %vm3443, %vm3475
        %vm3508 = vmand %vm3444, %vm3476
        %vm3509 = vmand %vm3445, %vm3477
        %vm3510 = vmand %vm3446, %vm3478
        %vm3511 = vmand %vm3447, %vm3479
        %vm3512 = vmand %vm3448, %vm3480
        %vm3513 = vmand %vm3449, %vm3481
        %vm3514 = vmand %vm3450, %vm3482
        %vm3515 = vmand %vm3451, %vm3483
        %vm3516 = vcmp.ge.f32.partialorder %v2360, 0.0
        %vm3517 = vcmp.ge.f32.partialorder %v2361, 0.0
        %vm3518 = vcmp.ge.f32.partialorder %v2362, 0.0
        %vm3519 = vcmp.ge.f32.partialorder %v2363, 0.0
        %vm3520 = vcmp.ge.f32.partialorder %v2364, 0.0
        %vm3521 = vcmp.ge.f32.partialorder %v2365, 0.0
        %vm3522 = vcmp.ge.f32.partialorder %v2366, 0.0
        %vm3523 = vcmp.ge.f32.partialorder %v2367, 0.0
        %vm3524 = vcmp.ge.f32.partialorder %v2368, 0.0
        %vm3525 = vcmp.ge.f32.partialorder %v2369, 0.0
        %vm3526 = vcmp.ge.f32.partialorder %v2370, 0.0
        %vm3527 = vcmp.ge.f32.partialorder %v2371, 0.0
        %vm3528 = vcmp.ge.f32.partialorder %v2372, 0.0
        %vm3529 = vcmp.ge.f32.partialorder %v2373, 0.0
        %vm3530 = vcmp.ge.f32.partialorder %v2374, 0.0
        %vm3531 = vcmp.ge.f32.partialorder %v2375, 0.0
        %vm3532 = vcmp.ge.f32.partialorder %v2376, 0.0
        %vm3533 = vcmp.ge.f32.partialorder %v2377, 0.0
        %vm3534 = vcmp.ge.f32.partialorder %v2378, 0.0
        %vm3535 = vcmp.ge.f32.partialorder %v2379, 0.0
        %vm3536 = vcmp.ge.f32.partialorder %v2380, 0.0
        %vm3537 = vcmp.ge.f32.partialorder %v2381, 0.0
        %vm3538 = vcmp.ge.f32.partialorder %v2382, 0.0
        %vm3539 = vcmp.ge.f32.partialorder %v2383, 0.0
        %vm3540 = vcmp.ge.f32.partialorder %v2384, 0.0
        %vm3541 = vcmp.ge.f32.partialorder %v2385, 0.0
        %vm3542 = vcmp.ge.f32.partialorder %v2386, 0.0
        %vm3543 = vcmp.ge.f32.partialorder %v2387, 0.0
        %vm3544 = vcmp.ge.f32.partialorder %v2388, 0.0
        %vm3545 = vcmp.ge.f32.partialorder %v2389, 0.0
        %vm3546 = vcmp.ge.f32.partialorder %v2390, 0.0
        %vm3547 = vcmp.ge.f32.partialorder %v2391, 0.0
        %vm3548 = vmand %vm3484, %vm3516
        %vm3549 = vmand %vm3485, %vm3517
        %vm3550 = vmand %vm3486, %vm3518
        %vm3551 = vmand %vm3487, %vm3519
        %vm3552 = vmand %vm3488, %vm3520
        %vm3553 = vmand %vm3489, %vm3521
        %vm3554 = vmand %vm3490, %vm3522
        %vm3555 = vmand %vm3491, %vm3523
        %vm3556 = vmand %vm3492, %vm3524
        %vm3557 = vmand %vm3493, %vm3525
        %vm3558 = vmand %vm3494, %vm3526
        %vm3559 = vmand %vm3495, %vm3527
        %vm3560 = vmand %vm3496, %vm3528
        %vm3561 = vmand %vm3497, %vm3529
        %vm3562 = vmand %vm3498, %vm3530
        %vm3563 = vmand %vm3499, %vm3531
        %vm3564 = vmand %vm3500, %vm3532
        %vm3565 = vmand %vm3501, %vm3533
        %vm3566 = vmand %vm3502, %vm3534
        %vm3567 = vmand %vm3503, %vm3535
        %vm3568 = vmand %vm3504, %vm3536
        %vm3569 = vmand %vm3505, %vm3537
        %vm3570 = vmand %vm3506, %vm3538
        %vm3571 = vmand %vm3507, %vm3539
        %vm3572 = vmand %vm3508, %vm3540
        %vm3573 = vmand %vm3509, %vm3541
        %vm3574 = vmand %vm3510, %vm3542
        %vm3575 = vmand %vm3511, %vm3543
        %vm3576 = vmand %vm3512, %vm3544
        %vm3577 = vmand %vm3513, %vm3545
        %vm3578 = vmand %vm3514, %vm3546
        %vm3579 = vmand %vm3515, %vm3547
        %vm3580 = vcmp.lt.f32.partialorder %v2360, 16.0
        %vm3581 = vcmp.lt.f32.partialorder %v2361, 16.0
        %vm3582 = vcmp.lt.f32.partialorder %v2362, 16.0
        %vm3583 = vcmp.lt.f32.partialorder %v2363, 16.0
        %vm3584 = vcmp.lt.f32.partialorder %v2364, 16.0
        %vm3585 = vcmp.lt.f32.partialorder %v2365, 16.0
        %vm3586 = vcmp.lt.f32.partialorder %v2366, 16.0
        %vm3587 = vcmp.lt.f32.partialorder %v2367, 16.0
        %vm3588 = vcmp.lt.f32.partialorder %v2368, 16.0
        %vm3589 = vcmp.lt.f32.partialorder %v2369, 16.0
        %vm3590 = vcmp.lt.f32.partialorder %v2370, 16.0
        %vm3591 = vcmp.lt.f32.partialorder %v2371, 16.0
        %vm3592 = vcmp.lt.f32.partialorder %v2372, 16.0
        %vm3593 = vcmp.lt.f32.partialorder %v2373, 16.0
        %vm3594 = vcmp.lt.f32.partialorder %v2374, 16.0
        %vm3595 = vcmp.lt.f32.partialorder %v2375, 16.0
        %vm3596 = vcmp.lt.f32.partialorder %v2376, 16.0
        %vm3597 = vcmp.lt.f32.partialorder %v2377, 16.0
        %vm3598 = vcmp.lt.f32.partialorder %v2378, 16.0
        %vm3599 = vcmp.lt.f32.partialorder %v2379, 16.0
        %vm3600 = vcmp.lt.f32.partialorder %v2380, 16.0
        %vm3601 = vcmp.lt.f32.partialorder %v2381, 16.0
        %vm3602 = vcmp.lt.f32.partialorder %v2382, 16.0
        %vm3603 = vcmp.lt.f32.partialorder %v2383, 16.0
        %vm3604 = vcmp.lt.f32.partialorder %v2384, 16.0
        %vm3605 = vcmp.lt.f32.partialorder %v2385, 16.0
        %vm3606 = vcmp.lt.f32.partialorder %v2386, 16.0
        %vm3607 = vcmp.lt.f32.partialorder %v2387, 16.0
        %vm3608 = vcmp.lt.f32.partialorder %v2388, 16.0
        %vm3609 = vcmp.lt.f32.partialorder %v2389, 16.0
        %vm3610 = vcmp.lt.f32.partialorder %v2390, 16.0
        %vm3611 = vcmp.lt.f32.partialorder %v2391, 16.0
        %vm3612 = vmand %vm3548, %vm3580
        %vm3613 = vmand %vm3549, %vm3581
        %vm3614 = vmand %vm3550, %vm3582
        %vm3615 = vmand %vm3551, %vm3583
        %vm3616 = vmand %vm3552, %vm3584
        %vm3617 = vmand %vm3553, %vm3585
        %vm3618 = vmand %vm3554, %vm3586
        %vm3619 = vmand %vm3555, %vm3587
        %vm3620 = vmand %vm3556, %vm3588
        %vm3621 = vmand %vm3557, %vm3589
        %vm3622 = vmand %vm3558, %vm3590
        %vm3623 = vmand %vm3559, %vm3591
        %vm3624 = vmand %vm3560, %vm3592
        %vm3625 = vmand %vm3561, %vm3593
        %vm3626 = vmand %vm3562, %vm3594
        %vm3627 = vmand %vm3563, %vm3595
        %vm3628 = vmand %vm3564, %vm3596
        %vm3629 = vmand %vm3565, %vm3597
        %vm3630 = vmand %vm3566, %vm3598
        %vm3631 = vmand %vm3567, %vm3599
        %vm3632 = vmand %vm3568, %vm3600
        %vm3633 = vmand %vm3569, %vm3601
        %vm3634 = vmand %vm3570, %vm3602
        %vm3635 = vmand %vm3571, %vm3603
        %vm3636 = vmand %vm3572, %vm3604
        %vm3637 = vmand %vm3573, %vm3605
        %vm3638 = vmand %vm3574, %vm3606
        %vm3639 = vmand %vm3575, %vm3607
        %vm3640 = vmand %vm3576, %vm3608
        %vm3641 = vmand %vm3577, %vm3609
        %vm3642 = vmand %vm3578, %vm3610
        %vm3643 = vmand %vm3579, %vm3611
        %v3644 = vlaneseq
        %v3645 = vshrl.u32 %v3644, 7
        %v3646 = vadd.s32 %v3645, 8
        %v3647 = vadd.s32 %v3645, 16
        %v3648 = vadd.s32 %v3645, 24
        %v3649 = vadd.s32 %v3645, 32
        %v3650 = vadd.s32 %v3645, 40
        %v3651 = vadd.s32 %v3645, 48
        %v3652 = vadd.s32 %v3645, 56
        %v3653 = vadd.s32 %v3645, 64
        %v3654 = vadd.s32 %v3645, 72
        %v3655 = vadd.s32 %v3645, 80
        %v3656 = vadd.s32 %v3645, 88
        %v3657 = vadd.s32 %v3645, 96
        %v3658 = vadd.s32 %v3645, 104
        %v3659 = vadd.s32 %v3645, 112
        %v3660 = vadd.s32 %v3645, 120
        %v3661 = vadd.s32 %v3645, 128
        %v3662 = vadd.s32 %v3645, 136
        %v3663 = vadd.s32 %v3645, 144
        %v3664 = vadd.s32 %v3645, 152
        %v3665 = vadd.s32 %v3645, 160
        %v3666 = vadd.s32 %v3645, 168
        %v3667 = vadd.s32 %v3645, 176
        %v3668 = vadd.s32 %v3645, 184
        %v3669 = vadd.s32 %v3645, 192
        %v3670 = vadd.s32 %v3645, 200
        %v3671 = vadd.s32 %v3645, 208
        %v3672 = vadd.s32 %v3645, 216
        %v3673 = vadd.s32 %v3645, 224
        %v3674 = vadd.s32 %v3645, 232
        %v3675 = vadd.s32 %v3645, 240
        %v3676 = vadd.s32 %v3645, 248
        %v3677 = vlaneseq
        %v3678 = vand.u32 %v3677, 127
        %s3679 = smul.u32 %s27, 256
        %v3680 = vstv %s3679
        %v3681 = vadd.s32 %v3680, %v3645
        %v3682 = vadd.s32 %v3680, %v3646
        %v3683 = vadd.s32 %v3680, %v3647
        %v3684 = vadd.s32 %v3680, %v3648
        %v3685 = vadd.s32 %v3680, %v3649
        %v3686 = vadd.s32 %v3680, %v3650
        %v3687 = vadd.s32 %v3680, %v3651
        %v3688 = vadd.s32 %v3680, %v3652
        %v3689 = vadd.s32 %v3680, %v3653
        %v3690 = vadd.s32 %v3680, %v3654
        %v3691 = vadd.s32 %v3680, %v3655
        %v3692 = vadd.s32 %v3680, %v3656
        %v3693 = vadd.s32 %v3680, %v3657
        %v3694 = vadd.s32 %v3680, %v3658
        %v3695 = vadd.s32 %v3680, %v3659
        %v3696 = vadd.s32 %v3680, %v3660
        %v3697 = vadd.s32 %v3680, %v3661
        %v3698 = vadd.s32 %v3680, %v3662
        %v3699 = vadd.s32 %v3680, %v3663
        %v3700 = vadd.s32 %v3680, %v3664
        %v3701 = vadd.s32 %v3680, %v3665
        %v3702 = vadd.s32 %v3680, %v3666
        %v3703 = vadd.s32 %v3680, %v3667
        %v3704 = vadd.s32 %v3680, %v3668
        %v3705 = vadd.s32 %v3680, %v3669
        %v3706 = vadd.s32 %v3680, %v3670
        %v3707 = vadd.s32 %v3680, %v3671
        %v3708 = vadd.s32 %v3680, %v3672
        %v3709 = vadd.s32 %v3680, %v3673
        %v3710 = vadd.s32 %v3680, %v3674
        %v3711 = vadd.s32 %v3680, %v3675
        %v3712 = vadd.s32 %v3680, %v3676
        %v3713 = vmul.u32 %v3681, 128
        %v3714 = vmul.u32 %v3682, 128
        %v3715 = vmul.u32 %v3683, 128
        %v3716 = vmul.u32 %v3684, 128
        %v3717 = vmul.u32 %v3685, 128
        %v3718 = vmul.u32 %v3686, 128
        %v3719 = vmul.u32 %v3687, 128
        %v3720 = vmul.u32 %v3688, 128
        %v3721 = vmul.u32 %v3689, 128
        %v3722 = vmul.u32 %v3690, 128
        %v3723 = vmul.u32 %v3691, 128
        %v3724 = vmul.u32 %v3692, 128
        %v3725 = vmul.u32 %v3693, 128
        %v3726 = vmul.u32 %v3694, 128
        %v3727 = vmul.u32 %v3695, 128
        %v3728 = vmul.u32 %v3696, 128
        %v3729 = vmul.u32 %v3697, 128
        %v3730 = vmul.u32 %v3698, 128
        %v3731 = vmul.u32 %v3699, 128
        %v3732 = vmul.u32 %v3700, 128
        %v3733 = vmul.u32 %v3701, 128
        %v3734 = vmul.u32 %v3702, 128
        %v3735 = vmul.u32 %v3703, 128
        %v3736 = vmul.u32 %v3704, 128
        %v3737 = vmul.u32 %v3705, 128
        %v3738 = vmul.u32 %v3706, 128
        %v3739 = vmul.u32 %v3707, 128
        %v3740 = vmul.u32 %v3708, 128
        %v3741 = vmul.u32 %v3709, 128
        %v3742 = vmul.u32 %v3710, 128
        %v3743 = vmul.u32 %v3711, 128
        %v3744 = vmul.u32 %v3712, 128
        %v3745 = vadd.s32 %v3713, %v3678
        %v3746 = vadd.s32 %v3714, %v3678
        %v3747 = vadd.s32 %v3715, %v3678
        %v3748 = vadd.s32 %v3716, %v3678
        %v3749 = vadd.s32 %v3717, %v3678
        %v3750 = vadd.s32 %v3718, %v3678
        %v3751 = vadd.s32 %v3719, %v3678
        %v3752 = vadd.s32 %v3720, %v3678
        %v3753 = vadd.s32 %v3721, %v3678
        %v3754 = vadd.s32 %v3722, %v3678
        %v3755 = vadd.s32 %v3723, %v3678
        %v3756 = vadd.s32 %v3724, %v3678
        %v3757 = vadd.s32 %v3725, %v3678
        %v3758 = vadd.s32 %v3726, %v3678
        %v3759 = vadd.s32 %v3727, %v3678
        %v3760 = vadd.s32 %v3728, %v3678
        %v3761 = vadd.s32 %v3729, %v3678
        %v3762 = vadd.s32 %v3730, %v3678
        %v3763 = vadd.s32 %v3731, %v3678
        %v3764 = vadd.s32 %v3732, %v3678
        %v3765 = vadd.s32 %v3733, %v3678
        %v3766 = vadd.s32 %v3734, %v3678
        %v3767 = vadd.s32 %v3735, %v3678
        %v3768 = vadd.s32 %v3736, %v3678
        %v3769 = vadd.s32 %v3737, %v3678
        %v3770 = vadd.s32 %v3738, %v3678
        %v3771 = vadd.s32 %v3739, %v3678
        %v3772 = vadd.s32 %v3740, %v3678
        %v3773 = vadd.s32 %v3741, %v3678
        %v3774 = vadd.s32 %v3742, %v3678
        %v3775 = vadd.s32 %v3743, %v3678
        %v3776 = vadd.s32 %v3744, %v3678
        %vm3777 = vcmp.lt.s32.totalorder %v3745, 256
        %vm3778 = vcmp.lt.s32.totalorder %v3746, 256
        %vm3779 = vcmp.lt.s32.totalorder %v3747, 256
        %vm3780 = vcmp.lt.s32.totalorder %v3748, 256
        %vm3781 = vcmp.lt.s32.totalorder %v3749, 256
        %vm3782 = vcmp.lt.s32.totalorder %v3750, 256
        %vm3783 = vcmp.lt.s32.totalorder %v3751, 256
        %vm3784 = vcmp.lt.s32.totalorder %v3752, 256
        %vm3785 = vcmp.lt.s32.totalorder %v3753, 256
        %vm3786 = vcmp.lt.s32.totalorder %v3754, 256
        %vm3787 = vcmp.lt.s32.totalorder %v3755, 256
        %vm3788 = vcmp.lt.s32.totalorder %v3756, 256
        %vm3789 = vcmp.lt.s32.totalorder %v3757, 256
        %vm3790 = vcmp.lt.s32.totalorder %v3758, 256
        %vm3791 = vcmp.lt.s32.totalorder %v3759, 256
        %vm3792 = vcmp.lt.s32.totalorder %v3760, 256
        %vm3793 = vcmp.lt.s32.totalorder %v3761, 256
        %vm3794 = vcmp.lt.s32.totalorder %v3762, 256
        %vm3795 = vcmp.lt.s32.totalorder %v3763, 256
        %vm3796 = vcmp.lt.s32.totalorder %v3764, 256
        %vm3797 = vcmp.lt.s32.totalorder %v3765, 256
        %vm3798 = vcmp.lt.s32.totalorder %v3766, 256
        %vm3799 = vcmp.lt.s32.totalorder %v3767, 256
        %vm3800 = vcmp.lt.s32.totalorder %v3768, 256
        %vm3801 = vcmp.lt.s32.totalorder %v3769, 256
        %vm3802 = vcmp.lt.s32.totalorder %v3770, 256
        %vm3803 = vcmp.lt.s32.totalorder %v3771, 256
        %vm3804 = vcmp.lt.s32.totalorder %v3772, 256
        %vm3805 = vcmp.lt.s32.totalorder %v3773, 256
        %vm3806 = vcmp.lt.s32.totalorder %v3774, 256
        %vm3807 = vcmp.lt.s32.totalorder %v3775, 256
        %vm3808 = vcmp.lt.s32.totalorder %v3776, 256
        %vm3809 = vmand %vm2296, %vm3612
        %vm3810 = vmand %vm2297, %vm3613
        %vm3811 = vmand %vm2298, %vm3614
        %vm3812 = vmand %vm2299, %vm3615
        %vm3813 = vmand %vm2300, %vm3616
        %vm3814 = vmand %vm2301, %vm3617
        %vm3815 = vmand %vm2302, %vm3618
        %vm3816 = vmand %vm2303, %vm3619
        %vm3817 = vmand %vm2304, %vm3620
        %vm3818 = vmand %vm2305, %vm3621
        %vm3819 = vmand %vm2306, %vm3622
        %vm3820 = vmand %vm2307, %vm3623
        %vm3821 = vmand %vm2308, %vm3624
        %vm3822 = vmand %vm2309, %vm3625
        %vm3823 = vmand %vm2310, %vm3626
        %vm3824 = vmand %vm2311, %vm3627
        %vm3825 = vmand %vm2312, %vm3628
        %vm3826 = vmand %vm2313, %vm3629
        %vm3827 = vmand %vm2314, %vm3630
        %vm3828 = vmand %vm2315, %vm3631
        %vm3829 = vmand %vm2316, %vm3632
        %vm3830 = vmand %vm2317, %vm3633
        %vm3831 = vmand %vm2318, %vm3634
        %vm3832 = vmand %vm2319, %vm3635
        %vm3833 = vmand %vm2320, %vm3636
        %vm3834 = vmand %vm2321, %vm3637
        %vm3835 = vmand %vm2322, %vm3638
        %vm3836 = vmand %vm2323, %vm3639
        %vm3837 = vmand %vm2324, %vm3640
        %vm3838 = vmand %vm2325, %vm3641
        %vm3839 = vmand %vm2326, %vm3642
        %vm3840 = vmand %vm2327, %vm3643
        %vm3841 = vmand %vm3809, %vm3388
        %vm3842 = vmand %vm3810, %vm3389
        %vm3843 = vmand %vm3811, %vm3390
        %vm3844 = vmand %vm3812, %vm3391
        %vm3845 = vmand %vm3813, %vm3392
        %vm3846 = vmand %vm3814, %vm3393
        %vm3847 = vmand %vm3815, %vm3394
        %vm3848 = vmand %vm3816, %vm3395
        %vm3849 = vmand %vm3817, %vm3396
        %vm3850 = vmand %vm3818, %vm3397
        %vm3851 = vmand %vm3819, %vm3398
        %vm3852 = vmand %vm3820, %vm3399
        %vm3853 = vmand %vm3821, %vm3400
        %vm3854 = vmand %vm3822, %vm3401
        %vm3855 = vmand %vm3823, %vm3402
        %vm3856 = vmand %vm3824, %vm3403
        %vm3857 = vmand %vm3825, %vm3404
        %vm3858 = vmand %vm3826, %vm3405
        %vm3859 = vmand %vm3827, %vm3406
        %vm3860 = vmand %vm3828, %vm3407
        %vm3861 = vmand %vm3829, %vm3408
        %vm3862 = vmand %vm3830, %vm3409
        %vm3863 = vmand %vm3831, %vm3410
        %vm3864 = vmand %vm3832, %vm3411
        %vm3865 = vmand %vm3833, %vm3412
        %vm3866 = vmand %vm3834, %vm3413
        %vm3867 = vmand %vm3835, %vm3414
        %vm3868 = vmand %vm3836, %vm3415
        %vm3869 = vmand %vm3837, %vm3416
        %vm3870 = vmand %vm3838, %vm3417
        %vm3871 = vmand %vm3839, %vm3418
        %vm3872 = vmand %vm3840, %vm3419
        %vm3873 = vmand %vm3841, %vm3777
        %vm3874 = vmand %vm3842, %vm3778
        %vm3875 = vmand %vm3843, %vm3779
        %vm3876 = vmand %vm3844, %vm3780
        %vm3877 = vmand %vm3845, %vm3781
        %vm3878 = vmand %vm3846, %vm3782
        %vm3879 = vmand %vm3847, %vm3783
        %vm3880 = vmand %vm3848, %vm3784
        %vm3881 = vmand %vm3849, %vm3785
        %vm3882 = vmand %vm3850, %vm3786
        %vm3883 = vmand %vm3851, %vm3787
        %vm3884 = vmand %vm3852, %vm3788
        %vm3885 = vmand %vm3853, %vm3789
        %vm3886 = vmand %vm3854, %vm3790
        %vm3887 = vmand %vm3855, %vm3791
        %vm3888 = vmand %vm3856, %vm3792
        %vm3889 = vmand %vm3857, %vm3793
        %vm3890 = vmand %vm3858, %vm3794
        %vm3891 = vmand %vm3859, %vm3795
        %vm3892 = vmand %vm3860, %vm3796
        %vm3893 = vmand %vm3861, %vm3797
        %vm3894 = vmand %vm3862, %vm3798
        %vm3895 = vmand %vm3863, %vm3799
        %vm3896 = vmand %vm3864, %vm3800
        %vm3897 = vmand %vm3865, %vm3801
        %vm3898 = vmand %vm3866, %vm3802
        %vm3899 = vmand %vm3867, %vm3803
        %vm3900 = vmand %vm3868, %vm3804
        %vm3901 = vmand %vm3869, %vm3805
        %vm3902 = vmand %vm3870, %vm3806
        %vm3903 = vmand %vm3871, %vm3807
        %vm3904 = vmand %vm3872, %vm3808
        %v3905 = vcvt.f32.s32.to.zero.pseudo %v2328
        %v3906 = vcvt.f32.s32.to.zero.pseudo %v2329
        %v3907 = vcvt.f32.s32.to.zero.pseudo %v2330
        %v3908 = vcvt.f32.s32.to.zero.pseudo %v2331
        %v3909 = vcvt.f32.s32.to.zero.pseudo %v2332
        %v3910 = vcvt.f32.s32.to.zero.pseudo %v2333
        %v3911 = vcvt.f32.s32.to.zero.pseudo %v2334
        %v3912 = vcvt.f32.s32.to.zero.pseudo %v2335
        %v3913 = vcvt.f32.s32.to.zero.pseudo %v2336
        %v3914 = vcvt.f32.s32.to.zero.pseudo %v2337
        %v3915 = vcvt.f32.s32.to.zero.pseudo %v2338
        %v3916 = vcvt.f32.s32.to.zero.pseudo %v2339
        %v3917 = vcvt.f32.s32.to.zero.pseudo %v2340
        %v3918 = vcvt.f32.s32.to.zero.pseudo %v2341
        %v3919 = vcvt.f32.s32.to.zero.pseudo %v2342
        %v3920 = vcvt.f32.s32.to.zero.pseudo %v2343
        %v3921 = vcvt.f32.s32.to.zero.pseudo %v2344
        %v3922 = vcvt.f32.s32.to.zero.pseudo %v2345
        %v3923 = vcvt.f32.s32.to.zero.pseudo %v2346
        %v3924 = vcvt.f32.s32.to.zero.pseudo %v2347
        %v3925 = vcvt.f32.s32.to.zero.pseudo %v2348
        %v3926 = vcvt.f32.s32.to.zero.pseudo %v2349
        %v3927 = vcvt.f32.s32.to.zero.pseudo %v2350
        %v3928 = vcvt.f32.s32.to.zero.pseudo %v2351
        %v3929 = vcvt.f32.s32.to.zero.pseudo %v2352
        %v3930 = vcvt.f32.s32.to.zero.pseudo %v2353
        %v3931 = vcvt.f32.s32.to.zero.pseudo %v2354
        %v3932 = vcvt.f32.s32.to.zero.pseudo %v2355
        %v3933 = vcvt.f32.s32.to.zero.pseudo %v2356
        %v3934 = vcvt.f32.s32.to.zero.pseudo %v2357
        %v3935 = vcvt.f32.s32.to.zero.pseudo %v2358
        %v3936 = vcvt.f32.s32.to.zero.pseudo %v2359
        %v3937 = vcvt.f32.s32.to.zero.pseudo %v2360
        %v3938 = vcvt.f32.s32.to.zero.pseudo %v2361
        %v3939 = vcvt.f32.s32.to.zero.pseudo %v2362
        %v3940 = vcvt.f32.s32.to.zero.pseudo %v2363
        %v3941 = vcvt.f32.s32.to.zero.pseudo %v2364
        %v3942 = vcvt.f32.s32.to.zero.pseudo %v2365
        %v3943 = vcvt.f32.s32.to.zero.pseudo %v2366
        %v3944 = vcvt.f32.s32.to.zero.pseudo %v2367
        %v3945 = vcvt.f32.s32.to.zero.pseudo %v2368
        %v3946 = vcvt.f32.s32.to.zero.pseudo %v2369
        %v3947 = vcvt.f32.s32.to.zero.pseudo %v2370
        %v3948 = vcvt.f32.s32.to.zero.pseudo %v2371
        %v3949 = vcvt.f32.s32.to.zero.pseudo %v2372
        %v3950 = vcvt.f32.s32.to.zero.pseudo %v2373
        %v3951 = vcvt.f32.s32.to.zero.pseudo %v2374
        %v3952 = vcvt.f32.s32.to.zero.pseudo %v2375
        %v3953 = vcvt.f32.s32.to.zero.pseudo %v2376
        %v3954 = vcvt.f32.s32.to.zero.pseudo %v2377
        %v3955 = vcvt.f32.s32.to.zero.pseudo %v2378
        %v3956 = vcvt.f32.s32.to.zero.pseudo %v2379
        %v3957 = vcvt.f32.s32.to.zero.pseudo %v2380
        %v3958 = vcvt.f32.s32.to.zero.pseudo %v2381
        %v3959 = vcvt.f32.s32.to.zero.pseudo %v2382
        %v3960 = vcvt.f32.s32.to.zero.pseudo %v2383
        %v3961 = vcvt.f32.s32.to.zero.pseudo %v2384
        %v3962 = vcvt.f32.s32.to.zero.pseudo %v2385
        %v3963 = vcvt.f32.s32.to.zero.pseudo %v2386
        %v3964 = vcvt.f32.s32.to.zero.pseudo %v2387
        %v3965 = vcvt.f32.s32.to.zero.pseudo %v2388
        %v3966 = vcvt.f32.s32.to.zero.pseudo %v2389
        %v3967 = vcvt.f32.s32.to.zero.pseudo %v2390
        %v3968 = vcvt.f32.s32.to.zero.pseudo %v2391
        %v3969 = vcvt.s32.f32 %v3068
        %v3970 = vcvt.s32.f32 %v3069
        %v3971 = vcvt.s32.f32 %v3070
        %v3972 = vcvt.s32.f32 %v3071
        %v3973 = vcvt.s32.f32 %v3072
        %v3974 = vcvt.s32.f32 %v3073
        %v3975 = vcvt.s32.f32 %v3074
        %v3976 = vcvt.s32.f32 %v3075
        %v3977 = vcvt.s32.f32 %v3076
        %v3978 = vcvt.s32.f32 %v3077
        %v3979 = vcvt.s32.f32 %v3078
        %v3980 = vcvt.s32.f32 %v3079
        %v3981 = vcvt.s32.f32 %v3080
        %v3982 = vcvt.s32.f32 %v3081
        %v3983 = vcvt.s32.f32 %v3082
        %v3984 = vcvt.s32.f32 %v3083
        %v3985 = vcvt.s32.f32 %v3084
        %v3986 = vcvt.s32.f32 %v3085
        %v3987 = vcvt.s32.f32 %v3086
        %v3988 = vcvt.s32.f32 %v3087
        %v3989 = vcvt.s32.f32 %v3088
        %v3990 = vcvt.s32.f32 %v3089
        %v3991 = vcvt.s32.f32 %v3090
        %v3992 = vcvt.s32.f32 %v3091
        %v3993 = vcvt.s32.f32 %v3092
        %v3994 = vcvt.s32.f32 %v3093
        %v3995 = vcvt.s32.f32 %v3094
        %v3996 = vcvt.s32.f32 %v3095
        %v3997 = vcvt.s32.f32 %v3096
        %v3998 = vcvt.s32.f32 %v3097
        %v3999 = vcvt.s32.f32 %v3098
        %v4000 = vcvt.s32.f32 %v3099
        %v4001 = vrcp.pop 0.3
        %v4002 = vmul.f32 %v3969, %v4001
        %v4003 = vmul.f32 %v3970, %v4001
        %v4004 = vmul.f32 %v3971, %v4001
        %v4005 = vmul.f32 %v3972, %v4001
        %v4006 = vmul.f32 %v3973, %v4001
        %v4007 = vmul.f32 %v3974, %v4001
        %v4008 = vmul.f32 %v3975, %v4001
        %v4009 = vmul.f32 %v3976, %v4001
        %v4010 = vmul.f32 %v3977, %v4001
        %v4011 = vmul.f32 %v3978, %v4001
        %v4012 = vmul.f32 %v3979, %v4001
        %v4013 = vmul.f32 %v3980, %v4001
        %v4014 = vmul.f32 %v3981, %v4001
        %v4015 = vmul.f32 %v3982, %v4001
        %v4016 = vmul.f32 %v3983, %v4001
        %v4017 = vmul.f32 %v3984, %v4001
        %v4018 = vmul.f32 %v3985, %v4001
        %v4019 = vmul.f32 %v3986, %v4001
        %v4020 = vmul.f32 %v3987, %v4001
        %v4021 = vmul.f32 %v3988, %v4001
        %v4022 = vmul.f32 %v3989, %v4001
        %v4023 = vmul.f32 %v3990, %v4001
        %v4024 = vmul.f32 %v3991, %v4001
        %v4025 = vmul.f32 %v3992, %v4001
        %v4026 = vmul.f32 %v3993, %v4001
        %v4027 = vmul.f32 %v3994, %v4001
        %v4028 = vmul.f32 %v3995, %v4001
        %v4029 = vmul.f32 %v3996, %v4001
        %v4030 = vmul.f32 %v3997, %v4001
        %v4031 = vmul.f32 %v3998, %v4001
        %v4032 = vmul.f32 %v3999, %v4001
        %v4033 = vmul.f32 %v4000, %v4001
        %v4034 = vcvt.f32.s32.to.zero.pseudo %v4002
        %v4035 = vcvt.f32.s32.to.zero.pseudo %v4003
        %v4036 = vcvt.f32.s32.to.zero.pseudo %v4004
        %v4037 = vcvt.f32.s32.to.zero.pseudo %v4005
        %v4038 = vcvt.f32.s32.to.zero.pseudo %v4006
        %v4039 = vcvt.f32.s32.to.zero.pseudo %v4007
        %v4040 = vcvt.f32.s32.to.zero.pseudo %v4008
        %v4041 = vcvt.f32.s32.to.zero.pseudo %v4009
        %v4042 = vcvt.f32.s32.to.zero.pseudo %v4010
        %v4043 = vcvt.f32.s32.to.zero.pseudo %v4011
        %v4044 = vcvt.f32.s32.to.zero.pseudo %v4012
        %v4045 = vcvt.f32.s32.to.zero.pseudo %v4013
        %v4046 = vcvt.f32.s32.to.zero.pseudo %v4014
        %v4047 = vcvt.f32.s32.to.zero.pseudo %v4015
        %v4048 = vcvt.f32.s32.to.zero.pseudo %v4016
        %v4049 = vcvt.f32.s32.to.zero.pseudo %v4017
        %v4050 = vcvt.f32.s32.to.zero.pseudo %v4018
        %v4051 = vcvt.f32.s32.to.zero.pseudo %v4019
        %v4052 = vcvt.f32.s32.to.zero.pseudo %v4020
        %v4053 = vcvt.f32.s32.to.zero.pseudo %v4021
        %v4054 = vcvt.f32.s32.to.zero.pseudo %v4022
        %v4055 = vcvt.f32.s32.to.zero.pseudo %v4023
        %v4056 = vcvt.f32.s32.to.zero.pseudo %v4024
        %v4057 = vcvt.f32.s32.to.zero.pseudo %v4025
        %v4058 = vcvt.f32.s32.to.zero.pseudo %v4026
        %v4059 = vcvt.f32.s32.to.zero.pseudo %v4027
        %v4060 = vcvt.f32.s32.to.zero.pseudo %v4028
        %v4061 = vcvt.f32.s32.to.zero.pseudo %v4029
        %v4062 = vcvt.f32.s32.to.zero.pseudo %v4030
        %v4063 = vcvt.f32.s32.to.zero.pseudo %v4031
        %v4064 = vcvt.f32.s32.to.zero.pseudo %v4032
        %v4065 = vcvt.f32.s32.to.zero.pseudo %v4033
        %v4066 = vcvt.s32.f32 %v3100
        %v4067 = vcvt.s32.f32 %v3101
        %v4068 = vcvt.s32.f32 %v3102
        %v4069 = vcvt.s32.f32 %v3103
        %v4070 = vcvt.s32.f32 %v3104
        %v4071 = vcvt.s32.f32 %v3105
        %v4072 = vcvt.s32.f32 %v3106
        %v4073 = vcvt.s32.f32 %v3107
        %v4074 = vcvt.s32.f32 %v3108
        %v4075 = vcvt.s32.f32 %v3109
        %v4076 = vcvt.s32.f32 %v3110
        %v4077 = vcvt.s32.f32 %v3111
        %v4078 = vcvt.s32.f32 %v3112
        %v4079 = vcvt.s32.f32 %v3113
        %v4080 = vcvt.s32.f32 %v3114
        %v4081 = vcvt.s32.f32 %v3115
        %v4082 = vcvt.s32.f32 %v3116
        %v4083 = vcvt.s32.f32 %v3117
        %v4084 = vcvt.s32.f32 %v3118
        %v4085 = vcvt.s32.f32 %v3119
        %v4086 = vcvt.s32.f32 %v3120
        %v4087 = vcvt.s32.f32 %v3121
        %v4088 = vcvt.s32.f32 %v3122
        %v4089 = vcvt.s32.f32 %v3123
        %v4090 = vcvt.s32.f32 %v3124
        %v4091 = vcvt.s32.f32 %v3125
        %v4092 = vcvt.s32.f32 %v3126
        %v4093 = vcvt.s32.f32 %v3127
        %v4094 = vcvt.s32.f32 %v3128
        %v4095 = vcvt.s32.f32 %v3129
        %v4096 = vcvt.s32.f32 %v3130
        %v4097 = vcvt.s32.f32 %v3131
        %v4098 = vmul.f32 %v4066, %v4001
        %v4099 = vmul.f32 %v4067, %v4001
        %v4100 = vmul.f32 %v4068, %v4001
        %v4101 = vmul.f32 %v4069, %v4001
        %v4102 = vmul.f32 %v4070, %v4001
        %v4103 = vmul.f32 %v4071, %v4001
        %v4104 = vmul.f32 %v4072, %v4001
        %v4105 = vmul.f32 %v4073, %v4001
        %v4106 = vmul.f32 %v4074, %v4001
        %v4107 = vmul.f32 %v4075, %v4001
        %v4108 = vmul.f32 %v4076, %v4001
        %v4109 = vmul.f32 %v4077, %v4001
        %v4110 = vmul.f32 %v4078, %v4001
        %v4111 = vmul.f32 %v4079, %v4001
        %v4112 = vmul.f32 %v4080, %v4001
        %v4113 = vmul.f32 %v4081, %v4001
        %v4114 = vmul.f32 %v4082, %v4001
        %v4115 = vmul.f32 %v4083, %v4001
        %v4116 = vmul.f32 %v4084, %v4001
        %v4117 = vmul.f32 %v4085, %v4001
        %v4118 = vmul.f32 %v4086, %v4001
        %v4119 = vmul.f32 %v4087, %v4001
        %v4120 = vmul.f32 %v4088, %v4001
        %v4121 = vmul.f32 %v4089, %v4001
        %v4122 = vmul.f32 %v4090, %v4001
        %v4123 = vmul.f32 %v4091, %v4001
        %v4124 = vmul.f32 %v4092, %v4001
        %v4125 = vmul.f32 %v4093, %v4001
        %v4126 = vmul.f32 %v4094, %v4001
        %v4127 = vmul.f32 %v4095, %v4001
        %v4128 = vmul.f32 %v4096, %v4001
        %v4129 = vmul.f32 %v4097, %v4001
        %v4130 = vcvt.f32.s32.to.zero.pseudo %v4098
        %v4131 = vcvt.f32.s32.to.zero.pseudo %v4099
        %v4132 = vcvt.f32.s32.to.zero.pseudo %v4100
        %v4133 = vcvt.f32.s32.to.zero.pseudo %v4101
        %v4134 = vcvt.f32.s32.to.zero.pseudo %v4102
        %v4135 = vcvt.f32.s32.to.zero.pseudo %v4103
        %v4136 = vcvt.f32.s32.to.zero.pseudo %v4104
        %v4137 = vcvt.f32.s32.to.zero.pseudo %v4105
        %v4138 = vcvt.f32.s32.to.zero.pseudo %v4106
        %v4139 = vcvt.f32.s32.to.zero.pseudo %v4107
        %v4140 = vcvt.f32.s32.to.zero.pseudo %v4108
        %v4141 = vcvt.f32.s32.to.zero.pseudo %v4109
        %v4142 = vcvt.f32.s32.to.zero.pseudo %v4110
        %v4143 = vcvt.f32.s32.to.zero.pseudo %v4111
        %v4144 = vcvt.f32.s32.to.zero.pseudo %v4112
        %v4145 = vcvt.f32.s32.to.zero.pseudo %v4113
        %v4146 = vcvt.f32.s32.to.zero.pseudo %v4114
        %v4147 = vcvt.f32.s32.to.zero.pseudo %v4115
        %v4148 = vcvt.f32.s32.to.zero.pseudo %v4116
        %v4149 = vcvt.f32.s32.to.zero.pseudo %v4117
        %v4150 = vcvt.f32.s32.to.zero.pseudo %v4118
        %v4151 = vcvt.f32.s32.to.zero.pseudo %v4119
        %v4152 = vcvt.f32.s32.to.zero.pseudo %v4120
        %v4153 = vcvt.f32.s32.to.zero.pseudo %v4121
        %v4154 = vcvt.f32.s32.to.zero.pseudo %v4122
        %v4155 = vcvt.f32.s32.to.zero.pseudo %v4123
        %v4156 = vcvt.f32.s32.to.zero.pseudo %v4124
        %v4157 = vcvt.f32.s32.to.zero.pseudo %v4125
        %v4158 = vcvt.f32.s32.to.zero.pseudo %v4126
        %v4159 = vcvt.f32.s32.to.zero.pseudo %v4127
        %v4160 = vcvt.f32.s32.to.zero.pseudo %v4128
        %v4161 = vcvt.f32.s32.to.zero.pseudo %v4129
        %vm4162 = vcmp.lt.s32.totalorder %v4034, 0
        %vm4163 = vcmp.lt.s32.totalorder %v4035, 0
        %vm4164 = vcmp.lt.s32.totalorder %v4036, 0
        %vm4165 = vcmp.lt.s32.totalorder %v4037, 0
        %vm4166 = vcmp.lt.s32.totalorder %v4038, 0
        %vm4167 = vcmp.lt.s32.totalorder %v4039, 0
        %vm4168 = vcmp.lt.s32.totalorder %v4040, 0
        %vm4169 = vcmp.lt.s32.totalorder %v4041, 0
        %vm4170 = vcmp.lt.s32.totalorder %v4042, 0
        %vm4171 = vcmp.lt.s32.totalorder %v4043, 0
        %vm4172 = vcmp.lt.s32.totalorder %v4044, 0
        %vm4173 = vcmp.lt.s32.totalorder %v4045, 0
        %vm4174 = vcmp.lt.s32.totalorder %v4046, 0
        %vm4175 = vcmp.lt.s32.totalorder %v4047, 0
        %vm4176 = vcmp.lt.s32.totalorder %v4048, 0
        %vm4177 = vcmp.lt.s32.totalorder %v4049, 0
        %vm4178 = vcmp.lt.s32.totalorder %v4050, 0
        %vm4179 = vcmp.lt.s32.totalorder %v4051, 0
        %vm4180 = vcmp.lt.s32.totalorder %v4052, 0
        %vm4181 = vcmp.lt.s32.totalorder %v4053, 0
        %vm4182 = vcmp.lt.s32.totalorder %v4054, 0
        %vm4183 = vcmp.lt.s32.totalorder %v4055, 0
        %vm4184 = vcmp.lt.s32.totalorder %v4056, 0
        %vm4185 = vcmp.lt.s32.totalorder %v4057, 0
        %vm4186 = vcmp.lt.s32.totalorder %v4058, 0
        %vm4187 = vcmp.lt.s32.totalorder %v4059, 0
        %vm4188 = vcmp.lt.s32.totalorder %v4060, 0
        %vm4189 = vcmp.lt.s32.totalorder %v4061, 0
        %vm4190 = vcmp.lt.s32.totalorder %v4062, 0
        %vm4191 = vcmp.lt.s32.totalorder %v4063, 0
        %vm4192 = vcmp.lt.s32.totalorder %v4064, 0
        %vm4193 = vcmp.lt.s32.totalorder %v4065, 0
        %v4194 = vsel %vm4162, 180, 0
        %v4195 = vsel %vm4163, 180, 0
        %v4196 = vsel %vm4164, 180, 0
        %v4197 = vsel %vm4165, 180, 0
        %v4198 = vsel %vm4166, 180, 0
        %v4199 = vsel %vm4167, 180, 0
        %v4200 = vsel %vm4168, 180, 0
        %v4201 = vsel %vm4169, 180, 0
        %v4202 = vsel %vm4170, 180, 0
        %v4203 = vsel %vm4171, 180, 0
        %v4204 = vsel %vm4172, 180, 0
        %v4205 = vsel %vm4173, 180, 0
        %v4206 = vsel %vm4174, 180, 0
        %v4207 = vsel %vm4175, 180, 0
        %v4208 = vsel %vm4176, 180, 0
        %v4209 = vsel %vm4177, 180, 0
        %v4210 = vsel %vm4178, 180, 0
        %v4211 = vsel %vm4179, 180, 0
        %v4212 = vsel %vm4180, 180, 0
        %v4213 = vsel %vm4181, 180, 0
        %v4214 = vsel %vm4182, 180, 0
        %v4215 = vsel %vm4183, 180, 0
        %v4216 = vsel %vm4184, 180, 0
        %v4217 = vsel %vm4185, 180, 0
        %v4218 = vsel %vm4186, 180, 0
        %v4219 = vsel %vm4187, 180, 0
        %v4220 = vsel %vm4188, 180, 0
        %v4221 = vsel %vm4189, 180, 0
        %v4222 = vsel %vm4190, 180, 0
        %v4223 = vsel %vm4191, 180, 0
        %v4224 = vsel %vm4192, 180, 0
        %v4225 = vsel %vm4193, 180, 0
        %v4226 = vadd.s32 %v4034, %v4194
        %v4227 = vadd.s32 %v4035, %v4195
        %v4228 = vadd.s32 %v4036, %v4196
        %v4229 = vadd.s32 %v4037, %v4197
        %v4230 = vadd.s32 %v4038, %v4198
        %v4231 = vadd.s32 %v4039, %v4199
        %v4232 = vadd.s32 %v4040, %v4200
        %v4233 = vadd.s32 %v4041, %v4201
        %v4234 = vadd.s32 %v4042, %v4202
        %v4235 = vadd.s32 %v4043, %v4203
        %v4236 = vadd.s32 %v4044, %v4204
        %v4237 = vadd.s32 %v4045, %v4205
        %v4238 = vadd.s32 %v4046, %v4206
        %v4239 = vadd.s32 %v4047, %v4207
        %v4240 = vadd.s32 %v4048, %v4208
        %v4241 = vadd.s32 %v4049, %v4209
        %v4242 = vadd.s32 %v4050, %v4210
        %v4243 = vadd.s32 %v4051, %v4211
        %v4244 = vadd.s32 %v4052, %v4212
        %v4245 = vadd.s32 %v4053, %v4213
        %v4246 = vadd.s32 %v4054, %v4214
        %v4247 = vadd.s32 %v4055, %v4215
        %v4248 = vadd.s32 %v4056, %v4216
        %v4249 = vadd.s32 %v4057, %v4217
        %v4250 = vadd.s32 %v4058, %v4218
        %v4251 = vadd.s32 %v4059, %v4219
        %v4252 = vadd.s32 %v4060, %v4220
        %v4253 = vadd.s32 %v4061, %v4221
        %v4254 = vadd.s32 %v4062, %v4222
        %v4255 = vadd.s32 %v4063, %v4223
        %v4256 = vadd.s32 %v4064, %v4224
        %v4257 = vadd.s32 %v4065, %v4225
        %vm4258 = vcmp.lt.s32.totalorder %v4130, 0
        %vm4259 = vcmp.lt.s32.totalorder %v4131, 0
        %vm4260 = vcmp.lt.s32.totalorder %v4132, 0
        %vm4261 = vcmp.lt.s32.totalorder %v4133, 0
        %vm4262 = vcmp.lt.s32.totalorder %v4134, 0
        %vm4263 = vcmp.lt.s32.totalorder %v4135, 0
        %vm4264 = vcmp.lt.s32.totalorder %v4136, 0
        %vm4265 = vcmp.lt.s32.totalorder %v4137, 0
        %vm4266 = vcmp.lt.s32.totalorder %v4138, 0
        %vm4267 = vcmp.lt.s32.totalorder %v4139, 0
        %vm4268 = vcmp.lt.s32.totalorder %v4140, 0
        %vm4269 = vcmp.lt.s32.totalorder %v4141, 0
        %vm4270 = vcmp.lt.s32.totalorder %v4142, 0
        %vm4271 = vcmp.lt.s32.totalorder %v4143, 0
        %vm4272 = vcmp.lt.s32.totalorder %v4144, 0
        %vm4273 = vcmp.lt.s32.totalorder %v4145, 0
        %vm4274 = vcmp.lt.s32.totalorder %v4146, 0
        %vm4275 = vcmp.lt.s32.totalorder %v4147, 0
        %vm4276 = vcmp.lt.s32.totalorder %v4148, 0
        %vm4277 = vcmp.lt.s32.totalorder %v4149, 0
        %vm4278 = vcmp.lt.s32.totalorder %v4150, 0
        %vm4279 = vcmp.lt.s32.totalorder %v4151, 0
        %vm4280 = vcmp.lt.s32.totalorder %v4152, 0
        %vm4281 = vcmp.lt.s32.totalorder %v4153, 0
        %vm4282 = vcmp.lt.s32.totalorder %v4154, 0
        %vm4283 = vcmp.lt.s32.totalorder %v4155, 0
        %vm4284 = vcmp.lt.s32.totalorder %v4156, 0
        %vm4285 = vcmp.lt.s32.totalorder %v4157, 0
        %vm4286 = vcmp.lt.s32.totalorder %v4158, 0
        %vm4287 = vcmp.lt.s32.totalorder %v4159, 0
        %vm4288 = vcmp.lt.s32.totalorder %v4160, 0
        %vm4289 = vcmp.lt.s32.totalorder %v4161, 0
        %v4290 = vsel %vm4258, 180, 0
        %v4291 = vsel %vm4259, 180, 0
        %v4292 = vsel %vm4260, 180, 0
        %v4293 = vsel %vm4261, 180, 0
        %v4294 = vsel %vm4262, 180, 0
        %v4295 = vsel %vm4263, 180, 0
        %v4296 = vsel %vm4264, 180, 0
        %v4297 = vsel %vm4265, 180, 0
        %v4298 = vsel %vm4266, 180, 0
        %v4299 = vsel %vm4267, 180, 0
        %v4300 = vsel %vm4268, 180, 0
        %v4301 = vsel %vm4269, 180, 0
        %v4302 = vsel %vm4270, 180, 0
        %v4303 = vsel %vm4271, 180, 0
        %v4304 = vsel %vm4272, 180, 0
        %v4305 = vsel %vm4273, 180, 0
        %v4306 = vsel %vm4274, 180, 0
        %v4307 = vsel %vm4275, 180, 0
        %v4308 = vsel %vm4276, 180, 0
        %v4309 = vsel %vm4277, 180, 0
        %v4310 = vsel %vm4278, 180, 0
        %v4311 = vsel %vm4279, 180, 0
        %v4312 = vsel %vm4280, 180, 0
        %v4313 = vsel %vm4281, 180, 0
        %v4314 = vsel %vm4282, 180, 0
        %v4315 = vsel %vm4283, 180, 0
        %v4316 = vsel %vm4284, 180, 0
        %v4317 = vsel %vm4285, 180, 0
        %v4318 = vsel %vm4286, 180, 0
        %v4319 = vsel %vm4287, 180, 0
        %v4320 = vsel %vm4288, 180, 0
        %v4321 = vsel %vm4289, 180, 0
        %v4322 = vadd.s32 %v4130, %v4290
        %v4323 = vadd.s32 %v4131, %v4291
        %v4324 = vadd.s32 %v4132, %v4292
        %v4325 = vadd.s32 %v4133, %v4293
        %v4326 = vadd.s32 %v4134, %v4294
        %v4327 = vadd.s32 %v4135, %v4295
        %v4328 = vadd.s32 %v4136, %v4296
        %v4329 = vadd.s32 %v4137, %v4297
        %v4330 = vadd.s32 %v4138, %v4298
        %v4331 = vadd.s32 %v4139, %v4299
        %v4332 = vadd.s32 %v4140, %v4300
        %v4333 = vadd.s32 %v4141, %v4301
        %v4334 = vadd.s32 %v4142, %v4302
        %v4335 = vadd.s32 %v4143, %v4303
        %v4336 = vadd.s32 %v4144, %v4304
        %v4337 = vadd.s32 %v4145, %v4305
        %v4338 = vadd.s32 %v4146, %v4306
        %v4339 = vadd.s32 %v4147, %v4307
        %v4340 = vadd.s32 %v4148, %v4308
        %v4341 = vadd.s32 %v4149, %v4309
        %v4342 = vadd.s32 %v4150, %v4310
        %v4343 = vadd.s32 %v4151, %v4311
        %v4344 = vadd.s32 %v4152, %v4312
        %v4345 = vadd.s32 %v4153, %v4313
        %v4346 = vadd.s32 %v4154, %v4314
        %v4347 = vadd.s32 %v4155, %v4315
        %v4348 = vadd.s32 %v4156, %v4316
        %v4349 = vadd.s32 %v4157, %v4317
        %v4350 = vadd.s32 %v4158, %v4318
        %v4351 = vadd.s32 %v4159, %v4319
        %v4352 = vadd.s32 %v4160, %v4320
        %v4353 = vadd.s32 %v4161, %v4321
        %v4354 = vmul.u32 %v4226, 180
        %v4355 = vmul.u32 %v4227, 180
        %v4356 = vmul.u32 %v4228, 180
        %v4357 = vmul.u32 %v4229, 180
        %v4358 = vmul.u32 %v4230, 180
        %v4359 = vmul.u32 %v4231, 180
        %v4360 = vmul.u32 %v4232, 180
        %v4361 = vmul.u32 %v4233, 180
        %v4362 = vmul.u32 %v4234, 180
        %v4363 = vmul.u32 %v4235, 180
        %v4364 = vmul.u32 %v4236, 180
        %v4365 = vmul.u32 %v4237, 180
        %v4366 = vmul.u32 %v4238, 180
        %v4367 = vmul.u32 %v4239, 180
        %v4368 = vmul.u32 %v4240, 180
        %v4369 = vmul.u32 %v4241, 180
        %v4370 = vmul.u32 %v4242, 180
        %v4371 = vmul.u32 %v4243, 180
        %v4372 = vmul.u32 %v4244, 180
        %v4373 = vmul.u32 %v4245, 180
        %v4374 = vmul.u32 %v4246, 180
        %v4375 = vmul.u32 %v4247, 180
        %v4376 = vmul.u32 %v4248, 180
        %v4377 = vmul.u32 %v4249, 180
        %v4378 = vmul.u32 %v4250, 180
        %v4379 = vmul.u32 %v4251, 180
        %v4380 = vmul.u32 %v4252, 180
        %v4381 = vmul.u32 %v4253, 180
        %v4382 = vmul.u32 %v4254, 180
        %v4383 = vmul.u32 %v4255, 180
        %v4384 = vmul.u32 %v4256, 180
        %v4385 = vmul.u32 %v4257, 180
        %v4386 = vadd.s32 %v4354, %v4322
        %v4387 = vadd.s32 %v4355, %v4323
        %v4388 = vadd.s32 %v4356, %v4324
        %v4389 = vadd.s32 %v4357, %v4325
        %v4390 = vadd.s32 %v4358, %v4326
        %v4391 = vadd.s32 %v4359, %v4327
        %v4392 = vadd.s32 %v4360, %v4328
        %v4393 = vadd.s32 %v4361, %v4329
        %v4394 = vadd.s32 %v4362, %v4330
        %v4395 = vadd.s32 %v4363, %v4331
        %v4396 = vadd.s32 %v4364, %v4332
        %v4397 = vadd.s32 %v4365, %v4333
        %v4398 = vadd.s32 %v4366, %v4334
        %v4399 = vadd.s32 %v4367, %v4335
        %v4400 = vadd.s32 %v4368, %v4336
        %v4401 = vadd.s32 %v4369, %v4337
        %v4402 = vadd.s32 %v4370, %v4338
        %v4403 = vadd.s32 %v4371, %v4339
        %v4404 = vadd.s32 %v4372, %v4340
        %v4405 = vadd.s32 %v4373, %v4341
        %v4406 = vadd.s32 %v4374, %v4342
        %v4407 = vadd.s32 %v4375, %v4343
        %v4408 = vadd.s32 %v4376, %v4344
        %v4409 = vadd.s32 %v4377, %v4345
        %v4410 = vadd.s32 %v4378, %v4346
        %v4411 = vadd.s32 %v4379, %v4347
        %v4412 = vadd.s32 %v4380, %v4348
        %v4413 = vadd.s32 %v4381, %v4349
        %v4414 = vadd.s32 %v4382, %v4350
        %v4415 = vadd.s32 %v4383, %v4351
        %v4416 = vadd.s32 %v4384, %v4352
        %v4417 = vadd.s32 %v4385, %v4353
        %v4418 = vsel %vm3873, %v4386, 4294967295
        %v4419 = vsel %vm3874, %v4387, 4294967295
        %v4420 = vsel %vm3875, %v4388, 4294967295
        %v4421 = vsel %vm3876, %v4389, 4294967295
        %v4422 = vsel %vm3877, %v4390, 4294967295
        %v4423 = vsel %vm3878, %v4391, 4294967295
        %v4424 = vsel %vm3879, %v4392, 4294967295
        %v4425 = vsel %vm3880, %v4393, 4294967295
        %v4426 = vsel %vm3881, %v4394, 4294967295
        %v4427 = vsel %vm3882, %v4395, 4294967295
        %v4428 = vsel %vm3883, %v4396, 4294967295
        %v4429 = vsel %vm3884, %v4397, 4294967295
        %v4430 = vsel %vm3885, %v4398, 4294967295
        %v4431 = vsel %vm3886, %v4399, 4294967295
        %v4432 = vsel %vm3887, %v4400, 4294967295
        %v4433 = vsel %vm3888, %v4401, 4294967295
        %v4434 = vsel %vm3889, %v4402, 4294967295
        %v4435 = vsel %vm3890, %v4403, 4294967295
        %v4436 = vsel %vm3891, %v4404, 4294967295
        %v4437 = vsel %vm3892, %v4405, 4294967295
        %v4438 = vsel %vm3893, %v4406, 4294967295
        %v4439 = vsel %vm3894, %v4407, 4294967295
        %v4440 = vsel %vm3895, %v4408, 4294967295
        %v4441 = vsel %vm3896, %v4409, 4294967295
        %v4442 = vsel %vm3897, %v4410, 4294967295
        %v4443 = vsel %vm3898, %v4411, 4294967295
        %v4444 = vsel %vm3899, %v4412, 4294967295
        %v4445 = vsel %vm3900, %v4413, 4294967295
        %v4446 = vsel %vm3901, %v4414, 4294967295
        %v4447 = vsel %vm3902, %v4415, 4294967295
        %v4448 = vsel %vm3903, %v4416, 4294967295
        %v4449 = vsel %vm3904, %v4417, 4294967295
        %v4450 = vmul.u32 %v3905, 16
        %v4451 = vmul.u32 %v3906, 16
        %v4452 = vmul.u32 %v3907, 16
        %v4453 = vmul.u32 %v3908, 16
        %v4454 = vmul.u32 %v3909, 16
        %v4455 = vmul.u32 %v3910, 16
        %v4456 = vmul.u32 %v3911, 16
        %v4457 = vmul.u32 %v3912, 16
        %v4458 = vmul.u32 %v3913, 16
        %v4459 = vmul.u32 %v3914, 16
        %v4460 = vmul.u32 %v3915, 16
        %v4461 = vmul.u32 %v3916, 16
        %v4462 = vmul.u32 %v3917, 16
        %v4463 = vmul.u32 %v3918, 16
        %v4464 = vmul.u32 %v3919, 16
        %v4465 = vmul.u32 %v3920, 16
        %v4466 = vmul.u32 %v3921, 16
        %v4467 = vmul.u32 %v3922, 16
        %v4468 = vmul.u32 %v3923, 16
        %v4469 = vmul.u32 %v3924, 16
        %v4470 = vmul.u32 %v3925, 16
        %v4471 = vmul.u32 %v3926, 16
        %v4472 = vmul.u32 %v3927, 16
        %v4473 = vmul.u32 %v3928, 16
        %v4474 = vmul.u32 %v3929, 16
        %v4475 = vmul.u32 %v3930, 16
        %v4476 = vmul.u32 %v3931, 16
        %v4477 = vmul.u32 %v3932, 16
        %v4478 = vmul.u32 %v3933, 16
        %v4479 = vmul.u32 %v3934, 16
        %v4480 = vmul.u32 %v3935, 16
        %v4481 = vmul.u32 %v3936, 16
        %v4482 = vadd.s32 %v4450, %v3937
        %v4483 = vadd.s32 %v4451, %v3938
        %v4484 = vadd.s32 %v4452, %v3939
        %v4485 = vadd.s32 %v4453, %v3940
        %v4486 = vadd.s32 %v4454, %v3941
        %v4487 = vadd.s32 %v4455, %v3942
        %v4488 = vadd.s32 %v4456, %v3943
        %v4489 = vadd.s32 %v4457, %v3944
        %v4490 = vadd.s32 %v4458, %v3945
        %v4491 = vadd.s32 %v4459, %v3946
        %v4492 = vadd.s32 %v4460, %v3947
        %v4493 = vadd.s32 %v4461, %v3948
        %v4494 = vadd.s32 %v4462, %v3949
        %v4495 = vadd.s32 %v4463, %v3950
        %v4496 = vadd.s32 %v4464, %v3951
        %v4497 = vadd.s32 %v4465, %v3952
        %v4498 = vadd.s32 %v4466, %v3953
        %v4499 = vadd.s32 %v4467, %v3954
        %v4500 = vadd.s32 %v4468, %v3955
        %v4501 = vadd.s32 %v4469, %v3956
        %v4502 = vadd.s32 %v4470, %v3957
        %v4503 = vadd.s32 %v4471, %v3958
        %v4504 = vadd.s32 %v4472, %v3959
        %v4505 = vadd.s32 %v4473, %v3960
        %v4506 = vadd.s32 %v4474, %v3961
        %v4507 = vadd.s32 %v4475, %v3962
        %v4508 = vadd.s32 %v4476, %v3963
        %v4509 = vadd.s32 %v4477, %v3964
        %v4510 = vadd.s32 %v4478, %v3965
        %v4511 = vadd.s32 %v4479, %v3966
        %v4512 = vadd.s32 %v4480, %v3967
        %v4513 = vadd.s32 %v4481, %v3968
        %v4514 = vsel %vm3873, %v4482, 0
        %v4515 = vsel %vm3874, %v4483, 0
        %v4516 = vsel %vm3875, %v4484, 0
        %v4517 = vsel %vm3876, %v4485, 0
        %v4518 = vsel %vm3877, %v4486, 0
        %v4519 = vsel %vm3878, %v4487, 0
        %v4520 = vsel %vm3879, %v4488, 0
        %v4521 = vsel %vm3880, %v4489, 0
        %v4522 = vsel %vm3881, %v4490, 0
        %v4523 = vsel %vm3882, %v4491, 0
        %v4524 = vsel %vm3883, %v4492, 0
        %v4525 = vsel %vm3884, %v4493, 0
        %v4526 = vsel %vm3885, %v4494, 0
        %v4527 = vsel %vm3886, %v4495, 0
        %v4528 = vsel %vm3887, %v4496, 0
        %v4529 = vsel %vm3888, %v4497, 0
        %v4530 = vsel %vm3889, %v4498, 0
        %v4531 = vsel %vm3890, %v4499, 0
        %v4532 = vsel %vm3891, %v4500, 0
        %v4533 = vsel %vm3892, %v4501, 0
        %v4534 = vsel %vm3893, %v4502, 0
        %v4535 = vsel %vm3894, %v4503, 0
        %v4536 = vsel %vm3895, %v4504, 0
        %v4537 = vsel %vm3896, %v4505, 0
        %v4538 = vsel %vm3897, %v4506, 0
        %v4539 = vsel %vm3898, %v4507, 0
        %v4540 = vsel %vm3899, %v4508, 0
        %v4541 = vsel %vm3900, %v4509, 0
        %v4542 = vsel %vm3901, %v4510, 0
        %v4543 = vsel %vm3902, %v4511, 0
        %v4544 = vsel %vm3903, %v4512, 0
        %v4545 = vsel %vm3904, %v4513, 0
        %4546 = vst [vmem:[%s203] sm:$0xff] %v4418
        %4547 = vst [vmem:[%s203 + $0x8] sm:$0xff] %v4419
        %4548 = vst [vmem:[%s203 + $0x10] sm:$0xff] %v4420
        %4549 = vst [vmem:[%s203 + $0x18] sm:$0xff] %v4421
        %4550 = vst [vmem:[%s203 + $0x20] sm:$0xff] %v4422
        %4551 = vst [vmem:[%s203 + $0x28] sm:$0xff] %v4423
        %4552 = vst [vmem:[%s203 + $0x30] sm:$0xff] %v4424
        %4553 = vst [vmem:[%s203 + $0x38] sm:$0xff] %v4425
        %4554 = vst [vmem:[%s203 + $0x40] sm:$0xff] %v4426
        %4555 = vst [vmem:[%s203 + $0x48] sm:$0xff] %v4427
        %4556 = vst [vmem:[%s203 + $0x50] sm:$0xff] %v4428
        %4557 = vst [vmem:[%s203 + $0x58] sm:$0xff] %v4429
        %4558 = vst [vmem:[%s203 + $0x60] sm:$0xff] %v4430
        %4559 = vst [vmem:[%s203 + $0x68] sm:$0xff] %v4431
        %4560 = vst [vmem:[%s203 + $0x70] sm:$0xff] %v4432
        %4561 = vst [vmem:[%s203 + $0x78] sm:$0xff] %v4433
        %4562 = vst [vmem:[%s203 + $0x80] sm:$0xff] %v4434
        %4563 = vst [vmem:[%s203 + $0x88] sm:$0xff] %v4435
        %4564 = vst [vmem:[%s203 + $0x90] sm:$0xff] %v4436
        %4565 = vst [vmem:[%s203 + $0x98] sm:$0xff] %v4437
        %4566 = vst [vmem:[%s203 + $0xa0] sm:$0xff] %v4438
        %4567 = vst [vmem:[%s203 + $0xa8] sm:$0xff] %v4439
        %4568 = vst [vmem:[%s203 + $0xb0] sm:$0xff] %v4440
        %4569 = vst [vmem:[%s203 + $0xb8] sm:$0xff] %v4441
        %4570 = vst [vmem:[%s203 + $0xc0] sm:$0xff] %v4442
        %4571 = vst [vmem:[%s203 + $0xc8] sm:$0xff] %v4443
        %4572 = vst [vmem:[%s203 + $0xd0] sm:$0xff] %v4444
        %4573 = vst [vmem:[%s203 + $0xd8] sm:$0xff] %v4445
        %4574 = vst [vmem:[%s203 + $0xe0] sm:$0xff] %v4446
        %4575 = vst [vmem:[%s203 + $0xe8] sm:$0xff] %v4447
        %4576 = vst [vmem:[%s203 + $0xf0] sm:$0xff] %v4448
        %4577 = vst [vmem:[%s203 + $0xf8] sm:$0xff] %v4449
        %4578 = vst [vmem:[%s210] sm:$0xff] %v4514
        %4579 = vst [vmem:[%s210 + $0x8] sm:$0xff] %v4515
        %4580 = vst [vmem:[%s210 + $0x10] sm:$0xff] %v4516
        %4581 = vst [vmem:[%s210 + $0x18] sm:$0xff] %v4517
        %4582 = vst [vmem:[%s210 + $0x20] sm:$0xff] %v4518
        %4583 = vst [vmem:[%s210 + $0x28] sm:$0xff] %v4519
        %4584 = vst [vmem:[%s210 + $0x30] sm:$0xff] %v4520
        %4585 = vst [vmem:[%s210 + $0x38] sm:$0xff] %v4521
        %4586 = vst [vmem:[%s210 + $0x40] sm:$0xff] %v4522
        %4587 = vst [vmem:[%s210 + $0x48] sm:$0xff] %v4523
        %4588 = vst [vmem:[%s210 + $0x50] sm:$0xff] %v4524
        %4589 = vst [vmem:[%s210 + $0x58] sm:$0xff] %v4525
        %4590 = vst [vmem:[%s210 + $0x60] sm:$0xff] %v4526
        %4591 = vst [vmem:[%s210 + $0x68] sm:$0xff] %v4527
        %4592 = vst [vmem:[%s210 + $0x70] sm:$0xff] %v4528
        %4593 = vst [vmem:[%s210 + $0x78] sm:$0xff] %v4529
        %4594 = vst [vmem:[%s210 + $0x80] sm:$0xff] %v4530
        %4595 = vst [vmem:[%s210 + $0x88] sm:$0xff] %v4531
        %4596 = vst [vmem:[%s210 + $0x90] sm:$0xff] %v4532
        %4597 = vst [vmem:[%s210 + $0x98] sm:$0xff] %v4533
        %4598 = vst [vmem:[%s210 + $0xa0] sm:$0xff] %v4534
        %4599 = vst [vmem:[%s210 + $0xa8] sm:$0xff] %v4535
        %4600 = vst [vmem:[%s210 + $0xb0] sm:$0xff] %v4536
        %4601 = vst [vmem:[%s210 + $0xb8] sm:$0xff] %v4537
        %4602 = vst [vmem:[%s210 + $0xc0] sm:$0xff] %v4538
        %4603 = vst [vmem:[%s210 + $0xc8] sm:$0xff] %v4539
        %4604 = vst [vmem:[%s210 + $0xd0] sm:$0xff] %v4540
        %4605 = vst [vmem:[%s210 + $0xd8] sm:$0xff] %v4541
        %4606 = vst [vmem:[%s210 + $0xe0] sm:$0xff] %v4542
        %4607 = vst [vmem:[%s210 + $0xe8] sm:$0xff] %v4543
        %4608 = vst [vmem:[%s210 + $0xf0] sm:$0xff] %v4544
        %4609 = vst [vmem:[%s210 + $0xf8] sm:$0xff] %v4545
        %s4610 = sand.u32 %s92, 1
        %s4611 = scalar_lea.sflag [#allocation4], %s4610
        %s4612 = sand.u32 %s92, 1
        %s4613 = smul.addr %s4612, 256
        %s4614 = scalar_lea.vmem [#allocation7], %s4613
        %s4615 = sand.u32 %s120, 1
        %s4616 = scalar_lea.sflag [#allocation9], %s4615
        %s4617 = sand.u32 %s120, 1
        %s4618 = smul.addr %s4617, 256
        %s4619 = scalar_lea.vmem [#allocation8], %s4618
        // Predicated region
        $region37: #{tpu_custom_call.1} parent=27 // pred_check
          %p4620 = pneg %p102
        $region38: #{tpu_custom_call.1} parent=27 // pred_check_branch
          %4622 = sbr.rel (%p4620) target = $region40
        $region39: #{tpu_custom_call.1} parent=27 // pred_region
          %s4623 = smul.u32 32, %s27
          %s4625 = ssub.s32 4096, 4096
          %4626 = vsyncadd %s4611, %s4625
          %s4627 = smul.addr %s28, 32
          %s4628 = sadd.s32 %s4623, %s4627
          %s4629 = smul.addr %s4628, 128
          %s4630 = scalar_lea.hbm %s2, %s4629
          %s4631 = sshll.u32 %s4614, 4
          %s4632 = int_to_ptr.vmem [resolvable:$true] %s4631
          %4637 = dma.vmem_to_hbm [thread:$0]  %s4632, 4096, %s4630, %s4611, 128, 128, 8
        $region40: #{tpu_custom_call.1} parent=27 // pred_fallthru
          _
        // Predicated region
        $region41: #{tpu_custom_call.1} parent=27 // pred_check
          %p4638 = pneg %p130
        $region42: #{tpu_custom_call.1} parent=27 // pred_check_branch
          %4640 = sbr.rel (%p4638) target = $region44
        $region43: #{tpu_custom_call.1} parent=27 // pred_region
          %s4641 = smul.u32 32, %s27
          %s4643 = ssub.s32 4096, 4096
          %4644 = vsyncadd %s4616, %s4643
          %s4645 = smul.addr %s28, 32
          %s4646 = sadd.s32 %s4641, %s4645
          %s4647 = smul.addr %s4646, 128
          %s4648 = scalar_lea.hbm %s3, %s4647
          %s4649 = sshll.u32 %s4619, 4
          %s4650 = int_to_ptr.vmem [resolvable:$true] %s4649
          %4655 = dma.vmem_to_hbm [thread:$0]  %s4650, 4096, %s4648, %s4616, 128, 128, 8
        $region44: #{tpu_custom_call.1} parent=27 // pred_fallthru
          _
      $region28: #{tpu_custom_call.1} parent=5 // pred_fallthru
        _
      %p4656 = scmp.le.s32.totalorder 2, %s18
      // Predicated region
      $region45: #{tpu_custom_call.1} parent=5 // pred_check
        %p4657 = pneg %p4656
      $region46: #{tpu_custom_call.1} parent=5 // pred_check_branch
        %4659 = sbr.rel (%p4657) target = $region48
      $region47: #{tpu_custom_call.1} parent=5 // pred_region
        %s4660 = ssub.s32 %s18, 2
        // Predicated region
        $region49: #{tpu_custom_call.1} parent=47 // pred_check
          %p4661 = pneg %p108
        $region50: #{tpu_custom_call.1} parent=47 // pred_check_branch
          %4663 = sbr.rel (%p4661) target = $region52
        $region51: #{tpu_custom_call.1} parent=47 // pred_region
          %s4664 = sand.u32 %s93, 1
          %s4665 = scalar_lea.sflag [#allocation4], %s4664
          %s4666 = sand.u32 %s93, 1
          %s4667 = smul.addr %s4666, 256
          %s4668 = scalar_lea.vmem [#allocation7], %s4667
          %4669 = dma.done %s4665, 4096
        $region52: #{tpu_custom_call.1} parent=47 // pred_fallthru
          _
        // Predicated region
        $region53: #{tpu_custom_call.1} parent=47 // pred_check
          %p4670 = pneg %p136
        $region54: #{tpu_custom_call.1} parent=47 // pred_check_branch
          %4672 = sbr.rel (%p4670) target = $region56
        $region55: #{tpu_custom_call.1} parent=47 // pred_region
          %s4673 = sand.u32 %s121, 1
          %s4674 = scalar_lea.sflag [#allocation9], %s4673
          %s4675 = sand.u32 %s121, 1
          %s4676 = smul.addr %s4675, 256
          %s4677 = scalar_lea.vmem [#allocation8], %s4676
          %4678 = dma.done %s4674, 4096
        $region56: #{tpu_custom_call.1} parent=47 // pred_fallthru
          _
      $region48: #{tpu_custom_call.1} parent=5 // pred_fallthru
        _
    $region6: #{tpu_custom_call.1} parent=1 // loop_footer
      %s22 = sadd.s32 1, %s18
    $region7: #{tpu_custom_call.1} parent=1 // loop_footer_branch
      %17 = sbr.rel target = $region3
    $region8: #{tpu_custom_call.1} parent=1 // loop_exit
      _
    %4679 = vsyncpa [#allocation3], 1
    %s4680 = scalar_lea.sflag [#allocation3], 1
    %4681 = vsyncpa %s4680, 1
    %4682 = vsyncpa [#allocation4], 1
    %s4683 = scalar_lea.sflag [#allocation4], 1
    %4684 = vsyncpa %s4683, 1
    %4685 = vsyncpa [#allocation9], 1
    %s4686 = scalar_lea.sflag [#allocation9], 1
    %4687 = vsyncpa %s4686, 1
    %4688 = vsyncpa [#allocation5], 1
    %s4689 = scalar_lea.sflag [#allocation5], 1
    %4690 = vsyncpa %s4689, 1

</llo_original>
